<compile_context>
chip_gen: v5e
topology: v5e:2x2
jax: 0.10.0
libtpu: 0.0.40
codegen_flags: <defaults>
</compile_context>

<pallas_src>
import jax
import jax.numpy as jnp
from jax import lax
from jax.experimental import pallas as pl
from jax.experimental.pallas import tpu as pltpu


def _resblock_kernel(x_ref, w1_ref, b1_ref, w2_ref, b2_ref, o_ref, pad_ref):
    """Fused residual block for one batch element.

    x_ref  : (1, H, W, C)   input tile (NHWC)
    w*_ref : (3, 3, C, C)   conv weights (KH, KW, Cin, Cout), VMEM-resident
    b*_ref : (1, C)         conv biases
    o_ref  : (1, H, W, C)   output tile
    pad_ref: (H+2, W+2, C)  VMEM scratch, reused for both convs' zero padding
    """
    _, h, w, c = x_ref.shape
    hw = h * w

    # ---- in-VMEM zero padding of the input (no jnp.pad, no HBM traffic) ----
    pad_ref[...] = jnp.zeros_like(pad_ref)
    pad_ref[1:h + 1, 1:w + 1, :] = x_ref[0]

    def conv3x3(w_ref):
        # 3x3 conv as 9 (H*W, C) x (C, C) MXU matmuls with f32 accumulation.
        acc = jnp.zeros((hw, c), jnp.float32)
        for dx in range(3):
            zdx = pad_ref[:, dx:dx + w, :]              # (H+2, W, C): one
            for dy in range(3):                          #  sublane shift per dx
                patch = zdx[dy:dy + h].reshape(hw, c)    # dy slice = outer dim (free)
                acc = acc + jnp.dot(patch, w_ref[dy, dx],
                                    preferred_element_type=jnp.float32)
        return acc

    # conv1 + bias + ReLU
    h1 = jnp.maximum(conv3x3(w1_ref) + b1_ref[...], 0.0)

    # Re-pad the hidden activation into the same scratch (border is still zero).
    pad_ref[1:h + 1, 1:w + 1, :] = h1.reshape(h, w, c).astype(pad_ref.dtype)

    # conv2 + bias + residual add + final ReLU, all fused.
    out = conv3x3(w2_ref) + b2_ref[...]
    out = out + x_ref[0].reshape(hw, c).astype(jnp.float32)
    out = jnp.maximum(out, 0.0)
    o_ref[0] = out.reshape(h, w, c).astype(o_ref.dtype)


def residual_block_pallas(x_nchw, w1, b1, w2, b2):
    """ResidualBlock forward.

    x_nchw : (N, C, H, W)            (PyTorch layout)
    w1, w2 : (Cout, Cin, 3, 3)       (PyTorch nn.Conv2d layout, Cin == Cout)
    b1, b2 : (Cout,)
    returns (N, C, H, W)
    """
    n, c, h, w = x_nchw.shape

    # NCHW -> NHWC: channels on lanes, W on sublanes.
    x = jnp.transpose(x_nchw, (0, 2, 3, 1)).astype(jnp.float32)
    # (Cout, Cin, KH, KW) -> (KH, KW, Cin, Cout)
    w1t = jnp.transpose(w1, (2, 3, 1, 0)).astype(jnp.float32)
    w2t = jnp.transpose(w2, (2, 3, 1, 0)).astype(jnp.float32)
    b1r = b1.reshape(1, c).astype(jnp.float32)
    b2r = b2.reshape(1, c).astype(jnp.float32)

    out = pl.pallas_call(
        _resblock_kernel,
        out_shape=jax.ShapeDtypeStruct((n, h, w, c), jnp.float32),
        grid=(n,),
        in_specs=[
            pl.BlockSpec((1, h, w, c), lambda i: (i, 0, 0, 0)),
            pl.BlockSpec((3, 3, c, c), lambda i: (0, 0, 0, 0)),
            pl.BlockSpec((1, c), lambda i: (0, 0)),
            pl.BlockSpec((3, 3, c, c), lambda i: (0, 0, 0, 0)),
            pl.BlockSpec((1, c), lambda i: (0, 0)),
        ],
        out_specs=pl.BlockSpec((1, h, w, c), lambda i: (i, 0, 0, 0)),
        scratch_shapes=[pltpu.VMEM((h + 2, w + 2, c), jnp.float32)],
        compiler_params=pltpu.CompilerParams(
            dimension_semantics=("parallel",)),
    )(x, w1t, b1r, w2t, b2r)

    # NHWC -> NCHW
    return jnp.transpose(out, (0, 3, 1, 2))


def _reference_resblock(x, w1, b1, w2, b2):
    """Pure-JAX reference matching the PyTorch module exactly."""
    dn = ("NCHW", "OIHW", "NCHW")
    y = lax.conv_general_dilated(x, w1, (1, 1), [(1, 1), (1, 1)],
                                 dimension_numbers=dn)
    y = jnp.maximum(y + b1.reshape(1, -1, 1, 1), 0.0)
    y = lax.conv_general_dilated(y, w2, (1, 1), [(1, 1), (1, 1)],
                                 dimension_numbers=dn)
    y = y + b2.reshape(1, -1, 1, 1) + x
    return jnp.maximum(y, 0.0)


if __name__ == "__main__":
    key = jax.random.PRNGKey(0)
    kx, kw1, kb1, kw2, kb2 = jax.random.split(key, 5)

    # ResidualBlock needs in_channels == out_channels for the residual add.
    n, c, h, w = 2, 64, 16, 16
    fan_in = c * 3 * 3
    bound = 1.0 / (fan_in ** 0.5)   # PyTorch default Conv2d init bound

    x = jax.random.normal(kx, (n, c, h, w), jnp.float32)
    w1 = jax.random.uniform(kw1, (c, c, 3, 3), jnp.float32, -bound, bound)
    b1 = jax.random.uniform(kb1, (c,), jnp.float32, -bound, bound)
    w2 = jax.random.uniform(kw2, (c, c, 3, 3), jnp.float32, -bound, bound)
    b2 = jax.random.uniform(kb2, (c,), jnp.float32, -bound, bound)

    y = jax.jit(residual_block_pallas)(x, w1, b1, w2, b2)
    y = jax.block_until_ready(y)

    assert y.shape == (n, c, h, w), y.shape
    assert bool(jnp.all(jnp.isfinite(y)))

    y_ref = _reference_resblock(x, w1, b1, w2, b2)
    max_err = float(jnp.max(jnp.abs(y - y_ref)))
    assert bool(jnp.allclose(y, y_ref, rtol=1e-4, atol=1e-4)), max_err

    print("KERNEL_OK")
</pallas_src>

<mosaic_0001>
module attributes {stable_mosaic.version = 11 : i64} {
  func.func @_resblock_kernel(%arg0: i32, %arg1: memref<1x16x16x64xf32, #tpu.memory_space<vmem>>, %arg2: memref<3x3x64x64xf32, #tpu.memory_space<vmem>>, %arg3: memref<1x64xf32, #tpu.memory_space<vmem>>, %arg4: memref<3x3x64x64xf32, #tpu.memory_space<vmem>>, %arg5: memref<1x64xf32, #tpu.memory_space<vmem>>, %arg6: memref<1x16x16x64xf32, #tpu.memory_space<vmem>>, %arg7: memref<18x18x64xf32, #tpu.memory_space<vmem>>) attributes {dimension_semantics = [#tpu.dimension_semantics<parallel>], iteration_bounds = array<i64: 2>, scalar_prefetch = 0 : i64, scratch_operands = 1 : i64, tpu.core_type = #tpu.core_type<tc>, window_params = [{transform_indices = @transform_0, window_bounds = array<i64: 1, 16, 16, 64>}, {pipeline_mode = #tpu.pipeline_mode<synchronous>, transform_indices = @transform_1, window_bounds = array<i64: 3, 3, 64, 64>}, {pipeline_mode = #tpu.pipeline_mode<synchronous>, transform_indices = @transform_2, window_bounds = array<i64: 1, 64>}, {pipeline_mode = #tpu.pipeline_mode<synchronous>, transform_indices = @transform_3, window_bounds = array<i64: 3, 3, 64, 64>}, {pipeline_mode = #tpu.pipeline_mode<synchronous>, transform_indices = @transform_4, window_bounds = array<i64: 1, 64>}, {transform_indices = @transform_5, window_bounds = array<i64: 1, 16, 16, 64>}]} {
    %cst = arith.constant 0.000000e+00 : f32
    %0 = vector.broadcast %cst : f32 to vector<18x18x64xf32>
    %c0 = arith.constant 0 : index
    %c0_0 = arith.constant 0 : index
    %c0_1 = arith.constant 0 : index
    %1 = vector.load %arg7[%c0, %c0_0, %c0_1] : memref<18x18x64xf32, #tpu.memory_space<vmem>>, vector<18x18x64xf32>
    tpu.vector_store %arg7[%c0, %c0_0, %c0_1], %0 {strides = array<i32>} : memref<18x18x64xf32, #tpu.memory_space<vmem>>, vector<18x18x64xf32>,
    %c0_2 = arith.constant 0 : index
    %c0_3 = arith.constant 0 : index
    %c0_4 = arith.constant 0 : index
    %c0_5 = arith.constant 0 : index
    %2 = vector.load %arg1[%c0_2, %c0_3, %c0_4, %c0_5] : memref<1x16x16x64xf32, #tpu.memory_space<vmem>>, vector<1x16x16x64xf32>
    %3 = vector.shape_cast %2 : vector<1x16x16x64xf32> to vector<16x16x64xf32>
    %c1 = arith.constant 1 : index
    %c1_6 = arith.constant 1 : index
    %c0_7 = arith.constant 0 : index
    %4 = vector.load %arg7[%c1, %c1_6, %c0_7] : memref<18x18x64xf32, #tpu.memory_space<vmem>>, vector<16x16x64xf32>
    tpu.vector_store %arg7[%c1, %c1_6, %c0_7], %3 {strides = array<i32>} : memref<18x18x64xf32, #tpu.memory_space<vmem>>, vector<16x16x64xf32>,
    %cst_8 = arith.constant 0.000000e+00 : f32
    %5 = vector.broadcast %cst_8 : f32 to vector<256x64xf32>
    %c0_9 = arith.constant 0 : index
    %c0_10 = arith.constant 0 : index
    %c0_11 = arith.constant 0 : index
    %6 = vector.load %arg7[%c0_9, %c0_10, %c0_11] : memref<18x18x64xf32, #tpu.memory_space<vmem>>, vector<18x16x64xf32>
    %7 = vector.extract_strided_slice %6 {offsets = [0, 0, 0], sizes = [16, 16, 64], strides = [1, 1, 1]} : vector<18x16x64xf32> to vector<16x16x64xf32>
    %8 = vector.shape_cast %7 : vector<16x16x64xf32> to vector<256x64xf32>
    %c0_12 = arith.constant 0 : index
    %c0_13 = arith.constant 0 : index
    %c0_14 = arith.constant 0 : index
    %c0_15 = arith.constant 0 : index
    %9 = vector.load %arg2[%c0_12, %c0_13, %c0_14, %c0_15] : memref<3x3x64x64xf32, #tpu.memory_space<vmem>>, vector<1x1x64x64xf32>
    %10 = vector.shape_cast %9 : vector<1x1x64x64xf32> to vector<64x64xf32>
    %cst_16 = arith.constant dense<0.000000e+00> : vector<256x64xf32>
    %11 = tpu.matmul %8, %10, %cst_16 {dimension_numbers = #tpu.dot_dimension_numbers<[1], [0], [0], [1], [0, 0, 1, 1], [], []>} : vector<256x64xf32>, vector<64x64xf32>, vector<256x64xf32> -> vector<256x64xf32>
    %12 = arith.addf %5, %11 : vector<256x64xf32>
    %13 = vector.extract_strided_slice %6 {offsets = [1, 0, 0], sizes = [16, 16, 64], strides = [1, 1, 1]} : vector<18x16x64xf32> to vector<16x16x64xf32>
    %14 = vector.shape_cast %13 : vector<16x16x64xf32> to vector<256x64xf32>
    %c1_17 = arith.constant 1 : index
    %c0_18 = arith.constant 0 : index
    %c0_19 = arith.constant 0 : index
    %c0_20 = arith.constant 0 : index
    %15 = vector.load %arg2[%c1_17, %c0_18, %c0_19, %c0_20] : memref<3x3x64x64xf32, #tpu.memory_space<vmem>>, vector<1x1x64x64xf32>
    %16 = vector.shape_cast %15 : vector<1x1x64x64xf32> to vector<64x64xf32>
    %cst_21 = arith.constant dense<0.000000e+00> : vector<256x64xf32>
    %17 = tpu.matmul %14, %16, %cst_21 {dimension_numbers = #tpu.dot_dimension_numbers<[1], [0], [0], [1], [0, 0, 1, 1], [], []>} : vector<256x64xf32>, vector<64x64xf32>, vector<256x64xf32> -> vector<256x64xf32>
    %18 = arith.addf %12, %17 : vector<256x64xf32>
    %19 = vector.extract_strided_slice %6 {offsets = [2, 0, 0], sizes = [16, 16, 64], strides = [1, 1, 1]} : vector<18x16x64xf32> to vector<16x16x64xf32>
    %20 = vector.shape_cast %19 : vector<16x16x64xf32> to vector<256x64xf32>
    %c2 = arith.constant 2 : index
    %c0_22 = arith.constant 0 : index
    %c0_23 = arith.constant 0 : index
    %c0_24 = arith.constant 0 : index
    %21 = vector.load %arg2[%c2, %c0_22, %c0_23, %c0_24] : memref<3x3x64x64xf32, #tpu.memory_space<vmem>>, vector<1x1x64x64xf32>
    %22 = vector.shape_cast %21 : vector<1x1x64x64xf32> to vector<64x64xf32>
    %cst_25 = arith.constant dense<0.000000e+00> : vector<256x64xf32>
    %23 = tpu.matmul %20, %22, %cst_25 {dimension_numbers = #tpu.dot_dimension_numbers<[1], [0], [0], [1], [0, 0, 1, 1], [], []>} : vector<256x64xf32>, vector<64x64xf32>, vector<256x64xf32> -> vector<256x64xf32>
    %24 = arith.addf %18, %23 : vector<256x64xf32>
    %c0_26 = arith.constant 0 : index
    %c1_27 = arith.constant 1 : index
    %c0_28 = arith.constant 0 : index
    %25 = vector.load %arg7[%c0_26, %c1_27, %c0_28] : memref<18x18x64xf32, #tpu.memory_space<vmem>>, vector<18x16x64xf32>
    %26 = vector.extract_strided_slice %25 {offsets = [0, 0, 0], sizes = [16, 16, 64], strides = [1, 1, 1]} : vector<18x16x64xf32> to vector<16x16x64xf32>
    %27 = vector.shape_cast %26 : vector<16x16x64xf32> to vector<256x64xf32>
    %c0_29 = arith.constant 0 : index
    %c1_30 = arith.constant 1 : index
    %c0_31 = arith.constant 0 : index
    %c0_32 = arith.constant 0 : index
    %28 = vector.load %arg2[%c0_29, %c1_30, %c0_31, %c0_32] : memref<3x3x64x64xf32, #tpu.memory_space<vmem>>, vector<1x1x64x64xf32>
    %29 = vector.shape_cast %28 : vector<1x1x64x64xf32> to vector<64x64xf32>
    %cst_33 = arith.constant dense<0.000000e+00> : vector<256x64xf32>
    %30 = tpu.matmul %27, %29, %cst_33 {dimension_numbers = #tpu.dot_dimension_numbers<[1], [0], [0], [1], [0, 0, 1, 1], [], []>} : vector<256x64xf32>, vector<64x64xf32>, vector<256x64xf32> -> vector<256x64xf32>
    %31 = arith.addf %24, %30 : vector<256x64xf32>
    %32 = vector.extract_strided_slice %25 {offsets = [1, 0, 0], sizes = [16, 16, 64], strides = [1, 1, 1]} : vector<18x16x64xf32> to vector<16x16x64xf32>
    %33 = vector.shape_cast %32 : vector<16x16x64xf32> to vector<256x64xf32>
    %c1_34 = arith.constant 1 : index
    %c1_35 = arith.constant 1 : index
    %c0_36 = arith.constant 0 : index
    %c0_37 = arith.constant 0 : index
    %34 = vector.load %arg2[%c1_34, %c1_35, %c0_36, %c0_37] : memref<3x3x64x64xf32, #tpu.memory_space<vmem>>, vector<1x1x64x64xf32>
    %35 = vector.shape_cast %34 : vector<1x1x64x64xf32> to vector<64x64xf32>
    %cst_38 = arith.constant dense<0.000000e+00> : vector<256x64xf32>
    %36 = tpu.matmul %33, %35, %cst_38 {dimension_numbers = #tpu.dot_dimension_numbers<[1], [0], [0], [1], [0, 0, 1, 1], [], []>} : vector<256x64xf32>, vector<64x64xf32>, vector<256x64xf32> -> vector<256x64xf32>
    %37 = arith.addf %31, %36 : vector<256x64xf32>
    %38 = vector.extract_strided_slice %25 {offsets = [2, 0, 0], sizes = [16, 16, 64], strides = [1, 1, 1]} : vector<18x16x64xf32> to vector<16x16x64xf32>
    %39 = vector.shape_cast %38 : vector<16x16x64xf32> to vector<256x64xf32>
    %c2_39 = arith.constant 2 : index
    %c1_40 = arith.constant 1 : index
    %c0_41 = arith.constant 0 : index
    %c0_42 = arith.constant 0 : index
    %40 = vector.load %arg2[%c2_39, %c1_40, %c0_41, %c0_42] : memref<3x3x64x64xf32, #tpu.memory_space<vmem>>, vector<1x1x64x64xf32>
    %41 = vector.shape_cast %40 : vector<1x1x64x64xf32> to vector<64x64xf32>
    %cst_43 = arith.constant dense<0.000000e+00> : vector<256x64xf32>
    %42 = tpu.matmul %39, %41, %cst_43 {dimension_numbers = #tpu.dot_dimension_numbers<[1], [0], [0], [1], [0, 0, 1, 1], [], []>} : vector<256x64xf32>, vector<64x64xf32>, vector<256x64xf32> -> vector<256x64xf32>
    %43 = arith.addf %37, %42 : vector<256x64xf32>
    %c0_44 = arith.constant 0 : index
    %c2_45 = arith.constant 2 : index
    %c0_46 = arith.constant 0 : index
    %44 = vector.load %arg7[%c0_44, %c2_45, %c0_46] : memref<18x18x64xf32, #tpu.memory_space<vmem>>, vector<18x16x64xf32>
    %45 = vector.extract_strided_slice %44 {offsets = [0, 0, 0], sizes = [16, 16, 64], strides = [1, 1, 1]} : vector<18x16x64xf32> to vector<16x16x64xf32>
    %46 = vector.shape_cast %45 : vector<16x16x64xf32> to vector<256x64xf32>
    %c0_47 = arith.constant 0 : index
    %c2_48 = arith.constant 2 : index
    %c0_49 = arith.constant 0 : index
    %c0_50 = arith.constant 0 : index
    %47 = vector.load %arg2[%c0_47, %c2_48, %c0_49, %c0_50] : memref<3x3x64x64xf32, #tpu.memory_space<vmem>>, vector<1x1x64x64xf32>
    %48 = vector.shape_cast %47 : vector<1x1x64x64xf32> to vector<64x64xf32>
    %cst_51 = arith.constant dense<0.000000e+00> : vector<256x64xf32>
    %49 = tpu.matmul %46, %48, %cst_51 {dimension_numbers = #tpu.dot_dimension_numbers<[1], [0], [0], [1], [0, 0, 1, 1], [], []>} : vector<256x64xf32>, vector<64x64xf32>, vector<256x64xf32> -> vector<256x64xf32>
    %50 = arith.addf %43, %49 : vector<256x64xf32>
    %51 = vector.extract_strided_slice %44 {offsets = [1, 0, 0], sizes = [16, 16, 64], strides = [1, 1, 1]} : vector<18x16x64xf32> to vector<16x16x64xf32>
    %52 = vector.shape_cast %51 : vector<16x16x64xf32> to vector<256x64xf32>
    %c1_52 = arith.constant 1 : index
    %c2_53 = arith.constant 2 : index
    %c0_54 = arith.constant 0 : index
    %c0_55 = arith.constant 0 : index
    %53 = vector.load %arg2[%c1_52, %c2_53, %c0_54, %c0_55] : memref<3x3x64x64xf32, #tpu.memory_space<vmem>>, vector<1x1x64x64xf32>
    %54 = vector.shape_cast %53 : vector<1x1x64x64xf32> to vector<64x64xf32>
    %cst_56 = arith.constant dense<0.000000e+00> : vector<256x64xf32>
    %55 = tpu.matmul %52, %54, %cst_56 {dimension_numbers = #tpu.dot_dimension_numbers<[1], [0], [0], [1], [0, 0, 1, 1], [], []>} : vector<256x64xf32>, vector<64x64xf32>, vector<256x64xf32> -> vector<256x64xf32>
    %56 = arith.addf %50, %55 : vector<256x64xf32>
    %57 = vector.extract_strided_slice %44 {offsets = [2, 0, 0], sizes = [16, 16, 64], strides = [1, 1, 1]} : vector<18x16x64xf32> to vector<16x16x64xf32>
    %58 = vector.shape_cast %57 : vector<16x16x64xf32> to vector<256x64xf32>
    %c2_57 = arith.constant 2 : index
    %c2_58 = arith.constant 2 : index
    %c0_59 = arith.constant 0 : index
    %c0_60 = arith.constant 0 : index
    %59 = vector.load %arg2[%c2_57, %c2_58, %c0_59, %c0_60] : memref<3x3x64x64xf32, #tpu.memory_space<vmem>>, vector<1x1x64x64xf32>
    %60 = vector.shape_cast %59 : vector<1x1x64x64xf32> to vector<64x64xf32>
    %cst_61 = arith.constant dense<0.000000e+00> : vector<256x64xf32>
    %61 = tpu.matmul %58, %60, %cst_61 {dimension_numbers = #tpu.dot_dimension_numbers<[1], [0], [0], [1], [0, 0, 1, 1], [], []>} : vector<256x64xf32>, vector<64x64xf32>, vector<256x64xf32> -> vector<256x64xf32>
    %62 = arith.addf %56, %61 : vector<256x64xf32>
    %c0_62 = arith.constant 0 : index
    %c0_63 = arith.constant 0 : index
    %63 = vector.load %arg3[%c0_62, %c0_63] : memref<1x64xf32, #tpu.memory_space<vmem>>, vector<1x64xf32>
    %64 = vector.broadcast %63 : vector<1x64xf32> to vector<256x64xf32>
    %65 = arith.addf %62, %64 : vector<256x64xf32>
    %cst_64 = arith.constant 0.000000e+00 : f32
    %66 = vector.broadcast %cst_64 : f32 to vector<256x64xf32>
    %67 = arith.maximumf %65, %66 : vector<256x64xf32>
    %68 = vector.shape_cast %67 : vector<256x64xf32> to vector<16x16x64xf32>
    %c1_65 = arith.constant 1 : index
    %c1_66 = arith.constant 1 : index
    %c0_67 = arith.constant 0 : index
    %69 = vector.load %arg7[%c1_65, %c1_66, %c0_67] : memref<18x18x64xf32, #tpu.memory_space<vmem>>, vector<16x16x64xf32>
    tpu.vector_store %arg7[%c1_65, %c1_66, %c0_67], %68 {strides = array<i32>} : memref<18x18x64xf32, #tpu.memory_space<vmem>>, vector<16x16x64xf32>,
    %cst_68 = arith.constant 0.000000e+00 : f32
    %70 = vector.broadcast %cst_68 : f32 to vector<256x64xf32>
    %c0_69 = arith.constant 0 : index
    %c0_70 = arith.constant 0 : index
    %c0_71 = arith.constant 0 : index
    %71 = vector.load %arg7[%c0_69, %c0_70, %c0_71] : memref<18x18x64xf32, #tpu.memory_space<vmem>>, vector<18x16x64xf32>
    %72 = vector.extract_strided_slice %71 {offsets = [0, 0, 0], sizes = [16, 16, 64], strides = [1, 1, 1]} : vector<18x16x64xf32> to vector<16x16x64xf32>
    %73 = vector.shape_cast %72 : vector<16x16x64xf32> to vector<256x64xf32>
    %c0_72 = arith.constant 0 : index
    %c0_73 = arith.constant 0 : index
    %c0_74 = arith.constant 0 : index
    %c0_75 = arith.constant 0 : index
    %74 = vector.load %arg4[%c0_72, %c0_73, %c0_74, %c0_75] : memref<3x3x64x64xf32, #tpu.memory_space<vmem>>, vector<1x1x64x64xf32>
    %75 = vector.shape_cast %74 : vector<1x1x64x64xf32> to vector<64x64xf32>
    %cst_76 = arith.constant dense<0.000000e+00> : vector<256x64xf32>
    %76 = tpu.matmul %73, %75, %cst_76 {dimension_numbers = #tpu.dot_dimension_numbers<[1], [0], [0], [1], [0, 0, 1, 1], [], []>} : vector<256x64xf32>, vector<64x64xf32>, vector<256x64xf32> -> vector<256x64xf32>
    %77 = arith.addf %70, %76 : vector<256x64xf32>
    %78 = vector.extract_strided_slice %71 {offsets = [1, 0, 0], sizes = [16, 16, 64], strides = [1, 1, 1]} : vector<18x16x64xf32> to vector<16x16x64xf32>
    %79 = vector.shape_cast %78 : vector<16x16x64xf32> to vector<256x64xf32>
    %c1_77 = arith.constant 1 : index
    %c0_78 = arith.constant 0 : index
    %c0_79 = arith.constant 0 : index
    %c0_80 = arith.constant 0 : index
    %80 = vector.load %arg4[%c1_77, %c0_78, %c0_79, %c0_80] : memref<3x3x64x64xf32, #tpu.memory_space<vmem>>, vector<1x1x64x64xf32>
    %81 = vector.shape_cast %80 : vector<1x1x64x64xf32> to vector<64x64xf32>
    %cst_81 = arith.constant dense<0.000000e+00> : vector<256x64xf32>
    %82 = tpu.matmul %79, %81, %cst_81 {dimension_numbers = #tpu.dot_dimension_numbers<[1], [0], [0], [1], [0, 0, 1, 1], [], []>} : vector<256x64xf32>, vector<64x64xf32>, vector<256x64xf32> -> vector<256x64xf32>
    %83 = arith.addf %77, %82 : vector<256x64xf32>
    %84 = vector.extract_strided_slice %71 {offsets = [2, 0, 0], sizes = [16, 16, 64], strides = [1, 1, 1]} : vector<18x16x64xf32> to vector<16x16x64xf32>
    %85 = vector.shape_cast %84 : vector<16x16x64xf32> to vector<256x64xf32>
    %c2_82 = arith.constant 2 : index
    %c0_83 = arith.constant 0 : index
    %c0_84 = arith.constant 0 : index
    %c0_85 = arith.constant 0 : index
    %86 = vector.load %arg4[%c2_82, %c0_83, %c0_84, %c0_85] : memref<3x3x64x64xf32, #tpu.memory_space<vmem>>, vector<1x1x64x64xf32>
    %87 = vector.shape_cast %86 : vector<1x1x64x64xf32> to vector<64x64xf32>
    %cst_86 = arith.constant dense<0.000000e+00> : vector<256x64xf32>
    %88 = tpu.matmul %85, %87, %cst_86 {dimension_numbers = #tpu.dot_dimension_numbers<[1], [0], [0], [1], [0, 0, 1, 1], [], []>} : vector<256x64xf32>, vector<64x64xf32>, vector<256x64xf32> -> vector<256x64xf32>
    %89 = arith.addf %83, %88 : vector<256x64xf32>
    %c0_87 = arith.constant 0 : index
    %c1_88 = arith.constant 1 : index
    %c0_89 = arith.constant 0 : index
    %90 = vector.load %arg7[%c0_87, %c1_88, %c0_89] : memref<18x18x64xf32, #tpu.memory_space<vmem>>, vector<18x16x64xf32>
    %91 = vector.extract_strided_slice %90 {offsets = [0, 0, 0], sizes = [16, 16, 64], strides = [1, 1, 1]} : vector<18x16x64xf32> to vector<16x16x64xf32>
    %92 = vector.shape_cast %91 : vector<16x16x64xf32> to vector<256x64xf32>
    %c0_90 = arith.constant 0 : index
    %c1_91 = arith.constant 1 : index
    %c0_92 = arith.constant 0 : index
    %c0_93 = arith.constant 0 : index
    %93 = vector.load %arg4[%c0_90, %c1_91, %c0_92, %c0_93] : memref<3x3x64x64xf32, #tpu.memory_space<vmem>>, vector<1x1x64x64xf32>
    %94 = vector.shape_cast %93 : vector<1x1x64x64xf32> to vector<64x64xf32>
    %cst_94 = arith.constant dense<0.000000e+00> : vector<256x64xf32>
    %95 = tpu.matmul %92, %94, %cst_94 {dimension_numbers = #tpu.dot_dimension_numbers<[1], [0], [0], [1], [0, 0, 1, 1], [], []>} : vector<256x64xf32>, vector<64x64xf32>, vector<256x64xf32> -> vector<256x64xf32>
    %96 = arith.addf %89, %95 : vector<256x64xf32>
    %97 = vector.extract_strided_slice %90 {offsets = [1, 0, 0], sizes = [16, 16, 64], strides = [1, 1, 1]} : vector<18x16x64xf32> to vector<16x16x64xf32>
    %98 = vector.shape_cast %97 : vector<16x16x64xf32> to vector<256x64xf32>
    %c1_95 = arith.constant 1 : index
    %c1_96 = arith.constant 1 : index
    %c0_97 = arith.constant 0 : index
    %c0_98 = arith.constant 0 : index
    %99 = vector.load %arg4[%c1_95, %c1_96, %c0_97, %c0_98] : memref<3x3x64x64xf32, #tpu.memory_space<vmem>>, vector<1x1x64x64xf32>
    %100 = vector.shape_cast %99 : vector<1x1x64x64xf32> to vector<64x64xf32>
    %cst_99 = arith.constant dense<0.000000e+00> : vector<256x64xf32>
    %101 = tpu.matmul %98, %100, %cst_99 {dimension_numbers = #tpu.dot_dimension_numbers<[1], [0], [0], [1], [0, 0, 1, 1], [], []>} : vector<256x64xf32>, vector<64x64xf32>, vector<256x64xf32> -> vector<256x64xf32>
    %102 = arith.addf %96, %101 : vector<256x64xf32>
    %103 = vector.extract_strided_slice %90 {offsets = [2, 0, 0], sizes = [16, 16, 64], strides = [1, 1, 1]} : vector<18x16x64xf32> to vector<16x16x64xf32>
    %104 = vector.shape_cast %103 : vector<16x16x64xf32> to vector<256x64xf32>
    %c2_100 = arith.constant 2 : index
    %c1_101 = arith.constant 1 : index
    %c0_102 = arith.constant 0 : index
    %c0_103 = arith.constant 0 : index
    %105 = vector.load %arg4[%c2_100, %c1_101, %c0_102, %c0_103] : memref<3x3x64x64xf32, #tpu.memory_space<vmem>>, vector<1x1x64x64xf32>
    %106 = vector.shape_cast %105 : vector<1x1x64x64xf32> to vector<64x64xf32>
    %cst_104 = arith.constant dense<0.000000e+00> : vector<256x64xf32>
    %107 = tpu.matmul %104, %106, %cst_104 {dimension_numbers = #tpu.dot_dimension_numbers<[1], [0], [0], [1], [0, 0, 1, 1], [], []>} : vector<256x64xf32>, vector<64x64xf32>, vector<256x64xf32> -> vector<256x64xf32>
    %108 = arith.addf %102, %107 : vector<256x64xf32>
    %c0_105 = arith.constant 0 : index
    %c2_106 = arith.constant 2 : index
    %c0_107 = arith.constant 0 : index
    %109 = vector.load %arg7[%c0_105, %c2_106, %c0_107] : memref<18x18x64xf32, #tpu.memory_space<vmem>>, vector<18x16x64xf32>
    %110 = vector.extract_strided_slice %109 {offsets = [0, 0, 0], sizes = [16, 16, 64], strides = [1, 1, 1]} : vector<18x16x64xf32> to vector<16x16x64xf32>
    %111 = vector.shape_cast %110 : vector<16x16x64xf32> to vector<256x64xf32>
    %c0_108 = arith.constant 0 : index
    %c2_109 = arith.constant 2 : index
    %c0_110 = arith.constant 0 : index
    %c0_111 = arith.constant 0 : index
    %112 = vector.load %arg4[%c0_108, %c2_109, %c0_110, %c0_111] : memref<3x3x64x64xf32, #tpu.memory_space<vmem>>, vector<1x1x64x64xf32>
    %113 = vector.shape_cast %112 : vector<1x1x64x64xf32> to vector<64x64xf32>
    %cst_112 = arith.constant dense<0.000000e+00> : vector<256x64xf32>
    %114 = tpu.matmul %111, %113, %cst_112 {dimension_numbers = #tpu.dot_dimension_numbers<[1], [0], [0], [1], [0, 0, 1, 1], [], []>} : vector<256x64xf32>, vector<64x64xf32>, vector<256x64xf32> -> vector<256x64xf32>
    %115 = arith.addf %108, %114 : vector<256x64xf32>
    %116 = vector.extract_strided_slice %109 {offsets = [1, 0, 0], sizes = [16, 16, 64], strides = [1, 1, 1]} : vector<18x16x64xf32> to vector<16x16x64xf32>
    %117 = vector.shape_cast %116 : vector<16x16x64xf32> to vector<256x64xf32>
    %c1_113 = arith.constant 1 : index
    %c2_114 = arith.constant 2 : index
    %c0_115 = arith.constant 0 : index
    %c0_116 = arith.constant 0 : index
    %118 = vector.load %arg4[%c1_113, %c2_114, %c0_115, %c0_116] : memref<3x3x64x64xf32, #tpu.memory_space<vmem>>, vector<1x1x64x64xf32>
    %119 = vector.shape_cast %118 : vector<1x1x64x64xf32> to vector<64x64xf32>
    %cst_117 = arith.constant dense<0.000000e+00> : vector<256x64xf32>
    %120 = tpu.matmul %117, %119, %cst_117 {dimension_numbers = #tpu.dot_dimension_numbers<[1], [0], [0], [1], [0, 0, 1, 1], [], []>} : vector<256x64xf32>, vector<64x64xf32>, vector<256x64xf32> -> vector<256x64xf32>
    %121 = arith.addf %115, %120 : vector<256x64xf32>
    %122 = vector.extract_strided_slice %109 {offsets = [2, 0, 0], sizes = [16, 16, 64], strides = [1, 1, 1]} : vector<18x16x64xf32> to vector<16x16x64xf32>
    %123 = vector.shape_cast %122 : vector<16x16x64xf32> to vector<256x64xf32>
    %c2_118 = arith.constant 2 : index
    %c2_119 = arith.constant 2 : index
    %c0_120 = arith.constant 0 : index
    %c0_121 = arith.constant 0 : index
    %124 = vector.load %arg4[%c2_118, %c2_119, %c0_120, %c0_121] : memref<3x3x64x64xf32, #tpu.memory_space<vmem>>, vector<1x1x64x64xf32>
    %125 = vector.shape_cast %124 : vector<1x1x64x64xf32> to vector<64x64xf32>
    %cst_122 = arith.constant dense<0.000000e+00> : vector<256x64xf32>
    %126 = tpu.matmul %123, %125, %cst_122 {dimension_numbers = #tpu.dot_dimension_numbers<[1], [0], [0], [1], [0, 0, 1, 1], [], []>} : vector<256x64xf32>, vector<64x64xf32>, vector<256x64xf32> -> vector<256x64xf32>
    %127 = arith.addf %121, %126 : vector<256x64xf32>
    %c0_123 = arith.constant 0 : index
    %c0_124 = arith.constant 0 : index
    %128 = vector.load %arg5[%c0_123, %c0_124] : memref<1x64xf32, #tpu.memory_space<vmem>>, vector<1x64xf32>
    %129 = vector.broadcast %128 : vector<1x64xf32> to vector<256x64xf32>
    %130 = arith.addf %127, %129 : vector<256x64xf32>
    %c0_125 = arith.constant 0 : index
    %c0_126 = arith.constant 0 : index
    %c0_127 = arith.constant 0 : index
    %c0_128 = arith.constant 0 : index
    %131 = vector.load %arg1[%c0_125, %c0_126, %c0_127, %c0_128] : memref<1x16x16x64xf32, #tpu.memory_space<vmem>>, vector<1x16x16x64xf32>
    %132 = vector.shape_cast %131 : vector<1x16x16x64xf32> to vector<16x16x64xf32>
    %133 = vector.shape_cast %132 : vector<16x16x64xf32> to vector<256x64xf32>
    %134 = arith.addf %130, %133 : vector<256x64xf32>
    %cst_129 = arith.constant 0.000000e+00 : f32
    %135 = vector.broadcast %cst_129 : f32 to vector<256x64xf32>
    %136 = arith.maximumf %134, %135 : vector<256x64xf32>
    %137 = vector.shape_cast %136 : vector<256x64xf32> to vector<16x16x64xf32>
    %c0_130 = arith.constant 0 : index
    %c0_131 = arith.constant 0 : index
    %c0_132 = arith.constant 0 : index
    %c0_133 = arith.constant 0 : index
    %138 = vector.load %arg6[%c0_130, %c0_131, %c0_132, %c0_133] : memref<1x16x16x64xf32, #tpu.memory_space<vmem>>, vector<1x16x16x64xf32>
    %139 = vector.shape_cast %138 : vector<1x16x16x64xf32> to vector<16x16x64xf32>
    %140 = vector.shape_cast %137 : vector<16x16x64xf32> to vector<1x16x16x64xf32>
    tpu.vector_store %arg6[%c0_130, %c0_131, %c0_132, %c0_133], %140 {strides = array<i32>} : memref<1x16x16x64xf32, #tpu.memory_space<vmem>>, vector<1x16x16x64xf32>,
    return
  }
  func.func @transform_0(%arg0: i32) -> (i32, i32, i32, i32) {
    %c0_i32 = arith.constant 0 : i32
    %c0_i32_0 = arith.constant 0 : i32
    %c0_i32_1 = arith.constant 0 : i32
    %c0_i32_2 = arith.constant 0 : i32
    return %arg0, %c0_i32, %c0_i32_0, %c0_i32_1 : i32, i32, i32, i32
  }
  func.func @transform_1(%arg0: i32) -> (i32, i32, i32, i32) {
    %c0_i32 = arith.constant 0 : i32
    %c0_i32_0 = arith.constant 0 : i32
    %c0_i32_1 = arith.constant 0 : i32
    %c0_i32_2 = arith.constant 0 : i32
    %c0_i32_3 = arith.constant 0 : i32
    return %c0_i32, %c0_i32_0, %c0_i32_1, %c0_i32_2 : i32, i32, i32, i32
  }
  func.func @transform_2(%arg0: i32) -> (i32, i32) {
    %c0_i32 = arith.constant 0 : i32
    %c0_i32_0 = arith.constant 0 : i32
    %c0_i32_1 = arith.constant 0 : i32
    return %c0_i32, %c0_i32_0 : i32, i32
  }
  func.func @transform_3(%arg0: i32) -> (i32, i32, i32, i32) {
    %c0_i32 = arith.constant 0 : i32
    %c0_i32_0 = arith.constant 0 : i32
    %c0_i32_1 = arith.constant 0 : i32
    %c0_i32_2 = arith.constant 0 : i32
    %c0_i32_3 = arith.constant 0 : i32
    return %c0_i32, %c0_i32_0, %c0_i32_1, %c0_i32_2 : i32, i32, i32, i32
  }
  func.func @transform_4(%arg0: i32) -> (i32, i32) {
    %c0_i32 = arith.constant 0 : i32
    %c0_i32_0 = arith.constant 0 : i32
    %c0_i32_1 = arith.constant 0 : i32
    return %c0_i32, %c0_i32_0 : i32, i32
  }
  func.func @transform_5(%arg0: i32) -> (i32, i32, i32, i32) {
    %c0_i32 = arith.constant 0 : i32
    %c0_i32_0 = arith.constant 0 : i32
    %c0_i32_1 = arith.constant 0 : i32
    %c0_i32_2 = arith.constant 0 : i32
    return %arg0, %c0_i32, %c0_i32_0, %c0_i32_1 : i32, i32, i32, i32
  }
}

</mosaic_0001>

<llo_original>
// kernel: residual_block_pallas.1
$region0: #{residual_block_pallas.1}
  #allocation0 [shape = 'u32[]', space=smem, size = 0x4, offset = 0x4, fixed_abs, tag = 'smem constant byte address 0x4 - core index']
  #allocation1 [shape = 'u32[72,128]{1,0:T(1,128)}', space=vmem, size = 0x9000, scoped, tag = 'internal scratch']
  #allocation2 [shape = 'f32[18,18,64]{2,1,0:T(8,128)}', space=vmem, size = 0x36000, scoped, tag = 'scratch operand']
  %s0 = inlined_call_operand.vmem [shape: f32[2,16,16,64], index: 0, kind: input, shape index: {}]
  %s1 = inlined_call_operand.vmem [shape: f32[3,3,64,64], index: 1, kind: input, shape index: {}]
  %s2 = inlined_call_operand.vmem [shape: f32[1,64], index: 2, kind: input, shape index: {}]
  %s3 = inlined_call_operand.vmem [shape: f32[3,3,64,64], index: 3, kind: input, shape index: {}]
  %s4 = inlined_call_operand.vmem [shape: f32[1,64], index: 4, kind: input, shape index: {}]
  %s5 = inlined_call_operand.hbm [shape: f32[2,16,16,64], index: 5, kind: output, shape index: {}]
  %s6 = sld [smem:[#allocation0]]
  $region53: #{residual_block_pallas.1} parent=0
    _
  %s8 = ssub.s32 1, %s6
  %s9 = scalar_select 0, %s8, %s6
  $region1: #{residual_block_pallas.1} parent=0
    #allocation3 [shape = 'u8[262144]{0}', space=vmem, size = 0x40000, scoped, tag = 'output window, operand 0']
    #allocation4 [shape = 's32[2]{0}', space=sflag, size = 0x8, scoped, tag = 'scoped memory for residual_block_pallas.1']
    %10 = vsyncpa [#allocation4], 0
    %s11 = scalar_lea.sflag [#allocation4], 1
    %12 = vsyncpa %s11, 0
    loop: start=0, step=1, limit=4
    $region2: #{residual_block_pallas.1} parent=1 // loop_pre_header
      _
    $region3: #{residual_block_pallas.1} parent=1 // loop_header
      %s14 = sphi 0, %s18
      %p15 = scmp.ge.s32.totalorder %s14, 4
      %s24 = sphi 0, %s26
      %s27 = sphi 0, %s24
      %s28 = sphi 0, %s27
      %s44 = sphi 0, %s28
      %s48 = sphi 0, %s48
      %s50 = sphi 0, %s48
      %s51 = sphi 0, %s50
      %s65 = sphi 0, %s51
      %s69 = sphi 0, %s69
      %s71 = sphi 0, %s69
      %s72 = sphi 0, %s71
      %s86 = sphi 0, %s72
      %s90 = sphi 0, %s90
      %s92 = sphi 0, %s90
      %s93 = sphi 0, %s92
      %s107 = sphi 0, %s93
      %s111 = sphi 0, %s111
      %s113 = sphi 0, %s111
      %s114 = sphi 0, %s113
      %s128 = sphi 0, %s114
      %s134 = sphi 0, %s136
      %s137 = sphi 0, %s134
      %s138 = sphi 0, %s137
      %s154 = sphi 0, %s138
    $region4: #{residual_block_pallas.1} parent=1 // loop_header_branch
      %17 = sbr.rel (%p15) target = $region8
    $region5: #{residual_block_pallas.1} parent=1 // loop_body
      %s19 = ssub.s32 %s14, 1
      %s20 = ssub.s32 %s14, 2
      %s21 = sadd.s32 %s14, 1
      %s22 = ssub.s32 %s14, %s21
      %p23 = scmp.eq.s32.totalorder %s22, 0
      %s25 = sadd.s32 %s24, 1
      %s26 = scalar_select %p23, %s24, %s25
      %p29 = pneg %p23
      %p30 = scmp.eq.s32.totalorder %s14, 1
      %p31 = por %p29, %p30
      %p32 = scmp.ne.s32.totalorder %s24, %s27
      %p33 = scmp.eq.s32.totalorder %s14, 0
      %p34 = por %p32, %p33
      %p35 = scmp.ne.s32.totalorder %s24, %s27
      %p36 = scmp.eq.s32.totalorder %s19, 1
      %p37 = por %p35, %p36
      %p38 = scmp.ne.s32.totalorder %s27, %s28
      %p39 = scmp.eq.s32.totalorder %s19, 0
      %p40 = por %p38, %p39
      %p41 = scmp.ne.s32.totalorder %s27, %s28
      %p42 = scmp.eq.s32.totalorder %s20, 1
      %p43 = por %p41, %p42
      %p45 = scmp.ne.s32.totalorder %s28, %s44
      %p46 = scmp.eq.s32.totalorder %s20, 0
      %p47 = por %p45, %p46
      %s49 = sadd.s32 %s48, 1
      %p52 = scmp.eq.s32.totalorder %s14, 1
      %p53 = scmp.ne.s32.totalorder %s48, %s50
      %p54 = scmp.eq.s32.totalorder %s14, 0
      %p55 = por %p53, %p54
      %p56 = scmp.ne.s32.totalorder %s48, %s50
      %p57 = scmp.eq.s32.totalorder %s19, 1
      %p58 = por %p56, %p57
      %p59 = scmp.ne.s32.totalorder %s50, %s51
      %p60 = scmp.eq.s32.totalorder %s19, 0
      %p61 = por %p59, %p60
      %p62 = scmp.ne.s32.totalorder %s50, %s51
      %p63 = scmp.eq.s32.totalorder %s20, 1
      %p64 = por %p62, %p63
      %p66 = scmp.ne.s32.totalorder %s51, %s65
      %p67 = scmp.eq.s32.totalorder %s20, 0
      %p68 = por %p66, %p67
      %s70 = sadd.s32 %s69, 1
      %p73 = scmp.eq.s32.totalorder %s14, 1
      %p74 = scmp.ne.s32.totalorder %s69, %s71
      %p75 = scmp.eq.s32.totalorder %s14, 0
      %p76 = por %p74, %p75
      %p77 = scmp.ne.s32.totalorder %s69, %s71
      %p78 = scmp.eq.s32.totalorder %s19, 1
      %p79 = por %p77, %p78
      %p80 = scmp.ne.s32.totalorder %s71, %s72
      %p81 = scmp.eq.s32.totalorder %s19, 0
      %p82 = por %p80, %p81
      %p83 = scmp.ne.s32.totalorder %s71, %s72
      %p84 = scmp.eq.s32.totalorder %s20, 1
      %p85 = por %p83, %p84
      %p87 = scmp.ne.s32.totalorder %s72, %s86
      %p88 = scmp.eq.s32.totalorder %s20, 0
      %p89 = por %p87, %p88
      %s91 = sadd.s32 %s90, 1
      %p94 = scmp.eq.s32.totalorder %s14, 1
      %p95 = scmp.ne.s32.totalorder %s90, %s92
      %p96 = scmp.eq.s32.totalorder %s14, 0
      %p97 = por %p95, %p96
      %p98 = scmp.ne.s32.totalorder %s90, %s92
      %p99 = scmp.eq.s32.totalorder %s19, 1
      %p100 = por %p98, %p99
      %p101 = scmp.ne.s32.totalorder %s92, %s93
      %p102 = scmp.eq.s32.totalorder %s19, 0
      %p103 = por %p101, %p102
      %p104 = scmp.ne.s32.totalorder %s92, %s93
      %p105 = scmp.eq.s32.totalorder %s20, 1
      %p106 = por %p104, %p105
      %p108 = scmp.ne.s32.totalorder %s93, %s107
      %p109 = scmp.eq.s32.totalorder %s20, 0
      %p110 = por %p108, %p109
      %s112 = sadd.s32 %s111, 1
      %p115 = scmp.eq.s32.totalorder %s14, 1
      %p116 = scmp.ne.s32.totalorder %s111, %s113
      %p117 = scmp.eq.s32.totalorder %s14, 0
      %p118 = por %p116, %p117
      %p119 = scmp.ne.s32.totalorder %s111, %s113
      %p120 = scmp.eq.s32.totalorder %s19, 1
      %p121 = por %p119, %p120
      %p122 = scmp.ne.s32.totalorder %s113, %s114
      %p123 = scmp.eq.s32.totalorder %s19, 0
      %p124 = por %p122, %p123
      %p125 = scmp.ne.s32.totalorder %s113, %s114
      %p126 = scmp.eq.s32.totalorder %s20, 1
      %p127 = por %p125, %p126
      %p129 = scmp.ne.s32.totalorder %s114, %s128
      %p130 = scmp.eq.s32.totalorder %s20, 0
      %p131 = por %p129, %p130
      %s132 = ssub.s32 %s14, %s21
      %p133 = scmp.eq.s32.totalorder %s132, 0
      %s135 = sadd.s32 %s134, 1
      %s136 = scalar_select %p133, %s134, %s135
      %p139 = pneg %p133
      %p140 = scmp.eq.s32.totalorder %s14, 1
      %p141 = por %p139, %p140
      %p142 = scmp.ne.s32.totalorder %s134, %s137
      %p143 = scmp.eq.s32.totalorder %s14, 0
      %p144 = por %p142, %p143
      %p145 = scmp.ne.s32.totalorder %s134, %s137
      %p146 = scmp.eq.s32.totalorder %s19, 1
      %p147 = por %p145, %p146
      %p148 = scmp.ne.s32.totalorder %s137, %s138
      %p149 = scmp.eq.s32.totalorder %s19, 0
      %p150 = por %p148, %p149
      %p151 = scmp.ne.s32.totalorder %s137, %s138
      %p152 = scmp.eq.s32.totalorder %s20, 1
      %p153 = por %p151, %p152
      %p155 = scmp.ne.s32.totalorder %s138, %s154
      %p156 = scmp.eq.s32.totalorder %s20, 0
      %p157 = por %p155, %p156
      %p158 = scmp.le.s32.totalorder 1, %s14
      %p159 = scmp.lt.s32.totalorder %s14, 3
      %p160 = pnand %p158, %p159
      %p161 = pneg %p160
      // Predicated region
      $region9: #{residual_block_pallas.1} parent=5 // pred_check
        _
      $region10: #{residual_block_pallas.1} parent=5 // pred_check_branch
        %163 = sbr.rel (%p160) target = $region12
      $region11: #{residual_block_pallas.1} parent=5 // pred_region
        %s164 = ssub.s32 %s14, 1
        // Predicated region
        $region13: #{residual_block_pallas.1} parent=11 // pred_check
          %p165 = pneg %p61
        $region14: #{residual_block_pallas.1} parent=11 // pred_check_branch
          %167 = sbr.rel (%p165) target = $region16
        $region15: #{residual_block_pallas.1} parent=11 // pred_region
          _
        $region16: #{residual_block_pallas.1} parent=11 // pred_fallthru
          _
        // Predicated region
        $region17: #{residual_block_pallas.1} parent=11 // pred_check
          %p168 = pneg %p82
        $region18: #{residual_block_pallas.1} parent=11 // pred_check_branch
          %170 = sbr.rel (%p168) target = $region20
        $region19: #{residual_block_pallas.1} parent=11 // pred_region
          _
        $region20: #{residual_block_pallas.1} parent=11 // pred_fallthru
          _
        // Predicated region
        $region21: #{residual_block_pallas.1} parent=11 // pred_check
          %p171 = pneg %p103
        $region22: #{residual_block_pallas.1} parent=11 // pred_check_branch
          %173 = sbr.rel (%p171) target = $region24
        $region23: #{residual_block_pallas.1} parent=11 // pred_region
          _
        $region24: #{residual_block_pallas.1} parent=11 // pred_fallthru
          _
        // Predicated region
        $region25: #{residual_block_pallas.1} parent=11 // pred_check
          %p174 = pneg %p124
        $region26: #{residual_block_pallas.1} parent=11 // pred_check_branch
          %176 = sbr.rel (%p174) target = $region28
        $region27: #{residual_block_pallas.1} parent=11 // pred_region
          _
        $region28: #{residual_block_pallas.1} parent=11 // pred_fallthru
          _
      $region12: #{residual_block_pallas.1} parent=5 // pred_fallthru
        _
      %p177 = scmp.lt.s32.totalorder %s14, 2
      // Predicated region
      $region29: #{residual_block_pallas.1} parent=5 // pred_check
        %p178 = pneg %p177
      $region30: #{residual_block_pallas.1} parent=5 // pred_check_branch
        %180 = sbr.rel (%p178) target = $region32
      $region31: #{residual_block_pallas.1} parent=5 // pred_region
        // Predicated region
        $region33: #{residual_block_pallas.1} parent=31 // pred_check
          %p181 = pneg %p34
        $region34: #{residual_block_pallas.1} parent=31 // pred_check_branch
          %183 = sbr.rel (%p181) target = $region36
        $region35: #{residual_block_pallas.1} parent=31 // pred_region
          %p184 = scmp.lt.s32.totalorder %s14, 1
          %s185 = scalar_select %p184, %s14, 1
          %s186 = smul.addr %s185, 32
          %s187 = smul.addr %s186, 8
          %s188 = scalar_lea.vmem %s0, %s187
        $region36: #{residual_block_pallas.1} parent=31 // pred_fallthru
          _
      $region32: #{residual_block_pallas.1} parent=5 // pred_fallthru
        _
      %p189 = scmp.le.s32.totalorder 1, %s14
      %p190 = scmp.lt.s32.totalorder %s14, 3
      %p191 = pnand %p189, %p190
      %p192 = pneg %p191
      // Predicated region
      $region37: #{residual_block_pallas.1} parent=5 // pred_check
        _
      $region38: #{residual_block_pallas.1} parent=5 // pred_check_branch
        %194 = sbr.rel (%p191) target = $region40
      $region39: #{residual_block_pallas.1} parent=5 // pred_region
        %s195 = ssub.s32 %s14, 1
        %p196 = scmp.lt.s32.totalorder %s19, 1
        %s197 = scalar_select %p196, %s19, 1
        %s198 = smul.addr %s197, 32
        %s199 = smul.addr %s198, 8
        %s200 = scalar_lea.vmem %s0, %s199
        %p201 = pneg %p40
        %p202 = pneg %p37
        %p203 = pneg %p61
        %p204 = pneg %p58
        %p205 = pneg %p82
        %p206 = pneg %p79
        %p207 = pneg %p103
        %p208 = pneg %p100
        %p209 = pneg %p124
        %p210 = pneg %p121
        %p211 = pneg %p150
        %p212 = pneg %p147
        %s213 = sand.u32 %s137, 1
        %s214 = scalar_lea.sflag [#allocation4], %s213
        %s215 = sand.u32 %s137, 1
        %s216 = smul.addr %s215, 256
        %s217 = scalar_lea.vmem [#allocation3], %s216
        %p218 = scmp.lt.s32.totalorder %s19, 1
        %s219 = scalar_select %p218, %s19, 1
        %s220 = smul.addr %s219, 32
        %s221 = smul.addr %s220, 8
        %s222 = scalar_lea.vmem %s0, %s221
        %vm223 = vcmask 523264
        %224 = vst.msk [vmem:[#allocation2] sm:$0xff] %vm223, 0.0
        %225 = vst.msk [vmem:[#allocation2 + $0x8] sm:$0xff] %vm223, 0.0
        %vm226 = vcmask 517120
        %227 = vst.msk [vmem:[#allocation2 + $0x10] sm:$0x3] %vm226, 0.0
        %228 = vst.msk [vmem:[#allocation2 + $0x18] sm:$0xff] %vm223, 0.0
        %229 = vst.msk [vmem:[#allocation2 + $0x20] sm:$0xff] %vm223, 0.0
        %230 = vst.msk [vmem:[#allocation2 + $0x28] sm:$0x3] %vm226, 0.0
        %231 = vst.msk [vmem:[#allocation2 + $0x30] sm:$0xff] %vm223, 0.0
        %232 = vst.msk [vmem:[#allocation2 + $0x38] sm:$0xff] %vm223, 0.0
        %233 = vst.msk [vmem:[#allocation2 + $0x40] sm:$0x3] %vm226, 0.0
        %234 = vst.msk [vmem:[#allocation2 + $0x48] sm:$0xff] %vm223, 0.0
        %235 = vst.msk [vmem:[#allocation2 + $0x50] sm:$0xff] %vm223, 0.0
        %236 = vst.msk [vmem:[#allocation2 + $0x58] sm:$0x3] %vm226, 0.0
        %237 = vst.msk [vmem:[#allocation2 + $0x60] sm:$0xff] %vm223, 0.0
        %238 = vst.msk [vmem:[#allocation2 + $0x68] sm:$0xff] %vm223, 0.0
        %239 = vst.msk [vmem:[#allocation2 + $0x70] sm:$0x3] %vm226, 0.0
        %240 = vst.msk [vmem:[#allocation2 + $0x78] sm:$0xff] %vm223, 0.0
        %241 = vst.msk [vmem:[#allocation2 + $0x80] sm:$0xff] %vm223, 0.0
        %242 = vst.msk [vmem:[#allocation2 + $0x88] sm:$0x3] %vm226, 0.0
        %243 = vst.msk [vmem:[#allocation2 + $0x90] sm:$0xff] %vm223, 0.0
        %244 = vst.msk [vmem:[#allocation2 + $0x98] sm:$0xff] %vm223, 0.0
        %245 = vst.msk [vmem:[#allocation2 + $0xa0] sm:$0x3] %vm226, 0.0
        %246 = vst.msk [vmem:[#allocation2 + $0xa8] sm:$0xff] %vm223, 0.0
        %247 = vst.msk [vmem:[#allocation2 + $0xb0] sm:$0xff] %vm223, 0.0
        %248 = vst.msk [vmem:[#allocation2 + $0xb8] sm:$0x3] %vm226, 0.0
        %249 = vst.msk [vmem:[#allocation2 + $0xc0] sm:$0xff] %vm223, 0.0
        %250 = vst.msk [vmem:[#allocation2 + $0xc8] sm:$0xff] %vm223, 0.0
        %251 = vst.msk [vmem:[#allocation2 + $0xd0] sm:$0x3] %vm226, 0.0
        %252 = vst.msk [vmem:[#allocation2 + $0xd8] sm:$0xff] %vm223, 0.0
        %253 = vst.msk [vmem:[#allocation2 + $0xe0] sm:$0xff] %vm223, 0.0
        %254 = vst.msk [vmem:[#allocation2 + $0xe8] sm:$0x3] %vm226, 0.0
        %255 = vst.msk [vmem:[#allocation2 + $0xf0] sm:$0xff] %vm223, 0.0
        %256 = vst.msk [vmem:[#allocation2 + $0xf8] sm:$0xff] %vm223, 0.0
        %257 = vst.msk [vmem:[#allocation2 + $0x100] sm:$0x3] %vm226, 0.0
        %258 = vst.msk [vmem:[#allocation2 + $0x108] sm:$0xff] %vm223, 0.0
        %259 = vst.msk [vmem:[#allocation2 + $0x110] sm:$0xff] %vm223, 0.0
        %260 = vst.msk [vmem:[#allocation2 + $0x118] sm:$0x3] %vm226, 0.0
        %261 = vst.msk [vmem:[#allocation2 + $0x120] sm:$0xff] %vm223, 0.0
        %262 = vst.msk [vmem:[#allocation2 + $0x128] sm:$0xff] %vm223, 0.0
        %263 = vst.msk [vmem:[#allocation2 + $0x130] sm:$0x3] %vm226, 0.0
        %264 = vst.msk [vmem:[#allocation2 + $0x138] sm:$0xff] %vm223, 0.0
        %265 = vst.msk [vmem:[#allocation2 + $0x140] sm:$0xff] %vm223, 0.0
        %266 = vst.msk [vmem:[#allocation2 + $0x148] sm:$0x3] %vm226, 0.0
        %267 = vst.msk [vmem:[#allocation2 + $0x150] sm:$0xff] %vm223, 0.0
        %268 = vst.msk [vmem:[#allocation2 + $0x158] sm:$0xff] %vm223, 0.0
        %269 = vst.msk [vmem:[#allocation2 + $0x160] sm:$0x3] %vm226, 0.0
        %270 = vst.msk [vmem:[#allocation2 + $0x168] sm:$0xff] %vm223, 0.0
        %271 = vst.msk [vmem:[#allocation2 + $0x170] sm:$0xff] %vm223, 0.0
        %272 = vst.msk [vmem:[#allocation2 + $0x178] sm:$0x3] %vm226, 0.0
        %273 = vst.msk [vmem:[#allocation2 + $0x180] sm:$0xff] %vm223, 0.0
        %274 = vst.msk [vmem:[#allocation2 + $0x188] sm:$0xff] %vm223, 0.0
        %275 = vst.msk [vmem:[#allocation2 + $0x190] sm:$0x3] %vm226, 0.0
        %276 = vst.msk [vmem:[#allocation2 + $0x198] sm:$0xff] %vm223, 0.0
        %277 = vst.msk [vmem:[#allocation2 + $0x1a0] sm:$0xff] %vm223, 0.0
        %278 = vst.msk [vmem:[#allocation2 + $0x1a8] sm:$0x3] %vm226, 0.0
        %v279 = vld [vmem:[%s222] sm:$0xff]
        %v280 = vld [vmem:[%s222 + $0x8] sm:$0xff]
        %v281 = vld [vmem:[%s222 + $0x10] sm:$0xff]
        %v282 = vld [vmem:[%s222 + $0x18] sm:$0xff]
        %v283 = vld [vmem:[%s222 + $0x20] sm:$0xff]
        %v284 = vld [vmem:[%s222 + $0x28] sm:$0xff]
        %v285 = vld [vmem:[%s222 + $0x30] sm:$0xff]
        %v286 = vld [vmem:[%s222 + $0x38] sm:$0xff]
        %v287 = vld [vmem:[%s222 + $0x40] sm:$0xff]
        %v288 = vld [vmem:[%s222 + $0x48] sm:$0xff]
        %v289 = vld [vmem:[%s222 + $0x50] sm:$0xff]
        %v290 = vld [vmem:[%s222 + $0x58] sm:$0xff]
        %v291 = vld [vmem:[%s222 + $0x60] sm:$0xff]
        %v292 = vld [vmem:[%s222 + $0x68] sm:$0xff]
        %v293 = vld [vmem:[%s222 + $0x70] sm:$0xff]
        %v294 = vld [vmem:[%s222 + $0x78] sm:$0xff]
        %v295 = vld [vmem:[%s222 + $0x80] sm:$0xff]
        %v296 = vld [vmem:[%s222 + $0x88] sm:$0xff]
        %v297 = vld [vmem:[%s222 + $0x90] sm:$0xff]
        %v298 = vld [vmem:[%s222 + $0x98] sm:$0xff]
        %v299 = vld [vmem:[%s222 + $0xa0] sm:$0xff]
        %v300 = vld [vmem:[%s222 + $0xa8] sm:$0xff]
        %v301 = vld [vmem:[%s222 + $0xb0] sm:$0xff]
        %v302 = vld [vmem:[%s222 + $0xb8] sm:$0xff]
        %v303 = vld [vmem:[%s222 + $0xc0] sm:$0xff]
        %v304 = vld [vmem:[%s222 + $0xc8] sm:$0xff]
        %v305 = vld [vmem:[%s222 + $0xd0] sm:$0xff]
        %v306 = vld [vmem:[%s222 + $0xd8] sm:$0xff]
        %v307 = vld [vmem:[%s222 + $0xe0] sm:$0xff]
        %v308 = vld [vmem:[%s222 + $0xe8] sm:$0xff]
        %v309 = vld [vmem:[%s222 + $0xf0] sm:$0xff]
        %v310 = vld [vmem:[%s222 + $0xf8] sm:$0xff]
        %s311 = scalar_lea.vmem [#allocation2], 24
        %312 = vst.msk [vmem:[%s311 + $0x1] sm:$0xff] %vm223, %v279
        %313 = vst.msk [vmem:[%s311 + $0x9] sm:$0xff] %vm223, %v280
        %314 = vst.msk [vmem:[%s311 + $0x19] sm:$0xff] %vm223, %v281
        %315 = vst.msk [vmem:[%s311 + $0x21] sm:$0xff] %vm223, %v282
        %316 = vst.msk [vmem:[%s311 + $0x31] sm:$0xff] %vm223, %v283
        %317 = vst.msk [vmem:[%s311 + $0x39] sm:$0xff] %vm223, %v284
        %318 = vst.msk [vmem:[%s311 + $0x49] sm:$0xff] %vm223, %v285
        %319 = vst.msk [vmem:[%s311 + $0x51] sm:$0xff] %vm223, %v286
        %320 = vst.msk [vmem:[%s311 + $0x61] sm:$0xff] %vm223, %v287
        %321 = vst.msk [vmem:[%s311 + $0x69] sm:$0xff] %vm223, %v288
        %322 = vst.msk [vmem:[%s311 + $0x79] sm:$0xff] %vm223, %v289
        %323 = vst.msk [vmem:[%s311 + $0x81] sm:$0xff] %vm223, %v290
        %324 = vst.msk [vmem:[%s311 + $0x91] sm:$0xff] %vm223, %v291
        %325 = vst.msk [vmem:[%s311 + $0x99] sm:$0xff] %vm223, %v292
        %326 = vst.msk [vmem:[%s311 + $0xa9] sm:$0xff] %vm223, %v293
        %327 = vst.msk [vmem:[%s311 + $0xb1] sm:$0xff] %vm223, %v294
        %328 = vst.msk [vmem:[%s311 + $0xc1] sm:$0xff] %vm223, %v295
        %329 = vst.msk [vmem:[%s311 + $0xc9] sm:$0xff] %vm223, %v296
        %330 = vst.msk [vmem:[%s311 + $0xd9] sm:$0xff] %vm223, %v297
        %331 = vst.msk [vmem:[%s311 + $0xe1] sm:$0xff] %vm223, %v298
        %332 = vst.msk [vmem:[%s311 + $0xf1] sm:$0xff] %vm223, %v299
        %333 = vst.msk [vmem:[%s311 + $0xf9] sm:$0xff] %vm223, %v300
        %334 = vst.msk [vmem:[%s311 + $0x109] sm:$0xff] %vm223, %v301
        %335 = vst.msk [vmem:[%s311 + $0x111] sm:$0xff] %vm223, %v302
        %336 = vst.msk [vmem:[%s311 + $0x121] sm:$0xff] %vm223, %v303
        %337 = vst.msk [vmem:[%s311 + $0x129] sm:$0xff] %vm223, %v304
        %338 = vst.msk [vmem:[%s311 + $0x139] sm:$0xff] %vm223, %v305
        %339 = vst.msk [vmem:[%s311 + $0x141] sm:$0xff] %vm223, %v306
        %340 = vst.msk [vmem:[%s311 + $0x151] sm:$0xff] %vm223, %v307
        %341 = vst.msk [vmem:[%s311 + $0x159] sm:$0xff] %vm223, %v308
        %342 = vst.msk [vmem:[%s311 + $0x169] sm:$0xff] %vm223, %v309
        %343 = vst.msk [vmem:[%s311 + $0x171] sm:$0xff] %vm223, %v310
        %v344 = vld [vmem:[#allocation2] sm:$0xff]
        %v345 = vld [vmem:[#allocation2 + $0x8] sm:$0xff]
        %v346 = vld [vmem:[#allocation2 + $0x18] sm:$0xff]
        %v347 = vld [vmem:[#allocation2 + $0x20] sm:$0xff]
        %v348 = vld [vmem:[#allocation2 + $0x30] sm:$0xff]
        %v349 = vld [vmem:[#allocation2 + $0x38] sm:$0xff]
        %v350 = vld [vmem:[#allocation2 + $0x48] sm:$0xff]
        %v351 = vld [vmem:[#allocation2 + $0x50] sm:$0xff]
        %v352 = vld [vmem:[#allocation2 + $0x60] sm:$0xff]
        %v353 = vld [vmem:[#allocation2 + $0x68] sm:$0xff]
        %v354 = vld [vmem:[#allocation2 + $0x78] sm:$0xff]
        %v355 = vld [vmem:[#allocation2 + $0x80] sm:$0xff]
        %v356 = vld [vmem:[#allocation2 + $0x90] sm:$0xff]
        %v357 = vld [vmem:[#allocation2 + $0x98] sm:$0xff]
        %v358 = vld [vmem:[#allocation2 + $0xa8] sm:$0xff]
        %v359 = vld [vmem:[#allocation2 + $0xb0] sm:$0xff]
        %v360 = vld [vmem:[#allocation2 + $0xc0] sm:$0xff]
        %v361 = vld [vmem:[#allocation2 + $0xc8] sm:$0xff]
        %v362 = vld [vmem:[#allocation2 + $0xd8] sm:$0xff]
        %v363 = vld [vmem:[#allocation2 + $0xe0] sm:$0xff]
        %v364 = vld [vmem:[#allocation2 + $0xf0] sm:$0xff]
        %v365 = vld [vmem:[#allocation2 + $0xf8] sm:$0xff]
        %v366 = vld [vmem:[#allocation2 + $0x108] sm:$0xff]
        %v367 = vld [vmem:[#allocation2 + $0x110] sm:$0xff]
        %v368 = vld [vmem:[#allocation2 + $0x120] sm:$0xff]
        %v369 = vld [vmem:[#allocation2 + $0x128] sm:$0xff]
        %v370 = vld [vmem:[#allocation2 + $0x138] sm:$0xff]
        %v371 = vld [vmem:[#allocation2 + $0x140] sm:$0xff]
        %v372 = vld [vmem:[#allocation2 + $0x150] sm:$0xff]
        %v373 = vld [vmem:[#allocation2 + $0x158] sm:$0xff]
        %v374 = vld [vmem:[#allocation2 + $0x168] sm:$0xff]
        %v375 = vld [vmem:[#allocation2 + $0x170] sm:$0xff]
        %v376 = vld [vmem:[#allocation2 + $0x180] sm:$0xff]
        %v377 = vld [vmem:[#allocation2 + $0x188] sm:$0xff]
        %v378 = vld [vmem:[#allocation2 + $0x198] sm:$0xff]
        %v379 = vld [vmem:[#allocation2 + $0x1a0] sm:$0xff]
        %v380 = vld [vmem:[%s1] sm:$0xff]
        %v381 = vld [vmem:[%s1 + $0x8] sm:$0xff]
        %v382 = vld [vmem:[%s1 + $0x10] sm:$0xff]
        %v383 = vld [vmem:[%s1 + $0x18] sm:$0xff]
        %v384 = vld [vmem:[%s1 + $0x20] sm:$0xff]
        %v385 = vld [vmem:[%s1 + $0x28] sm:$0xff]
        %v386 = vld [vmem:[%s1 + $0x30] sm:$0xff]
        %v387 = vld [vmem:[%s1 + $0x38] sm:$0xff]
        %s388 = scalar_lea.vmem %s1, 192
        %v389 = vld [vmem:[%s388] sm:$0xff]
        %v390 = vld [vmem:[%s388 + $0x8] sm:$0xff]
        %v391 = vld [vmem:[%s388 + $0x10] sm:$0xff]
        %v392 = vld [vmem:[%s388 + $0x18] sm:$0xff]
        %v393 = vld [vmem:[%s388 + $0x20] sm:$0xff]
        %v394 = vld [vmem:[%s388 + $0x28] sm:$0xff]
        %v395 = vld [vmem:[%s388 + $0x30] sm:$0xff]
        %v396 = vld [vmem:[%s388 + $0x38] sm:$0xff]
        %v398 = vsel %vm223, %v346, 0
        %v401 = vsel %vm223, %v347, 0
        %v404 = vsel %vm223, %v348, 0
        %v407 = vsel %vm223, %v349, 0
        %v410 = vsel %vm223, %v350, 0
        %v413 = vsel %vm223, %v351, 0
        %v416 = vsel %vm223, %v352, 0
        %v419 = vsel %vm223, %v353, 0
        %v422 = vsel %vm223, %v354, 0
        %v425 = vsel %vm223, %v355, 0
        %v428 = vsel %vm223, %v356, 0
        %v431 = vsel %vm223, %v357, 0
        %v434 = vsel %vm223, %v358, 0
        %v437 = vsel %vm223, %v359, 0
        %v440 = vsel %vm223, %v360, 0
        %v443 = vsel %vm223, %v361, 0
        %v446 = vsel %vm223, %v362, 0
        %v449 = vsel %vm223, %v363, 0
        %v452 = vsel %vm223, %v364, 0
        %v455 = vsel %vm223, %v365, 0
        %v458 = vsel %vm223, %v366, 0
        %v461 = vsel %vm223, %v367, 0
        %v464 = vsel %vm223, %v368, 0
        %v467 = vsel %vm223, %v369, 0
        %v470 = vsel %vm223, %v370, 0
        %v473 = vsel %vm223, %v371, 0
        %v476 = vsel %vm223, %v372, 0
        %v479 = vsel %vm223, %v373, 0
        %v482 = vsel %vm223, %v374, 0
        %v485 = vsel %vm223, %v375, 0
        %v488 = vsel %vm223, %v376, 0
        %v491 = vsel %vm223, %v377, 0
        %493 = vmatpush.msra.mxu0 0.0
        %494 = vmatpush.msra.mxu0 0.0
        %495 = vmatpush.msra.mxu0 0.0
        %496 = vmatpush.msra.mxu0 0.0
        %497 = vmatpush.msra.mxu0 0.0
        %498 = vmatpush.msra.mxu0 0.0
        %499 = vmatpush.msra.mxu0 0.0
        %500 = vmatpush.msra.mxu0 0.0
        %501 = vmatpush.msra.mxu0 %v396
        %502 = vmatpush.msra.mxu0 %v395
        %503 = vmatpush.msra.mxu0 %v394
        %504 = vmatpush.msra.mxu0 %v393
        %505 = vmatpush.msra.mxu0 %v392
        %506 = vmatpush.msra.mxu0 %v391
        %507 = vmatpush.msra.mxu0 %v390
        %508 = vmatpush.msra.mxu0 %v389
        %509 = vmatmul.f32.gmra.mxu0 %v398
        %v510 = vpop.f32.mrf.mxu0
        %v511 = vadd.f32 0.0, %v510
        %512 = vmatmul.f32.gmra.mxu0 %v401
        %v513 = vpop.f32.mrf.mxu0
        %v514 = vadd.f32 0.0, %v513
        %515 = vmatmul.f32.gmra.mxu0 %v404
        %v516 = vpop.f32.mrf.mxu0
        %v517 = vadd.f32 0.0, %v516
        %518 = vmatmul.f32.gmra.mxu0 %v407
        %v519 = vpop.f32.mrf.mxu0
        %v520 = vadd.f32 0.0, %v519
        %521 = vmatmul.f32.gmra.mxu0 %v410
        %v522 = vpop.f32.mrf.mxu0
        %v523 = vadd.f32 0.0, %v522
        %524 = vmatmul.f32.gmra.mxu0 %v413
        %v525 = vpop.f32.mrf.mxu0
        %v526 = vadd.f32 0.0, %v525
        %527 = vmatmul.f32.gmra.mxu0 %v416
        %v528 = vpop.f32.mrf.mxu0
        %v529 = vadd.f32 0.0, %v528
        %530 = vmatmul.f32.gmra.mxu0 %v419
        %v531 = vpop.f32.mrf.mxu0
        %v532 = vadd.f32 0.0, %v531
        %533 = vmatmul.f32.gmra.mxu0 %v422
        %v534 = vpop.f32.mrf.mxu0
        %v535 = vadd.f32 0.0, %v534
        %536 = vmatmul.f32.gmra.mxu0 %v425
        %v537 = vpop.f32.mrf.mxu0
        %v538 = vadd.f32 0.0, %v537
        %539 = vmatmul.f32.gmra.mxu0 %v428
        %v540 = vpop.f32.mrf.mxu0
        %v541 = vadd.f32 0.0, %v540
        %542 = vmatmul.f32.gmra.mxu0 %v431
        %v543 = vpop.f32.mrf.mxu0
        %v544 = vadd.f32 0.0, %v543
        %545 = vmatmul.f32.gmra.mxu0 %v434
        %v546 = vpop.f32.mrf.mxu0
        %v547 = vadd.f32 0.0, %v546
        %548 = vmatmul.f32.gmra.mxu0 %v437
        %v549 = vpop.f32.mrf.mxu0
        %v550 = vadd.f32 0.0, %v549
        %551 = vmatmul.f32.gmra.mxu0 %v440
        %v552 = vpop.f32.mrf.mxu0
        %v553 = vadd.f32 0.0, %v552
        %554 = vmatmul.f32.gmra.mxu0 %v443
        %v555 = vpop.f32.mrf.mxu0
        %v556 = vadd.f32 0.0, %v555
        %557 = vmatmul.f32.gmra.mxu0 %v446
        %v558 = vpop.f32.mrf.mxu0
        %v559 = vadd.f32 0.0, %v558
        %560 = vmatmul.f32.gmra.mxu0 %v449
        %v561 = vpop.f32.mrf.mxu0
        %v562 = vadd.f32 0.0, %v561
        %563 = vmatmul.f32.gmra.mxu0 %v452
        %v564 = vpop.f32.mrf.mxu0
        %v565 = vadd.f32 0.0, %v564
        %566 = vmatmul.f32.gmra.mxu0 %v455
        %v567 = vpop.f32.mrf.mxu0
        %v568 = vadd.f32 0.0, %v567
        %569 = vmatmul.f32.gmra.mxu0 %v458
        %v570 = vpop.f32.mrf.mxu0
        %v571 = vadd.f32 0.0, %v570
        %572 = vmatmul.f32.gmra.mxu0 %v461
        %v573 = vpop.f32.mrf.mxu0
        %v574 = vadd.f32 0.0, %v573
        %575 = vmatmul.f32.gmra.mxu0 %v464
        %v576 = vpop.f32.mrf.mxu0
        %v577 = vadd.f32 0.0, %v576
        %578 = vmatmul.f32.gmra.mxu0 %v467
        %v579 = vpop.f32.mrf.mxu0
        %v580 = vadd.f32 0.0, %v579
        %581 = vmatmul.f32.gmra.mxu0 %v470
        %v582 = vpop.f32.mrf.mxu0
        %v583 = vadd.f32 0.0, %v582
        %584 = vmatmul.f32.gmra.mxu0 %v473
        %v585 = vpop.f32.mrf.mxu0
        %v586 = vadd.f32 0.0, %v585
        %587 = vmatmul.f32.gmra.mxu0 %v476
        %v588 = vpop.f32.mrf.mxu0
        %v589 = vadd.f32 0.0, %v588
        %590 = vmatmul.f32.gmra.mxu0 %v479
        %v591 = vpop.f32.mrf.mxu0
        %v592 = vadd.f32 0.0, %v591
        %593 = vmatmul.f32.gmra.mxu0 %v482
        %v594 = vpop.f32.mrf.mxu0
        %v595 = vadd.f32 0.0, %v594
        %596 = vmatmul.f32.gmra.mxu0 %v485
        %v597 = vpop.f32.mrf.mxu0
        %v598 = vadd.f32 0.0, %v597
        %599 = vmatmul.f32.gmra.mxu0 %v488
        %v600 = vpop.f32.mrf.mxu0
        %v601 = vadd.f32 0.0, %v600
        %602 = vmatmul.f32.gmra.mxu0 %v491
        %v603 = vpop.f32.mrf.mxu0
        %v604 = vadd.f32 0.0, %v603
        %605 = vdwg.mxu0
        %v607 = vsel %vm223, %v344, 0
        %v610 = vsel %vm223, %v345, 0
        %612 = vmatpush.msra.mxu0 0.0
        %613 = vmatpush.msra.mxu0 0.0
        %614 = vmatpush.msra.mxu0 0.0
        %615 = vmatpush.msra.mxu0 0.0
        %616 = vmatpush.msra.mxu0 0.0
        %617 = vmatpush.msra.mxu0 0.0
        %618 = vmatpush.msra.mxu0 0.0
        %619 = vmatpush.msra.mxu0 0.0
        %620 = vmatpush.msra.mxu0 %v387
        %621 = vmatpush.msra.mxu0 %v386
        %622 = vmatpush.msra.mxu0 %v385
        %623 = vmatpush.msra.mxu0 %v384
        %624 = vmatpush.msra.mxu0 %v383
        %625 = vmatpush.msra.mxu0 %v382
        %626 = vmatpush.msra.mxu0 %v381
        %627 = vmatpush.msra.mxu0 %v380
        %628 = vmatmul.f32.gmra.mxu0 %v607
        %v629 = vpop.f32.mrf.mxu0
        %v630 = vadd.f32 %v511, %v629
        %631 = vmatmul.f32.gmra.mxu0 %v610
        %v632 = vpop.f32.mrf.mxu0
        %v633 = vadd.f32 %v514, %v632
        %634 = vmatmul.f32.gmra.mxu0 %v398
        %v635 = vpop.f32.mrf.mxu0
        %v636 = vadd.f32 %v517, %v635
        %637 = vmatmul.f32.gmra.mxu0 %v401
        %v638 = vpop.f32.mrf.mxu0
        %v639 = vadd.f32 %v520, %v638
        %640 = vmatmul.f32.gmra.mxu0 %v404
        %v641 = vpop.f32.mrf.mxu0
        %v642 = vadd.f32 %v523, %v641
        %643 = vmatmul.f32.gmra.mxu0 %v407
        %v644 = vpop.f32.mrf.mxu0
        %v645 = vadd.f32 %v526, %v644
        %646 = vmatmul.f32.gmra.mxu0 %v410
        %v647 = vpop.f32.mrf.mxu0
        %v648 = vadd.f32 %v529, %v647
        %649 = vmatmul.f32.gmra.mxu0 %v413
        %v650 = vpop.f32.mrf.mxu0
        %v651 = vadd.f32 %v532, %v650
        %652 = vmatmul.f32.gmra.mxu0 %v416
        %v653 = vpop.f32.mrf.mxu0
        %v654 = vadd.f32 %v535, %v653
        %655 = vmatmul.f32.gmra.mxu0 %v419
        %v656 = vpop.f32.mrf.mxu0
        %v657 = vadd.f32 %v538, %v656
        %658 = vmatmul.f32.gmra.mxu0 %v422
        %v659 = vpop.f32.mrf.mxu0
        %v660 = vadd.f32 %v541, %v659
        %661 = vmatmul.f32.gmra.mxu0 %v425
        %v662 = vpop.f32.mrf.mxu0
        %v663 = vadd.f32 %v544, %v662
        %664 = vmatmul.f32.gmra.mxu0 %v428
        %v665 = vpop.f32.mrf.mxu0
        %v666 = vadd.f32 %v547, %v665
        %667 = vmatmul.f32.gmra.mxu0 %v431
        %v668 = vpop.f32.mrf.mxu0
        %v669 = vadd.f32 %v550, %v668
        %670 = vmatmul.f32.gmra.mxu0 %v434
        %v671 = vpop.f32.mrf.mxu0
        %v672 = vadd.f32 %v553, %v671
        %673 = vmatmul.f32.gmra.mxu0 %v437
        %v674 = vpop.f32.mrf.mxu0
        %v675 = vadd.f32 %v556, %v674
        %676 = vmatmul.f32.gmra.mxu0 %v440
        %v677 = vpop.f32.mrf.mxu0
        %v678 = vadd.f32 %v559, %v677
        %679 = vmatmul.f32.gmra.mxu0 %v443
        %v680 = vpop.f32.mrf.mxu0
        %v681 = vadd.f32 %v562, %v680
        %682 = vmatmul.f32.gmra.mxu0 %v446
        %v683 = vpop.f32.mrf.mxu0
        %v684 = vadd.f32 %v565, %v683
        %685 = vmatmul.f32.gmra.mxu0 %v449
        %v686 = vpop.f32.mrf.mxu0
        %v687 = vadd.f32 %v568, %v686
        %688 = vmatmul.f32.gmra.mxu0 %v452
        %v689 = vpop.f32.mrf.mxu0
        %v690 = vadd.f32 %v571, %v689
        %691 = vmatmul.f32.gmra.mxu0 %v455
        %v692 = vpop.f32.mrf.mxu0
        %v693 = vadd.f32 %v574, %v692
        %694 = vmatmul.f32.gmra.mxu0 %v458
        %v695 = vpop.f32.mrf.mxu0
        %v696 = vadd.f32 %v577, %v695
        %697 = vmatmul.f32.gmra.mxu0 %v461
        %v698 = vpop.f32.mrf.mxu0
        %v699 = vadd.f32 %v580, %v698
        %700 = vmatmul.f32.gmra.mxu0 %v464
        %v701 = vpop.f32.mrf.mxu0
        %v702 = vadd.f32 %v583, %v701
        %703 = vmatmul.f32.gmra.mxu0 %v467
        %v704 = vpop.f32.mrf.mxu0
        %v705 = vadd.f32 %v586, %v704
        %706 = vmatmul.f32.gmra.mxu0 %v470
        %v707 = vpop.f32.mrf.mxu0
        %v708 = vadd.f32 %v589, %v707
        %709 = vmatmul.f32.gmra.mxu0 %v473
        %v710 = vpop.f32.mrf.mxu0
        %v711 = vadd.f32 %v592, %v710
        %712 = vmatmul.f32.gmra.mxu0 %v476
        %v713 = vpop.f32.mrf.mxu0
        %v714 = vadd.f32 %v595, %v713
        %715 = vmatmul.f32.gmra.mxu0 %v479
        %v716 = vpop.f32.mrf.mxu0
        %v717 = vadd.f32 %v598, %v716
        %718 = vmatmul.f32.gmra.mxu0 %v482
        %v719 = vpop.f32.mrf.mxu0
        %v720 = vadd.f32 %v601, %v719
        %721 = vmatmul.f32.gmra.mxu0 %v485
        %v722 = vpop.f32.mrf.mxu0
        %v723 = vadd.f32 %v604, %v722
        %724 = vdwg.mxu0
        %s725 = scalar_lea.vmem %s1, 384
        %v726 = vld [vmem:[%s725] sm:$0xff]
        %v727 = vld [vmem:[%s725 + $0x8] sm:$0xff]
        %v728 = vld [vmem:[%s725 + $0x10] sm:$0xff]
        %v729 = vld [vmem:[%s725 + $0x18] sm:$0xff]
        %v730 = vld [vmem:[%s725 + $0x20] sm:$0xff]
        %v731 = vld [vmem:[%s725 + $0x28] sm:$0xff]
        %v732 = vld [vmem:[%s725 + $0x30] sm:$0xff]
        %v733 = vld [vmem:[%s725 + $0x38] sm:$0xff]
        %v735 = vsel %vm223, %v378, 0
        %v738 = vsel %vm223, %v379, 0
        %740 = vmatpush.msra.mxu0 0.0
        %741 = vmatpush.msra.mxu0 0.0
        %742 = vmatpush.msra.mxu0 0.0
        %743 = vmatpush.msra.mxu0 0.0
        %744 = vmatpush.msra.mxu0 0.0
        %745 = vmatpush.msra.mxu0 0.0
        %746 = vmatpush.msra.mxu0 0.0
        %747 = vmatpush.msra.mxu0 0.0
        %748 = vmatpush.msra.mxu0 %v733
        %749 = vmatpush.msra.mxu0 %v732
        %750 = vmatpush.msra.mxu0 %v731
        %751 = vmatpush.msra.mxu0 %v730
        %752 = vmatpush.msra.mxu0 %v729
        %753 = vmatpush.msra.mxu0 %v728
        %754 = vmatpush.msra.mxu0 %v727
        %755 = vmatpush.msra.mxu0 %v726
        %756 = vmatmul.f32.gmra.mxu0 %v404
        %v757 = vpop.f32.mrf.mxu0
        %v758 = vadd.f32 0.0, %v757
        %759 = vmatmul.f32.gmra.mxu0 %v407
        %v760 = vpop.f32.mrf.mxu0
        %v761 = vadd.f32 0.0, %v760
        %762 = vmatmul.f32.gmra.mxu0 %v410
        %v763 = vpop.f32.mrf.mxu0
        %v764 = vadd.f32 0.0, %v763
        %765 = vmatmul.f32.gmra.mxu0 %v413
        %v766 = vpop.f32.mrf.mxu0
        %v767 = vadd.f32 0.0, %v766
        %768 = vmatmul.f32.gmra.mxu0 %v416
        %v769 = vpop.f32.mrf.mxu0
        %v770 = vadd.f32 0.0, %v769
        %771 = vmatmul.f32.gmra.mxu0 %v419
        %v772 = vpop.f32.mrf.mxu0
        %v773 = vadd.f32 0.0, %v772
        %774 = vmatmul.f32.gmra.mxu0 %v422
        %v775 = vpop.f32.mrf.mxu0
        %v776 = vadd.f32 0.0, %v775
        %777 = vmatmul.f32.gmra.mxu0 %v425
        %v778 = vpop.f32.mrf.mxu0
        %v779 = vadd.f32 0.0, %v778
        %780 = vmatmul.f32.gmra.mxu0 %v428
        %v781 = vpop.f32.mrf.mxu0
        %v782 = vadd.f32 0.0, %v781
        %783 = vmatmul.f32.gmra.mxu0 %v431
        %v784 = vpop.f32.mrf.mxu0
        %v785 = vadd.f32 0.0, %v784
        %786 = vmatmul.f32.gmra.mxu0 %v434
        %v787 = vpop.f32.mrf.mxu0
        %v788 = vadd.f32 0.0, %v787
        %789 = vmatmul.f32.gmra.mxu0 %v437
        %v790 = vpop.f32.mrf.mxu0
        %v791 = vadd.f32 0.0, %v790
        %792 = vmatmul.f32.gmra.mxu0 %v440
        %v793 = vpop.f32.mrf.mxu0
        %v794 = vadd.f32 0.0, %v793
        %795 = vmatmul.f32.gmra.mxu0 %v443
        %v796 = vpop.f32.mrf.mxu0
        %v797 = vadd.f32 0.0, %v796
        %798 = vmatmul.f32.gmra.mxu0 %v446
        %v799 = vpop.f32.mrf.mxu0
        %v800 = vadd.f32 0.0, %v799
        %801 = vmatmul.f32.gmra.mxu0 %v449
        %v802 = vpop.f32.mrf.mxu0
        %v803 = vadd.f32 0.0, %v802
        %804 = vmatmul.f32.gmra.mxu0 %v452
        %v805 = vpop.f32.mrf.mxu0
        %v806 = vadd.f32 0.0, %v805
        %807 = vmatmul.f32.gmra.mxu0 %v455
        %v808 = vpop.f32.mrf.mxu0
        %v809 = vadd.f32 0.0, %v808
        %810 = vmatmul.f32.gmra.mxu0 %v458
        %v811 = vpop.f32.mrf.mxu0
        %v812 = vadd.f32 0.0, %v811
        %813 = vmatmul.f32.gmra.mxu0 %v461
        %v814 = vpop.f32.mrf.mxu0
        %v815 = vadd.f32 0.0, %v814
        %816 = vmatmul.f32.gmra.mxu0 %v464
        %v817 = vpop.f32.mrf.mxu0
        %v818 = vadd.f32 0.0, %v817
        %819 = vmatmul.f32.gmra.mxu0 %v467
        %v820 = vpop.f32.mrf.mxu0
        %v821 = vadd.f32 0.0, %v820
        %822 = vmatmul.f32.gmra.mxu0 %v470
        %v823 = vpop.f32.mrf.mxu0
        %v824 = vadd.f32 0.0, %v823
        %825 = vmatmul.f32.gmra.mxu0 %v473
        %v826 = vpop.f32.mrf.mxu0
        %v827 = vadd.f32 0.0, %v826
        %828 = vmatmul.f32.gmra.mxu0 %v476
        %v829 = vpop.f32.mrf.mxu0
        %v830 = vadd.f32 0.0, %v829
        %831 = vmatmul.f32.gmra.mxu0 %v479
        %v832 = vpop.f32.mrf.mxu0
        %v833 = vadd.f32 0.0, %v832
        %834 = vmatmul.f32.gmra.mxu0 %v482
        %v835 = vpop.f32.mrf.mxu0
        %v836 = vadd.f32 0.0, %v835
        %837 = vmatmul.f32.gmra.mxu0 %v485
        %v838 = vpop.f32.mrf.mxu0
        %v839 = vadd.f32 0.0, %v838
        %840 = vmatmul.f32.gmra.mxu0 %v488
        %v841 = vpop.f32.mrf.mxu0
        %v842 = vadd.f32 0.0, %v841
        %843 = vmatmul.f32.gmra.mxu0 %v491
        %v844 = vpop.f32.mrf.mxu0
        %v845 = vadd.f32 0.0, %v844
        %846 = vmatmul.f32.gmra.mxu0 %v735
        %v847 = vpop.f32.mrf.mxu0
        %v848 = vadd.f32 0.0, %v847
        %849 = vmatmul.f32.gmra.mxu0 %v738
        %v850 = vpop.f32.mrf.mxu0
        %v851 = vadd.f32 0.0, %v850
        %852 = vdwg.mxu0
        %v853 = vadd.f32 %v630, %v758
        %v854 = vadd.f32 %v633, %v761
        %v855 = vadd.f32 %v636, %v764
        %v856 = vadd.f32 %v639, %v767
        %v857 = vadd.f32 %v642, %v770
        %v858 = vadd.f32 %v645, %v773
        %v859 = vadd.f32 %v648, %v776
        %v860 = vadd.f32 %v651, %v779
        %v861 = vadd.f32 %v654, %v782
        %v862 = vadd.f32 %v657, %v785
        %v863 = vadd.f32 %v660, %v788
        %v864 = vadd.f32 %v663, %v791
        %v865 = vadd.f32 %v666, %v794
        %v866 = vadd.f32 %v669, %v797
        %v867 = vadd.f32 %v672, %v800
        %v868 = vadd.f32 %v675, %v803
        %v869 = vadd.f32 %v678, %v806
        %v870 = vadd.f32 %v681, %v809
        %v871 = vadd.f32 %v684, %v812
        %v872 = vadd.f32 %v687, %v815
        %v873 = vadd.f32 %v690, %v818
        %v874 = vadd.f32 %v693, %v821
        %v875 = vadd.f32 %v696, %v824
        %v876 = vadd.f32 %v699, %v827
        %v877 = vadd.f32 %v702, %v830
        %v878 = vadd.f32 %v705, %v833
        %v879 = vadd.f32 %v708, %v836
        %v880 = vadd.f32 %v711, %v839
        %v881 = vadd.f32 %v714, %v842
        %v882 = vadd.f32 %v717, %v845
        %v883 = vadd.f32 %v720, %v848
        %v884 = vadd.f32 %v723, %v851
        %v885 = vld [vmem:[#allocation2 + $0x1] sm:$0xff]
        %v886 = vld [vmem:[#allocation2 + $0x9] sm:$0xff]
        %v887 = vld [vmem:[#allocation2 + $0x19] sm:$0xff]
        %v888 = vld [vmem:[#allocation2 + $0x21] sm:$0xff]
        %v889 = vld [vmem:[#allocation2 + $0x31] sm:$0xff]
        %v890 = vld [vmem:[#allocation2 + $0x39] sm:$0xff]
        %v891 = vld [vmem:[#allocation2 + $0x49] sm:$0xff]
        %v892 = vld [vmem:[#allocation2 + $0x51] sm:$0xff]
        %v893 = vld [vmem:[#allocation2 + $0x61] sm:$0xff]
        %v894 = vld [vmem:[#allocation2 + $0x69] sm:$0xff]
        %v895 = vld [vmem:[#allocation2 + $0x79] sm:$0xff]
        %v896 = vld [vmem:[#allocation2 + $0x81] sm:$0xff]
        %v897 = vld [vmem:[#allocation2 + $0x91] sm:$0xff]
        %v898 = vld [vmem:[#allocation2 + $0x99] sm:$0xff]
        %v899 = vld [vmem:[#allocation2 + $0xa9] sm:$0xff]
        %v900 = vld [vmem:[#allocation2 + $0xb1] sm:$0xff]
        %v901 = vld [vmem:[#allocation2 + $0xc1] sm:$0xff]
        %v902 = vld [vmem:[#allocation2 + $0xc9] sm:$0xff]
        %v903 = vld [vmem:[#allocation2 + $0xd9] sm:$0xff]
        %v904 = vld [vmem:[#allocation2 + $0xe1] sm:$0xff]
        %v905 = vld [vmem:[#allocation2 + $0xf1] sm:$0xff]
        %v906 = vld [vmem:[#allocation2 + $0xf9] sm:$0xff]
        %v907 = vld [vmem:[#allocation2 + $0x109] sm:$0xff]
        %v908 = vld [vmem:[#allocation2 + $0x111] sm:$0xff]
        %v909 = vld [vmem:[#allocation2 + $0x121] sm:$0xff]
        %v910 = vld [vmem:[#allocation2 + $0x129] sm:$0xff]
        %v911 = vld [vmem:[#allocation2 + $0x139] sm:$0xff]
        %v912 = vld [vmem:[#allocation2 + $0x141] sm:$0xff]
        %v913 = vld [vmem:[#allocation2 + $0x151] sm:$0xff]
        %v914 = vld [vmem:[#allocation2 + $0x159] sm:$0xff]
        %v915 = vld [vmem:[#allocation2 + $0x169] sm:$0xff]
        %v916 = vld [vmem:[#allocation2 + $0x171] sm:$0xff]
        %v917 = vld [vmem:[#allocation2 + $0x181] sm:$0xff]
        %v918 = vld [vmem:[#allocation2 + $0x189] sm:$0xff]
        %v919 = vld [vmem:[#allocation2 + $0x199] sm:$0xff]
        %v920 = vld [vmem:[#allocation2 + $0x1a1] sm:$0xff]
        %s921 = scalar_lea.vmem %s1, 64
        %v922 = vld [vmem:[%s921] sm:$0xff]
        %v923 = vld [vmem:[%s921 + $0x8] sm:$0xff]
        %v924 = vld [vmem:[%s921 + $0x10] sm:$0xff]
        %v925 = vld [vmem:[%s921 + $0x18] sm:$0xff]
        %v926 = vld [vmem:[%s921 + $0x20] sm:$0xff]
        %v927 = vld [vmem:[%s921 + $0x28] sm:$0xff]
        %v928 = vld [vmem:[%s921 + $0x30] sm:$0xff]
        %v929 = vld [vmem:[%s921 + $0x38] sm:$0xff]
        %v931 = vsel %vm223, %v885, 0
        %v934 = vsel %vm223, %v886, 0
        %v937 = vsel %vm223, %v887, 0
        %v940 = vsel %vm223, %v888, 0
        %v943 = vsel %vm223, %v889, 0
        %v946 = vsel %vm223, %v890, 0
        %v949 = vsel %vm223, %v891, 0
        %v952 = vsel %vm223, %v892, 0
        %v955 = vsel %vm223, %v893, 0
        %v958 = vsel %vm223, %v894, 0
        %v961 = vsel %vm223, %v895, 0
        %v964 = vsel %vm223, %v896, 0
        %v967 = vsel %vm223, %v897, 0
        %v970 = vsel %vm223, %v898, 0
        %v973 = vsel %vm223, %v899, 0
        %v976 = vsel %vm223, %v900, 0
        %v979 = vsel %vm223, %v901, 0
        %v982 = vsel %vm223, %v902, 0
        %v985 = vsel %vm223, %v903, 0
        %v988 = vsel %vm223, %v904, 0
        %v991 = vsel %vm223, %v905, 0
        %v994 = vsel %vm223, %v906, 0
        %v997 = vsel %vm223, %v907, 0
        %v1000 = vsel %vm223, %v908, 0
        %v1003 = vsel %vm223, %v909, 0
        %v1006 = vsel %vm223, %v910, 0
        %v1009 = vsel %vm223, %v911, 0
        %v1012 = vsel %vm223, %v912, 0
        %v1015 = vsel %vm223, %v913, 0
        %v1018 = vsel %vm223, %v914, 0
        %v1021 = vsel %vm223, %v915, 0
        %v1024 = vsel %vm223, %v916, 0
        %1026 = vmatpush.msra.mxu0 0.0
        %1027 = vmatpush.msra.mxu0 0.0
        %1028 = vmatpush.msra.mxu0 0.0
        %1029 = vmatpush.msra.mxu0 0.0
        %1030 = vmatpush.msra.mxu0 0.0
        %1031 = vmatpush.msra.mxu0 0.0
        %1032 = vmatpush.msra.mxu0 0.0
        %1033 = vmatpush.msra.mxu0 0.0
        %1034 = vmatpush.msra.mxu0 %v929
        %1035 = vmatpush.msra.mxu0 %v928
        %1036 = vmatpush.msra.mxu0 %v927
        %1037 = vmatpush.msra.mxu0 %v926
        %1038 = vmatpush.msra.mxu0 %v925
        %1039 = vmatpush.msra.mxu0 %v924
        %1040 = vmatpush.msra.mxu0 %v923
        %1041 = vmatpush.msra.mxu0 %v922
        %1042 = vmatmul.f32.gmra.mxu0 %v931
        %v1043 = vpop.f32.mrf.mxu0
        %v1044 = vadd.f32 0.0, %v1043
        %1045 = vmatmul.f32.gmra.mxu0 %v934
        %v1046 = vpop.f32.mrf.mxu0
        %v1047 = vadd.f32 0.0, %v1046
        %1048 = vmatmul.f32.gmra.mxu0 %v937
        %v1049 = vpop.f32.mrf.mxu0
        %v1050 = vadd.f32 0.0, %v1049
        %1051 = vmatmul.f32.gmra.mxu0 %v940
        %v1052 = vpop.f32.mrf.mxu0
        %v1053 = vadd.f32 0.0, %v1052
        %1054 = vmatmul.f32.gmra.mxu0 %v943
        %v1055 = vpop.f32.mrf.mxu0
        %v1056 = vadd.f32 0.0, %v1055
        %1057 = vmatmul.f32.gmra.mxu0 %v946
        %v1058 = vpop.f32.mrf.mxu0
        %v1059 = vadd.f32 0.0, %v1058
        %1060 = vmatmul.f32.gmra.mxu0 %v949
        %v1061 = vpop.f32.mrf.mxu0
        %v1062 = vadd.f32 0.0, %v1061
        %1063 = vmatmul.f32.gmra.mxu0 %v952
        %v1064 = vpop.f32.mrf.mxu0
        %v1065 = vadd.f32 0.0, %v1064
        %1066 = vmatmul.f32.gmra.mxu0 %v955
        %v1067 = vpop.f32.mrf.mxu0
        %v1068 = vadd.f32 0.0, %v1067
        %1069 = vmatmul.f32.gmra.mxu0 %v958
        %v1070 = vpop.f32.mrf.mxu0
        %v1071 = vadd.f32 0.0, %v1070
        %1072 = vmatmul.f32.gmra.mxu0 %v961
        %v1073 = vpop.f32.mrf.mxu0
        %v1074 = vadd.f32 0.0, %v1073
        %1075 = vmatmul.f32.gmra.mxu0 %v964
        %v1076 = vpop.f32.mrf.mxu0
        %v1077 = vadd.f32 0.0, %v1076
        %1078 = vmatmul.f32.gmra.mxu0 %v967
        %v1079 = vpop.f32.mrf.mxu0
        %v1080 = vadd.f32 0.0, %v1079
        %1081 = vmatmul.f32.gmra.mxu0 %v970
        %v1082 = vpop.f32.mrf.mxu0
        %v1083 = vadd.f32 0.0, %v1082
        %1084 = vmatmul.f32.gmra.mxu0 %v973
        %v1085 = vpop.f32.mrf.mxu0
        %v1086 = vadd.f32 0.0, %v1085
        %1087 = vmatmul.f32.gmra.mxu0 %v976
        %v1088 = vpop.f32.mrf.mxu0
        %v1089 = vadd.f32 0.0, %v1088
        %1090 = vmatmul.f32.gmra.mxu0 %v979
        %v1091 = vpop.f32.mrf.mxu0
        %v1092 = vadd.f32 0.0, %v1091
        %1093 = vmatmul.f32.gmra.mxu0 %v982
        %v1094 = vpop.f32.mrf.mxu0
        %v1095 = vadd.f32 0.0, %v1094
        %1096 = vmatmul.f32.gmra.mxu0 %v985
        %v1097 = vpop.f32.mrf.mxu0
        %v1098 = vadd.f32 0.0, %v1097
        %1099 = vmatmul.f32.gmra.mxu0 %v988
        %v1100 = vpop.f32.mrf.mxu0
        %v1101 = vadd.f32 0.0, %v1100
        %1102 = vmatmul.f32.gmra.mxu0 %v991
        %v1103 = vpop.f32.mrf.mxu0
        %v1104 = vadd.f32 0.0, %v1103
        %1105 = vmatmul.f32.gmra.mxu0 %v994
        %v1106 = vpop.f32.mrf.mxu0
        %v1107 = vadd.f32 0.0, %v1106
        %1108 = vmatmul.f32.gmra.mxu0 %v997
        %v1109 = vpop.f32.mrf.mxu0
        %v1110 = vadd.f32 0.0, %v1109
        %1111 = vmatmul.f32.gmra.mxu0 %v1000
        %v1112 = vpop.f32.mrf.mxu0
        %v1113 = vadd.f32 0.0, %v1112
        %1114 = vmatmul.f32.gmra.mxu0 %v1003
        %v1115 = vpop.f32.mrf.mxu0
        %v1116 = vadd.f32 0.0, %v1115
        %1117 = vmatmul.f32.gmra.mxu0 %v1006
        %v1118 = vpop.f32.mrf.mxu0
        %v1119 = vadd.f32 0.0, %v1118
        %1120 = vmatmul.f32.gmra.mxu0 %v1009
        %v1121 = vpop.f32.mrf.mxu0
        %v1122 = vadd.f32 0.0, %v1121
        %1123 = vmatmul.f32.gmra.mxu0 %v1012
        %v1124 = vpop.f32.mrf.mxu0
        %v1125 = vadd.f32 0.0, %v1124
        %1126 = vmatmul.f32.gmra.mxu0 %v1015
        %v1127 = vpop.f32.mrf.mxu0
        %v1128 = vadd.f32 0.0, %v1127
        %1129 = vmatmul.f32.gmra.mxu0 %v1018
        %v1130 = vpop.f32.mrf.mxu0
        %v1131 = vadd.f32 0.0, %v1130
        %1132 = vmatmul.f32.gmra.mxu0 %v1021
        %v1133 = vpop.f32.mrf.mxu0
        %v1134 = vadd.f32 0.0, %v1133
        %1135 = vmatmul.f32.gmra.mxu0 %v1024
        %v1136 = vpop.f32.mrf.mxu0
        %v1137 = vadd.f32 0.0, %v1136
        %1138 = vdwg.mxu0
        %v1139 = vadd.f32 %v853, %v1044
        %v1140 = vadd.f32 %v854, %v1047
        %v1141 = vadd.f32 %v855, %v1050
        %v1142 = vadd.f32 %v856, %v1053
        %v1143 = vadd.f32 %v857, %v1056
        %v1144 = vadd.f32 %v858, %v1059
        %v1145 = vadd.f32 %v859, %v1062
        %v1146 = vadd.f32 %v860, %v1065
        %v1147 = vadd.f32 %v861, %v1068
        %v1148 = vadd.f32 %v862, %v1071
        %v1149 = vadd.f32 %v863, %v1074
        %v1150 = vadd.f32 %v864, %v1077
        %v1151 = vadd.f32 %v865, %v1080
        %v1152 = vadd.f32 %v866, %v1083
        %v1153 = vadd.f32 %v867, %v1086
        %v1154 = vadd.f32 %v868, %v1089
        %v1155 = vadd.f32 %v869, %v1092
        %v1156 = vadd.f32 %v870, %v1095
        %v1157 = vadd.f32 %v871, %v1098
        %v1158 = vadd.f32 %v872, %v1101
        %v1159 = vadd.f32 %v873, %v1104
        %v1160 = vadd.f32 %v874, %v1107
        %v1161 = vadd.f32 %v875, %v1110
        %v1162 = vadd.f32 %v876, %v1113
        %v1163 = vadd.f32 %v877, %v1116
        %v1164 = vadd.f32 %v878, %v1119
        %v1165 = vadd.f32 %v879, %v1122
        %v1166 = vadd.f32 %v880, %v1125
        %v1167 = vadd.f32 %v881, %v1128
        %v1168 = vadd.f32 %v882, %v1131
        %v1169 = vadd.f32 %v883, %v1134
        %v1170 = vadd.f32 %v884, %v1137
        %s1171 = scalar_lea.vmem %s1, 256
        %v1172 = vld [vmem:[%s1171] sm:$0xff]
        %v1173 = vld [vmem:[%s1171 + $0x8] sm:$0xff]
        %v1174 = vld [vmem:[%s1171 + $0x10] sm:$0xff]
        %v1175 = vld [vmem:[%s1171 + $0x18] sm:$0xff]
        %v1176 = vld [vmem:[%s1171 + $0x20] sm:$0xff]
        %v1177 = vld [vmem:[%s1171 + $0x28] sm:$0xff]
        %v1178 = vld [vmem:[%s1171 + $0x30] sm:$0xff]
        %v1179 = vld [vmem:[%s1171 + $0x38] sm:$0xff]
        %v1181 = vsel %vm223, %v917, 0
        %v1184 = vsel %vm223, %v918, 0
        %1186 = vmatpush.msra.mxu0 0.0
        %1187 = vmatpush.msra.mxu0 0.0
        %1188 = vmatpush.msra.mxu0 0.0
        %1189 = vmatpush.msra.mxu0 0.0
        %1190 = vmatpush.msra.mxu0 0.0
        %1191 = vmatpush.msra.mxu0 0.0
        %1192 = vmatpush.msra.mxu0 0.0
        %1193 = vmatpush.msra.mxu0 0.0
        %1194 = vmatpush.msra.mxu0 %v1179
        %1195 = vmatpush.msra.mxu0 %v1178
        %1196 = vmatpush.msra.mxu0 %v1177
        %1197 = vmatpush.msra.mxu0 %v1176
        %1198 = vmatpush.msra.mxu0 %v1175
        %1199 = vmatpush.msra.mxu0 %v1174
        %1200 = vmatpush.msra.mxu0 %v1173
        %1201 = vmatpush.msra.mxu0 %v1172
        %1202 = vmatmul.f32.gmra.mxu0 %v937
        %v1203 = vpop.f32.mrf.mxu0
        %v1204 = vadd.f32 0.0, %v1203
        %1205 = vmatmul.f32.gmra.mxu0 %v940
        %v1206 = vpop.f32.mrf.mxu0
        %v1207 = vadd.f32 0.0, %v1206
        %1208 = vmatmul.f32.gmra.mxu0 %v943
        %v1209 = vpop.f32.mrf.mxu0
        %v1210 = vadd.f32 0.0, %v1209
        %1211 = vmatmul.f32.gmra.mxu0 %v946
        %v1212 = vpop.f32.mrf.mxu0
        %v1213 = vadd.f32 0.0, %v1212
        %1214 = vmatmul.f32.gmra.mxu0 %v949
        %v1215 = vpop.f32.mrf.mxu0
        %v1216 = vadd.f32 0.0, %v1215
        %1217 = vmatmul.f32.gmra.mxu0 %v952
        %v1218 = vpop.f32.mrf.mxu0
        %v1219 = vadd.f32 0.0, %v1218
        %1220 = vmatmul.f32.gmra.mxu0 %v955
        %v1221 = vpop.f32.mrf.mxu0
        %v1222 = vadd.f32 0.0, %v1221
        %1223 = vmatmul.f32.gmra.mxu0 %v958
        %v1224 = vpop.f32.mrf.mxu0
        %v1225 = vadd.f32 0.0, %v1224
        %1226 = vmatmul.f32.gmra.mxu0 %v961
        %v1227 = vpop.f32.mrf.mxu0
        %v1228 = vadd.f32 0.0, %v1227
        %1229 = vmatmul.f32.gmra.mxu0 %v964
        %v1230 = vpop.f32.mrf.mxu0
        %v1231 = vadd.f32 0.0, %v1230
        %1232 = vmatmul.f32.gmra.mxu0 %v967
        %v1233 = vpop.f32.mrf.mxu0
        %v1234 = vadd.f32 0.0, %v1233
        %1235 = vmatmul.f32.gmra.mxu0 %v970
        %v1236 = vpop.f32.mrf.mxu0
        %v1237 = vadd.f32 0.0, %v1236
        %1238 = vmatmul.f32.gmra.mxu0 %v973
        %v1239 = vpop.f32.mrf.mxu0
        %v1240 = vadd.f32 0.0, %v1239
        %1241 = vmatmul.f32.gmra.mxu0 %v976
        %v1242 = vpop.f32.mrf.mxu0
        %v1243 = vadd.f32 0.0, %v1242
        %1244 = vmatmul.f32.gmra.mxu0 %v979
        %v1245 = vpop.f32.mrf.mxu0
        %v1246 = vadd.f32 0.0, %v1245
        %1247 = vmatmul.f32.gmra.mxu0 %v982
        %v1248 = vpop.f32.mrf.mxu0
        %v1249 = vadd.f32 0.0, %v1248
        %1250 = vmatmul.f32.gmra.mxu0 %v985
        %v1251 = vpop.f32.mrf.mxu0
        %v1252 = vadd.f32 0.0, %v1251
        %1253 = vmatmul.f32.gmra.mxu0 %v988
        %v1254 = vpop.f32.mrf.mxu0
        %v1255 = vadd.f32 0.0, %v1254
        %1256 = vmatmul.f32.gmra.mxu0 %v991
        %v1257 = vpop.f32.mrf.mxu0
        %v1258 = vadd.f32 0.0, %v1257
        %1259 = vmatmul.f32.gmra.mxu0 %v994
        %v1260 = vpop.f32.mrf.mxu0
        %v1261 = vadd.f32 0.0, %v1260
        %1262 = vmatmul.f32.gmra.mxu0 %v997
        %v1263 = vpop.f32.mrf.mxu0
        %v1264 = vadd.f32 0.0, %v1263
        %1265 = vmatmul.f32.gmra.mxu0 %v1000
        %v1266 = vpop.f32.mrf.mxu0
        %v1267 = vadd.f32 0.0, %v1266
        %1268 = vmatmul.f32.gmra.mxu0 %v1003
        %v1269 = vpop.f32.mrf.mxu0
        %v1270 = vadd.f32 0.0, %v1269
        %1271 = vmatmul.f32.gmra.mxu0 %v1006
        %v1272 = vpop.f32.mrf.mxu0
        %v1273 = vadd.f32 0.0, %v1272
        %1274 = vmatmul.f32.gmra.mxu0 %v1009
        %v1275 = vpop.f32.mrf.mxu0
        %v1276 = vadd.f32 0.0, %v1275
        %1277 = vmatmul.f32.gmra.mxu0 %v1012
        %v1278 = vpop.f32.mrf.mxu0
        %v1279 = vadd.f32 0.0, %v1278
        %1280 = vmatmul.f32.gmra.mxu0 %v1015
        %v1281 = vpop.f32.mrf.mxu0
        %v1282 = vadd.f32 0.0, %v1281
        %1283 = vmatmul.f32.gmra.mxu0 %v1018
        %v1284 = vpop.f32.mrf.mxu0
        %v1285 = vadd.f32 0.0, %v1284
        %1286 = vmatmul.f32.gmra.mxu0 %v1021
        %v1287 = vpop.f32.mrf.mxu0
        %v1288 = vadd.f32 0.0, %v1287
        %1289 = vmatmul.f32.gmra.mxu0 %v1024
        %v1290 = vpop.f32.mrf.mxu0
        %v1291 = vadd.f32 0.0, %v1290
        %1292 = vmatmul.f32.gmra.mxu0 %v1181
        %v1293 = vpop.f32.mrf.mxu0
        %v1294 = vadd.f32 0.0, %v1293
        %1295 = vmatmul.f32.gmra.mxu0 %v1184
        %v1296 = vpop.f32.mrf.mxu0
        %v1297 = vadd.f32 0.0, %v1296
        %1298 = vdwg.mxu0
        %v1299 = vadd.f32 %v1139, %v1204
        %v1300 = vadd.f32 %v1140, %v1207
        %v1301 = vadd.f32 %v1141, %v1210
        %v1302 = vadd.f32 %v1142, %v1213
        %v1303 = vadd.f32 %v1143, %v1216
        %v1304 = vadd.f32 %v1144, %v1219
        %v1305 = vadd.f32 %v1145, %v1222
        %v1306 = vadd.f32 %v1146, %v1225
        %v1307 = vadd.f32 %v1147, %v1228
        %v1308 = vadd.f32 %v1148, %v1231
        %v1309 = vadd.f32 %v1149, %v1234
        %v1310 = vadd.f32 %v1150, %v1237
        %v1311 = vadd.f32 %v1151, %v1240
        %v1312 = vadd.f32 %v1152, %v1243
        %v1313 = vadd.f32 %v1153, %v1246
        %v1314 = vadd.f32 %v1154, %v1249
        %v1315 = vadd.f32 %v1155, %v1252
        %v1316 = vadd.f32 %v1156, %v1255
        %v1317 = vadd.f32 %v1157, %v1258
        %v1318 = vadd.f32 %v1158, %v1261
        %v1319 = vadd.f32 %v1159, %v1264
        %v1320 = vadd.f32 %v1160, %v1267
        %v1321 = vadd.f32 %v1161, %v1270
        %v1322 = vadd.f32 %v1162, %v1273
        %v1323 = vadd.f32 %v1163, %v1276
        %v1324 = vadd.f32 %v1164, %v1279
        %v1325 = vadd.f32 %v1165, %v1282
        %v1326 = vadd.f32 %v1166, %v1285
        %v1327 = vadd.f32 %v1167, %v1288
        %v1328 = vadd.f32 %v1168, %v1291
        %v1329 = vadd.f32 %v1169, %v1294
        %v1330 = vadd.f32 %v1170, %v1297
        %s1331 = scalar_lea.vmem %s1, 448
        %v1332 = vld [vmem:[%s1331] sm:$0xff]
        %v1333 = vld [vmem:[%s1331 + $0x8] sm:$0xff]
        %v1334 = vld [vmem:[%s1331 + $0x10] sm:$0xff]
        %v1335 = vld [vmem:[%s1331 + $0x18] sm:$0xff]
        %v1336 = vld [vmem:[%s1331 + $0x20] sm:$0xff]
        %v1337 = vld [vmem:[%s1331 + $0x28] sm:$0xff]
        %v1338 = vld [vmem:[%s1331 + $0x30] sm:$0xff]
        %v1339 = vld [vmem:[%s1331 + $0x38] sm:$0xff]
        %v1341 = vsel %vm223, %v919, 0
        %v1344 = vsel %vm223, %v920, 0
        %1346 = vmatpush.msra.mxu0 0.0
        %1347 = vmatpush.msra.mxu0 0.0
        %1348 = vmatpush.msra.mxu0 0.0
        %1349 = vmatpush.msra.mxu0 0.0
        %1350 = vmatpush.msra.mxu0 0.0
        %1351 = vmatpush.msra.mxu0 0.0
        %1352 = vmatpush.msra.mxu0 0.0
        %1353 = vmatpush.msra.mxu0 0.0
        %1354 = vmatpush.msra.mxu0 %v1339
        %1355 = vmatpush.msra.mxu0 %v1338
        %1356 = vmatpush.msra.mxu0 %v1337
        %1357 = vmatpush.msra.mxu0 %v1336
        %1358 = vmatpush.msra.mxu0 %v1335
        %1359 = vmatpush.msra.mxu0 %v1334
        %1360 = vmatpush.msra.mxu0 %v1333
        %1361 = vmatpush.msra.mxu0 %v1332
        %1362 = vmatmul.f32.gmra.mxu0 %v943
        %v1363 = vpop.f32.mrf.mxu0
        %v1364 = vadd.f32 0.0, %v1363
        %1365 = vmatmul.f32.gmra.mxu0 %v946
        %v1366 = vpop.f32.mrf.mxu0
        %v1367 = vadd.f32 0.0, %v1366
        %1368 = vmatmul.f32.gmra.mxu0 %v949
        %v1369 = vpop.f32.mrf.mxu0
        %v1370 = vadd.f32 0.0, %v1369
        %1371 = vmatmul.f32.gmra.mxu0 %v952
        %v1372 = vpop.f32.mrf.mxu0
        %v1373 = vadd.f32 0.0, %v1372
        %1374 = vmatmul.f32.gmra.mxu0 %v955
        %v1375 = vpop.f32.mrf.mxu0
        %v1376 = vadd.f32 0.0, %v1375
        %1377 = vmatmul.f32.gmra.mxu0 %v958
        %v1378 = vpop.f32.mrf.mxu0
        %v1379 = vadd.f32 0.0, %v1378
        %1380 = vmatmul.f32.gmra.mxu0 %v961
        %v1381 = vpop.f32.mrf.mxu0
        %v1382 = vadd.f32 0.0, %v1381
        %1383 = vmatmul.f32.gmra.mxu0 %v964
        %v1384 = vpop.f32.mrf.mxu0
        %v1385 = vadd.f32 0.0, %v1384
        %1386 = vmatmul.f32.gmra.mxu0 %v967
        %v1387 = vpop.f32.mrf.mxu0
        %v1388 = vadd.f32 0.0, %v1387
        %1389 = vmatmul.f32.gmra.mxu0 %v970
        %v1390 = vpop.f32.mrf.mxu0
        %v1391 = vadd.f32 0.0, %v1390
        %1392 = vmatmul.f32.gmra.mxu0 %v973
        %v1393 = vpop.f32.mrf.mxu0
        %v1394 = vadd.f32 0.0, %v1393
        %1395 = vmatmul.f32.gmra.mxu0 %v976
        %v1396 = vpop.f32.mrf.mxu0
        %v1397 = vadd.f32 0.0, %v1396
        %1398 = vmatmul.f32.gmra.mxu0 %v979
        %v1399 = vpop.f32.mrf.mxu0
        %v1400 = vadd.f32 0.0, %v1399
        %1401 = vmatmul.f32.gmra.mxu0 %v982
        %v1402 = vpop.f32.mrf.mxu0
        %v1403 = vadd.f32 0.0, %v1402
        %1404 = vmatmul.f32.gmra.mxu0 %v985
        %v1405 = vpop.f32.mrf.mxu0
        %v1406 = vadd.f32 0.0, %v1405
        %1407 = vmatmul.f32.gmra.mxu0 %v988
        %v1408 = vpop.f32.mrf.mxu0
        %v1409 = vadd.f32 0.0, %v1408
        %1410 = vmatmul.f32.gmra.mxu0 %v991
        %v1411 = vpop.f32.mrf.mxu0
        %v1412 = vadd.f32 0.0, %v1411
        %1413 = vmatmul.f32.gmra.mxu0 %v994
        %v1414 = vpop.f32.mrf.mxu0
        %v1415 = vadd.f32 0.0, %v1414
        %1416 = vmatmul.f32.gmra.mxu0 %v997
        %v1417 = vpop.f32.mrf.mxu0
        %v1418 = vadd.f32 0.0, %v1417
        %1419 = vmatmul.f32.gmra.mxu0 %v1000
        %v1420 = vpop.f32.mrf.mxu0
        %v1421 = vadd.f32 0.0, %v1420
        %1422 = vmatmul.f32.gmra.mxu0 %v1003
        %v1423 = vpop.f32.mrf.mxu0
        %v1424 = vadd.f32 0.0, %v1423
        %1425 = vmatmul.f32.gmra.mxu0 %v1006
        %v1426 = vpop.f32.mrf.mxu0
        %v1427 = vadd.f32 0.0, %v1426
        %1428 = vmatmul.f32.gmra.mxu0 %v1009
        %v1429 = vpop.f32.mrf.mxu0
        %v1430 = vadd.f32 0.0, %v1429
        %1431 = vmatmul.f32.gmra.mxu0 %v1012
        %v1432 = vpop.f32.mrf.mxu0
        %v1433 = vadd.f32 0.0, %v1432
        %1434 = vmatmul.f32.gmra.mxu0 %v1015
        %v1435 = vpop.f32.mrf.mxu0
        %v1436 = vadd.f32 0.0, %v1435
        %1437 = vmatmul.f32.gmra.mxu0 %v1018
        %v1438 = vpop.f32.mrf.mxu0
        %v1439 = vadd.f32 0.0, %v1438
        %1440 = vmatmul.f32.gmra.mxu0 %v1021
        %v1441 = vpop.f32.mrf.mxu0
        %v1442 = vadd.f32 0.0, %v1441
        %1443 = vmatmul.f32.gmra.mxu0 %v1024
        %v1444 = vpop.f32.mrf.mxu0
        %v1445 = vadd.f32 0.0, %v1444
        %1446 = vmatmul.f32.gmra.mxu0 %v1181
        %v1447 = vpop.f32.mrf.mxu0
        %v1448 = vadd.f32 0.0, %v1447
        %1449 = vmatmul.f32.gmra.mxu0 %v1184
        %v1450 = vpop.f32.mrf.mxu0
        %v1451 = vadd.f32 0.0, %v1450
        %1452 = vmatmul.f32.gmra.mxu0 %v1341
        %v1453 = vpop.f32.mrf.mxu0
        %v1454 = vadd.f32 0.0, %v1453
        %1455 = vmatmul.f32.gmra.mxu0 %v1344
        %v1456 = vpop.f32.mrf.mxu0
        %v1457 = vadd.f32 0.0, %v1456
        %1458 = vdwg.mxu0
        %v1459 = vadd.f32 %v1299, %v1364
        %v1460 = vadd.f32 %v1300, %v1367
        %v1461 = vadd.f32 %v1301, %v1370
        %v1462 = vadd.f32 %v1302, %v1373
        %v1463 = vadd.f32 %v1303, %v1376
        %v1464 = vadd.f32 %v1304, %v1379
        %v1465 = vadd.f32 %v1305, %v1382
        %v1466 = vadd.f32 %v1306, %v1385
        %v1467 = vadd.f32 %v1307, %v1388
        %v1468 = vadd.f32 %v1308, %v1391
        %v1469 = vadd.f32 %v1309, %v1394
        %v1470 = vadd.f32 %v1310, %v1397
        %v1471 = vadd.f32 %v1311, %v1400
        %v1472 = vadd.f32 %v1312, %v1403
        %v1473 = vadd.f32 %v1313, %v1406
        %v1474 = vadd.f32 %v1314, %v1409
        %v1475 = vadd.f32 %v1315, %v1412
        %v1476 = vadd.f32 %v1316, %v1415
        %v1477 = vadd.f32 %v1317, %v1418
        %v1478 = vadd.f32 %v1318, %v1421
        %v1479 = vadd.f32 %v1319, %v1424
        %v1480 = vadd.f32 %v1320, %v1427
        %v1481 = vadd.f32 %v1321, %v1430
        %v1482 = vadd.f32 %v1322, %v1433
        %v1483 = vadd.f32 %v1323, %v1436
        %v1484 = vadd.f32 %v1324, %v1439
        %v1485 = vadd.f32 %v1325, %v1442
        %v1486 = vadd.f32 %v1326, %v1445
        %v1487 = vadd.f32 %v1327, %v1448
        %v1488 = vadd.f32 %v1328, %v1451
        %v1489 = vadd.f32 %v1329, %v1454
        %v1490 = vadd.f32 %v1330, %v1457
        %v1491 = vld [vmem:[#allocation2 + $0x2] sm:$0xff]
        %v1492 = vld [vmem:[#allocation2 + $0xa] sm:$0xff]
        %v1493 = vld [vmem:[#allocation2 + $0x1a] sm:$0xff]
        %v1494 = vld [vmem:[#allocation2 + $0x22] sm:$0xff]
        %v1495 = vld [vmem:[#allocation2 + $0x32] sm:$0xff]
        %v1496 = vld [vmem:[#allocation2 + $0x3a] sm:$0xff]
        %v1497 = vld [vmem:[#allocation2 + $0x4a] sm:$0xff]
        %v1498 = vld [vmem:[#allocation2 + $0x52] sm:$0xff]
        %v1499 = vld [vmem:[#allocation2 + $0x62] sm:$0xff]
        %v1500 = vld [vmem:[#allocation2 + $0x6a] sm:$0xff]
        %v1501 = vld [vmem:[#allocation2 + $0x7a] sm:$0xff]
        %v1502 = vld [vmem:[#allocation2 + $0x82] sm:$0xff]
        %v1503 = vld [vmem:[#allocation2 + $0x92] sm:$0xff]
        %v1504 = vld [vmem:[#allocation2 + $0x9a] sm:$0xff]
        %v1505 = vld [vmem:[#allocation2 + $0xaa] sm:$0xff]
        %v1506 = vld [vmem:[#allocation2 + $0xb2] sm:$0xff]
        %v1507 = vld [vmem:[#allocation2 + $0xc2] sm:$0xff]
        %v1508 = vld [vmem:[#allocation2 + $0xca] sm:$0xff]
        %v1509 = vld [vmem:[#allocation2 + $0xda] sm:$0xff]
        %v1510 = vld [vmem:[#allocation2 + $0xe2] sm:$0xff]
        %v1511 = vld [vmem:[#allocation2 + $0xf2] sm:$0xff]
        %v1512 = vld [vmem:[#allocation2 + $0xfa] sm:$0xff]
        %v1513 = vld [vmem:[#allocation2 + $0x10a] sm:$0xff]
        %v1514 = vld [vmem:[#allocation2 + $0x112] sm:$0xff]
        %v1515 = vld [vmem:[#allocation2 + $0x122] sm:$0xff]
        %v1516 = vld [vmem:[#allocation2 + $0x12a] sm:$0xff]
        %v1517 = vld [vmem:[#allocation2 + $0x13a] sm:$0xff]
        %v1518 = vld [vmem:[#allocation2 + $0x142] sm:$0xff]
        %v1519 = vld [vmem:[#allocation2 + $0x152] sm:$0xff]
        %v1520 = vld [vmem:[#allocation2 + $0x15a] sm:$0xff]
        %v1521 = vld [vmem:[#allocation2 + $0x16a] sm:$0xff]
        %v1522 = vld [vmem:[#allocation2 + $0x172] sm:$0xff]
        %v1523 = vld [vmem:[#allocation2 + $0x182] sm:$0xff]
        %v1524 = vld [vmem:[#allocation2 + $0x18a] sm:$0xff]
        %v1525 = vld [vmem:[#allocation2 + $0x19a] sm:$0xff]
        %v1526 = vld [vmem:[#allocation2 + $0x1a2] sm:$0xff]
        %s1527 = scalar_lea.vmem %s1, 128
        %v1528 = vld [vmem:[%s1527] sm:$0xff]
        %v1529 = vld [vmem:[%s1527 + $0x8] sm:$0xff]
        %v1530 = vld [vmem:[%s1527 + $0x10] sm:$0xff]
        %v1531 = vld [vmem:[%s1527 + $0x18] sm:$0xff]
        %v1532 = vld [vmem:[%s1527 + $0x20] sm:$0xff]
        %v1533 = vld [vmem:[%s1527 + $0x28] sm:$0xff]
        %v1534 = vld [vmem:[%s1527 + $0x30] sm:$0xff]
        %v1535 = vld [vmem:[%s1527 + $0x38] sm:$0xff]
        %v1537 = vsel %vm223, %v1491, 0
        %v1540 = vsel %vm223, %v1492, 0
        %v1543 = vsel %vm223, %v1493, 0
        %v1546 = vsel %vm223, %v1494, 0
        %v1549 = vsel %vm223, %v1495, 0
        %v1552 = vsel %vm223, %v1496, 0
        %v1555 = vsel %vm223, %v1497, 0
        %v1558 = vsel %vm223, %v1498, 0
        %v1561 = vsel %vm223, %v1499, 0
        %v1564 = vsel %vm223, %v1500, 0
        %v1567 = vsel %vm223, %v1501, 0
        %v1570 = vsel %vm223, %v1502, 0
        %v1573 = vsel %vm223, %v1503, 0
        %v1576 = vsel %vm223, %v1504, 0
        %v1579 = vsel %vm223, %v1505, 0
        %v1582 = vsel %vm223, %v1506, 0
        %v1585 = vsel %vm223, %v1507, 0
        %v1588 = vsel %vm223, %v1508, 0
        %v1591 = vsel %vm223, %v1509, 0
        %v1594 = vsel %vm223, %v1510, 0
        %v1597 = vsel %vm223, %v1511, 0
        %v1600 = vsel %vm223, %v1512, 0
        %v1603 = vsel %vm223, %v1513, 0
        %v1606 = vsel %vm223, %v1514, 0
        %v1609 = vsel %vm223, %v1515, 0
        %v1612 = vsel %vm223, %v1516, 0
        %v1615 = vsel %vm223, %v1517, 0
        %v1618 = vsel %vm223, %v1518, 0
        %v1621 = vsel %vm223, %v1519, 0
        %v1624 = vsel %vm223, %v1520, 0
        %v1627 = vsel %vm223, %v1521, 0
        %v1630 = vsel %vm223, %v1522, 0
        %1632 = vmatpush.msra.mxu0 0.0
        %1633 = vmatpush.msra.mxu0 0.0
        %1634 = vmatpush.msra.mxu0 0.0
        %1635 = vmatpush.msra.mxu0 0.0
        %1636 = vmatpush.msra.mxu0 0.0
        %1637 = vmatpush.msra.mxu0 0.0
        %1638 = vmatpush.msra.mxu0 0.0
        %1639 = vmatpush.msra.mxu0 0.0
        %1640 = vmatpush.msra.mxu0 %v1535
        %1641 = vmatpush.msra.mxu0 %v1534
        %1642 = vmatpush.msra.mxu0 %v1533
        %1643 = vmatpush.msra.mxu0 %v1532
        %1644 = vmatpush.msra.mxu0 %v1531
        %1645 = vmatpush.msra.mxu0 %v1530
        %1646 = vmatpush.msra.mxu0 %v1529
        %1647 = vmatpush.msra.mxu0 %v1528
        %1648 = vmatmul.f32.gmra.mxu0 %v1537
        %v1649 = vpop.f32.mrf.mxu0
        %v1650 = vadd.f32 0.0, %v1649
        %1651 = vmatmul.f32.gmra.mxu0 %v1540
        %v1652 = vpop.f32.mrf.mxu0
        %v1653 = vadd.f32 0.0, %v1652
        %1654 = vmatmul.f32.gmra.mxu0 %v1543
        %v1655 = vpop.f32.mrf.mxu0
        %v1656 = vadd.f32 0.0, %v1655
        %1657 = vmatmul.f32.gmra.mxu0 %v1546
        %v1658 = vpop.f32.mrf.mxu0
        %v1659 = vadd.f32 0.0, %v1658
        %1660 = vmatmul.f32.gmra.mxu0 %v1549
        %v1661 = vpop.f32.mrf.mxu0
        %v1662 = vadd.f32 0.0, %v1661
        %1663 = vmatmul.f32.gmra.mxu0 %v1552
        %v1664 = vpop.f32.mrf.mxu0
        %v1665 = vadd.f32 0.0, %v1664
        %1666 = vmatmul.f32.gmra.mxu0 %v1555
        %v1667 = vpop.f32.mrf.mxu0
        %v1668 = vadd.f32 0.0, %v1667
        %1669 = vmatmul.f32.gmra.mxu0 %v1558
        %v1670 = vpop.f32.mrf.mxu0
        %v1671 = vadd.f32 0.0, %v1670
        %1672 = vmatmul.f32.gmra.mxu0 %v1561
        %v1673 = vpop.f32.mrf.mxu0
        %v1674 = vadd.f32 0.0, %v1673
        %1675 = vmatmul.f32.gmra.mxu0 %v1564
        %v1676 = vpop.f32.mrf.mxu0
        %v1677 = vadd.f32 0.0, %v1676
        %1678 = vmatmul.f32.gmra.mxu0 %v1567
        %v1679 = vpop.f32.mrf.mxu0
        %v1680 = vadd.f32 0.0, %v1679
        %1681 = vmatmul.f32.gmra.mxu0 %v1570
        %v1682 = vpop.f32.mrf.mxu0
        %v1683 = vadd.f32 0.0, %v1682
        %1684 = vmatmul.f32.gmra.mxu0 %v1573
        %v1685 = vpop.f32.mrf.mxu0
        %v1686 = vadd.f32 0.0, %v1685
        %1687 = vmatmul.f32.gmra.mxu0 %v1576
        %v1688 = vpop.f32.mrf.mxu0
        %v1689 = vadd.f32 0.0, %v1688
        %1690 = vmatmul.f32.gmra.mxu0 %v1579
        %v1691 = vpop.f32.mrf.mxu0
        %v1692 = vadd.f32 0.0, %v1691
        %1693 = vmatmul.f32.gmra.mxu0 %v1582
        %v1694 = vpop.f32.mrf.mxu0
        %v1695 = vadd.f32 0.0, %v1694
        %1696 = vmatmul.f32.gmra.mxu0 %v1585
        %v1697 = vpop.f32.mrf.mxu0
        %v1698 = vadd.f32 0.0, %v1697
        %1699 = vmatmul.f32.gmra.mxu0 %v1588
        %v1700 = vpop.f32.mrf.mxu0
        %v1701 = vadd.f32 0.0, %v1700
        %1702 = vmatmul.f32.gmra.mxu0 %v1591
        %v1703 = vpop.f32.mrf.mxu0
        %v1704 = vadd.f32 0.0, %v1703
        %1705 = vmatmul.f32.gmra.mxu0 %v1594
        %v1706 = vpop.f32.mrf.mxu0
        %v1707 = vadd.f32 0.0, %v1706
        %1708 = vmatmul.f32.gmra.mxu0 %v1597
        %v1709 = vpop.f32.mrf.mxu0
        %v1710 = vadd.f32 0.0, %v1709
        %1711 = vmatmul.f32.gmra.mxu0 %v1600
        %v1712 = vpop.f32.mrf.mxu0
        %v1713 = vadd.f32 0.0, %v1712
        %1714 = vmatmul.f32.gmra.mxu0 %v1603
        %v1715 = vpop.f32.mrf.mxu0
        %v1716 = vadd.f32 0.0, %v1715
        %1717 = vmatmul.f32.gmra.mxu0 %v1606
        %v1718 = vpop.f32.mrf.mxu0
        %v1719 = vadd.f32 0.0, %v1718
        %1720 = vmatmul.f32.gmra.mxu0 %v1609
        %v1721 = vpop.f32.mrf.mxu0
        %v1722 = vadd.f32 0.0, %v1721
        %1723 = vmatmul.f32.gmra.mxu0 %v1612
        %v1724 = vpop.f32.mrf.mxu0
        %v1725 = vadd.f32 0.0, %v1724
        %1726 = vmatmul.f32.gmra.mxu0 %v1615
        %v1727 = vpop.f32.mrf.mxu0
        %v1728 = vadd.f32 0.0, %v1727
        %1729 = vmatmul.f32.gmra.mxu0 %v1618
        %v1730 = vpop.f32.mrf.mxu0
        %v1731 = vadd.f32 0.0, %v1730
        %1732 = vmatmul.f32.gmra.mxu0 %v1621
        %v1733 = vpop.f32.mrf.mxu0
        %v1734 = vadd.f32 0.0, %v1733
        %1735 = vmatmul.f32.gmra.mxu0 %v1624
        %v1736 = vpop.f32.mrf.mxu0
        %v1737 = vadd.f32 0.0, %v1736
        %1738 = vmatmul.f32.gmra.mxu0 %v1627
        %v1739 = vpop.f32.mrf.mxu0
        %v1740 = vadd.f32 0.0, %v1739
        %1741 = vmatmul.f32.gmra.mxu0 %v1630
        %v1742 = vpop.f32.mrf.mxu0
        %v1743 = vadd.f32 0.0, %v1742
        %1744 = vdwg.mxu0
        %v1745 = vadd.f32 %v1459, %v1650
        %v1746 = vadd.f32 %v1460, %v1653
        %v1747 = vadd.f32 %v1461, %v1656
        %v1748 = vadd.f32 %v1462, %v1659
        %v1749 = vadd.f32 %v1463, %v1662
        %v1750 = vadd.f32 %v1464, %v1665
        %v1751 = vadd.f32 %v1465, %v1668
        %v1752 = vadd.f32 %v1466, %v1671
        %v1753 = vadd.f32 %v1467, %v1674
        %v1754 = vadd.f32 %v1468, %v1677
        %v1755 = vadd.f32 %v1469, %v1680
        %v1756 = vadd.f32 %v1470, %v1683
        %v1757 = vadd.f32 %v1471, %v1686
        %v1758 = vadd.f32 %v1472, %v1689
        %v1759 = vadd.f32 %v1473, %v1692
        %v1760 = vadd.f32 %v1474, %v1695
        %v1761 = vadd.f32 %v1475, %v1698
        %v1762 = vadd.f32 %v1476, %v1701
        %v1763 = vadd.f32 %v1477, %v1704
        %v1764 = vadd.f32 %v1478, %v1707
        %v1765 = vadd.f32 %v1479, %v1710
        %v1766 = vadd.f32 %v1480, %v1713
        %v1767 = vadd.f32 %v1481, %v1716
        %v1768 = vadd.f32 %v1482, %v1719
        %v1769 = vadd.f32 %v1483, %v1722
        %v1770 = vadd.f32 %v1484, %v1725
        %v1771 = vadd.f32 %v1485, %v1728
        %v1772 = vadd.f32 %v1486, %v1731
        %v1773 = vadd.f32 %v1487, %v1734
        %v1774 = vadd.f32 %v1488, %v1737
        %v1775 = vadd.f32 %v1489, %v1740
        %v1776 = vadd.f32 %v1490, %v1743
        %s1777 = scalar_lea.vmem %s1, 320
        %v1778 = vld [vmem:[%s1777] sm:$0xff]
        %v1779 = vld [vmem:[%s1777 + $0x8] sm:$0xff]
        %v1780 = vld [vmem:[%s1777 + $0x10] sm:$0xff]
        %v1781 = vld [vmem:[%s1777 + $0x18] sm:$0xff]
        %v1782 = vld [vmem:[%s1777 + $0x20] sm:$0xff]
        %v1783 = vld [vmem:[%s1777 + $0x28] sm:$0xff]
        %v1784 = vld [vmem:[%s1777 + $0x30] sm:$0xff]
        %v1785 = vld [vmem:[%s1777 + $0x38] sm:$0xff]
        %v1787 = vsel %vm223, %v1523, 0
        %v1790 = vsel %vm223, %v1524, 0
        %1792 = vmatpush.msra.mxu0 0.0
        %1793 = vmatpush.msra.mxu0 0.0
        %1794 = vmatpush.msra.mxu0 0.0
        %1795 = vmatpush.msra.mxu0 0.0
        %1796 = vmatpush.msra.mxu0 0.0
        %1797 = vmatpush.msra.mxu0 0.0
        %1798 = vmatpush.msra.mxu0 0.0
        %1799 = vmatpush.msra.mxu0 0.0
        %1800 = vmatpush.msra.mxu0 %v1785
        %1801 = vmatpush.msra.mxu0 %v1784
        %1802 = vmatpush.msra.mxu0 %v1783
        %1803 = vmatpush.msra.mxu0 %v1782
        %1804 = vmatpush.msra.mxu0 %v1781
        %1805 = vmatpush.msra.mxu0 %v1780
        %1806 = vmatpush.msra.mxu0 %v1779
        %1807 = vmatpush.msra.mxu0 %v1778
        %1808 = vmatmul.f32.gmra.mxu0 %v1543
        %v1809 = vpop.f32.mrf.mxu0
        %v1810 = vadd.f32 0.0, %v1809
        %1811 = vmatmul.f32.gmra.mxu0 %v1546
        %v1812 = vpop.f32.mrf.mxu0
        %v1813 = vadd.f32 0.0, %v1812
        %1814 = vmatmul.f32.gmra.mxu0 %v1549
        %v1815 = vpop.f32.mrf.mxu0
        %v1816 = vadd.f32 0.0, %v1815
        %1817 = vmatmul.f32.gmra.mxu0 %v1552
        %v1818 = vpop.f32.mrf.mxu0
        %v1819 = vadd.f32 0.0, %v1818
        %1820 = vmatmul.f32.gmra.mxu0 %v1555
        %v1821 = vpop.f32.mrf.mxu0
        %v1822 = vadd.f32 0.0, %v1821
        %1823 = vmatmul.f32.gmra.mxu0 %v1558
        %v1824 = vpop.f32.mrf.mxu0
        %v1825 = vadd.f32 0.0, %v1824
        %1826 = vmatmul.f32.gmra.mxu0 %v1561
        %v1827 = vpop.f32.mrf.mxu0
        %v1828 = vadd.f32 0.0, %v1827
        %1829 = vmatmul.f32.gmra.mxu0 %v1564
        %v1830 = vpop.f32.mrf.mxu0
        %v1831 = vadd.f32 0.0, %v1830
        %1832 = vmatmul.f32.gmra.mxu0 %v1567
        %v1833 = vpop.f32.mrf.mxu0
        %v1834 = vadd.f32 0.0, %v1833
        %1835 = vmatmul.f32.gmra.mxu0 %v1570
        %v1836 = vpop.f32.mrf.mxu0
        %v1837 = vadd.f32 0.0, %v1836
        %1838 = vmatmul.f32.gmra.mxu0 %v1573
        %v1839 = vpop.f32.mrf.mxu0
        %v1840 = vadd.f32 0.0, %v1839
        %1841 = vmatmul.f32.gmra.mxu0 %v1576
        %v1842 = vpop.f32.mrf.mxu0
        %v1843 = vadd.f32 0.0, %v1842
        %1844 = vmatmul.f32.gmra.mxu0 %v1579
        %v1845 = vpop.f32.mrf.mxu0
        %v1846 = vadd.f32 0.0, %v1845
        %1847 = vmatmul.f32.gmra.mxu0 %v1582
        %v1848 = vpop.f32.mrf.mxu0
        %v1849 = vadd.f32 0.0, %v1848
        %1850 = vmatmul.f32.gmra.mxu0 %v1585
        %v1851 = vpop.f32.mrf.mxu0
        %v1852 = vadd.f32 0.0, %v1851
        %1853 = vmatmul.f32.gmra.mxu0 %v1588
        %v1854 = vpop.f32.mrf.mxu0
        %v1855 = vadd.f32 0.0, %v1854
        %1856 = vmatmul.f32.gmra.mxu0 %v1591
        %v1857 = vpop.f32.mrf.mxu0
        %v1858 = vadd.f32 0.0, %v1857
        %1859 = vmatmul.f32.gmra.mxu0 %v1594
        %v1860 = vpop.f32.mrf.mxu0
        %v1861 = vadd.f32 0.0, %v1860
        %1862 = vmatmul.f32.gmra.mxu0 %v1597
        %v1863 = vpop.f32.mrf.mxu0
        %v1864 = vadd.f32 0.0, %v1863
        %1865 = vmatmul.f32.gmra.mxu0 %v1600
        %v1866 = vpop.f32.mrf.mxu0
        %v1867 = vadd.f32 0.0, %v1866
        %1868 = vmatmul.f32.gmra.mxu0 %v1603
        %v1869 = vpop.f32.mrf.mxu0
        %v1870 = vadd.f32 0.0, %v1869
        %1871 = vmatmul.f32.gmra.mxu0 %v1606
        %v1872 = vpop.f32.mrf.mxu0
        %v1873 = vadd.f32 0.0, %v1872
        %1874 = vmatmul.f32.gmra.mxu0 %v1609
        %v1875 = vpop.f32.mrf.mxu0
        %v1876 = vadd.f32 0.0, %v1875
        %1877 = vmatmul.f32.gmra.mxu0 %v1612
        %v1878 = vpop.f32.mrf.mxu0
        %v1879 = vadd.f32 0.0, %v1878
        %1880 = vmatmul.f32.gmra.mxu0 %v1615
        %v1881 = vpop.f32.mrf.mxu0
        %v1882 = vadd.f32 0.0, %v1881
        %1883 = vmatmul.f32.gmra.mxu0 %v1618
        %v1884 = vpop.f32.mrf.mxu0
        %v1885 = vadd.f32 0.0, %v1884
        %1886 = vmatmul.f32.gmra.mxu0 %v1621
        %v1887 = vpop.f32.mrf.mxu0
        %v1888 = vadd.f32 0.0, %v1887
        %1889 = vmatmul.f32.gmra.mxu0 %v1624
        %v1890 = vpop.f32.mrf.mxu0
        %v1891 = vadd.f32 0.0, %v1890
        %1892 = vmatmul.f32.gmra.mxu0 %v1627
        %v1893 = vpop.f32.mrf.mxu0
        %v1894 = vadd.f32 0.0, %v1893
        %1895 = vmatmul.f32.gmra.mxu0 %v1630
        %v1896 = vpop.f32.mrf.mxu0
        %v1897 = vadd.f32 0.0, %v1896
        %1898 = vmatmul.f32.gmra.mxu0 %v1787
        %v1899 = vpop.f32.mrf.mxu0
        %v1900 = vadd.f32 0.0, %v1899
        %1901 = vmatmul.f32.gmra.mxu0 %v1790
        %v1902 = vpop.f32.mrf.mxu0
        %v1903 = vadd.f32 0.0, %v1902
        %1904 = vdwg.mxu0
        %v1905 = vadd.f32 %v1745, %v1810
        %v1906 = vadd.f32 %v1746, %v1813
        %v1907 = vadd.f32 %v1747, %v1816
        %v1908 = vadd.f32 %v1748, %v1819
        %v1909 = vadd.f32 %v1749, %v1822
        %v1910 = vadd.f32 %v1750, %v1825
        %v1911 = vadd.f32 %v1751, %v1828
        %v1912 = vadd.f32 %v1752, %v1831
        %v1913 = vadd.f32 %v1753, %v1834
        %v1914 = vadd.f32 %v1754, %v1837
        %v1915 = vadd.f32 %v1755, %v1840
        %v1916 = vadd.f32 %v1756, %v1843
        %v1917 = vadd.f32 %v1757, %v1846
        %v1918 = vadd.f32 %v1758, %v1849
        %v1919 = vadd.f32 %v1759, %v1852
        %v1920 = vadd.f32 %v1760, %v1855
        %v1921 = vadd.f32 %v1761, %v1858
        %v1922 = vadd.f32 %v1762, %v1861
        %v1923 = vadd.f32 %v1763, %v1864
        %v1924 = vadd.f32 %v1764, %v1867
        %v1925 = vadd.f32 %v1765, %v1870
        %v1926 = vadd.f32 %v1766, %v1873
        %v1927 = vadd.f32 %v1767, %v1876
        %v1928 = vadd.f32 %v1768, %v1879
        %v1929 = vadd.f32 %v1769, %v1882
        %v1930 = vadd.f32 %v1770, %v1885
        %v1931 = vadd.f32 %v1771, %v1888
        %v1932 = vadd.f32 %v1772, %v1891
        %v1933 = vadd.f32 %v1773, %v1894
        %v1934 = vadd.f32 %v1774, %v1897
        %v1935 = vadd.f32 %v1775, %v1900
        %v1936 = vadd.f32 %v1776, %v1903
        %s1937 = scalar_lea.vmem %s1, 512
        %v1938 = vld [vmem:[%s1937] sm:$0xff]
        %v1939 = vld [vmem:[%s1937 + $0x8] sm:$0xff]
        %v1940 = vld [vmem:[%s1937 + $0x10] sm:$0xff]
        %v1941 = vld [vmem:[%s1937 + $0x18] sm:$0xff]
        %v1942 = vld [vmem:[%s1937 + $0x20] sm:$0xff]
        %v1943 = vld [vmem:[%s1937 + $0x28] sm:$0xff]
        %v1944 = vld [vmem:[%s1937 + $0x30] sm:$0xff]
        %v1945 = vld [vmem:[%s1937 + $0x38] sm:$0xff]
        %v1947 = vsel %vm223, %v1525, 0
        %v1950 = vsel %vm223, %v1526, 0
        %1952 = vmatpush.msra.mxu0 0.0
        %1953 = vmatpush.msra.mxu0 0.0
        %1954 = vmatpush.msra.mxu0 0.0
        %1955 = vmatpush.msra.mxu0 0.0
        %1956 = vmatpush.msra.mxu0 0.0
        %1957 = vmatpush.msra.mxu0 0.0
        %1958 = vmatpush.msra.mxu0 0.0
        %1959 = vmatpush.msra.mxu0 0.0
        %1960 = vmatpush.msra.mxu0 %v1945
        %1961 = vmatpush.msra.mxu0 %v1944
        %1962 = vmatpush.msra.mxu0 %v1943
        %1963 = vmatpush.msra.mxu0 %v1942
        %1964 = vmatpush.msra.mxu0 %v1941
        %1965 = vmatpush.msra.mxu0 %v1940
        %1966 = vmatpush.msra.mxu0 %v1939
        %1967 = vmatpush.msra.mxu0 %v1938
        %1968 = vmatmul.f32.gmra.mxu0 %v1549
        %v1969 = vpop.f32.mrf.mxu0
        %v1970 = vadd.f32 0.0, %v1969
        %1971 = vmatmul.f32.gmra.mxu0 %v1552
        %v1972 = vpop.f32.mrf.mxu0
        %v1973 = vadd.f32 0.0, %v1972
        %1974 = vmatmul.f32.gmra.mxu0 %v1555
        %v1975 = vpop.f32.mrf.mxu0
        %v1976 = vadd.f32 0.0, %v1975
        %1977 = vmatmul.f32.gmra.mxu0 %v1558
        %v1978 = vpop.f32.mrf.mxu0
        %v1979 = vadd.f32 0.0, %v1978
        %1980 = vmatmul.f32.gmra.mxu0 %v1561
        %v1981 = vpop.f32.mrf.mxu0
        %v1982 = vadd.f32 0.0, %v1981
        %1983 = vmatmul.f32.gmra.mxu0 %v1564
        %v1984 = vpop.f32.mrf.mxu0
        %v1985 = vadd.f32 0.0, %v1984
        %1986 = vmatmul.f32.gmra.mxu0 %v1567
        %v1987 = vpop.f32.mrf.mxu0
        %v1988 = vadd.f32 0.0, %v1987
        %1989 = vmatmul.f32.gmra.mxu0 %v1570
        %v1990 = vpop.f32.mrf.mxu0
        %v1991 = vadd.f32 0.0, %v1990
        %1992 = vmatmul.f32.gmra.mxu0 %v1573
        %v1993 = vpop.f32.mrf.mxu0
        %v1994 = vadd.f32 0.0, %v1993
        %1995 = vmatmul.f32.gmra.mxu0 %v1576
        %v1996 = vpop.f32.mrf.mxu0
        %v1997 = vadd.f32 0.0, %v1996
        %1998 = vmatmul.f32.gmra.mxu0 %v1579
        %v1999 = vpop.f32.mrf.mxu0
        %v2000 = vadd.f32 0.0, %v1999
        %2001 = vmatmul.f32.gmra.mxu0 %v1582
        %v2002 = vpop.f32.mrf.mxu0
        %v2003 = vadd.f32 0.0, %v2002
        %2004 = vmatmul.f32.gmra.mxu0 %v1585
        %v2005 = vpop.f32.mrf.mxu0
        %v2006 = vadd.f32 0.0, %v2005
        %2007 = vmatmul.f32.gmra.mxu0 %v1588
        %v2008 = vpop.f32.mrf.mxu0
        %v2009 = vadd.f32 0.0, %v2008
        %2010 = vmatmul.f32.gmra.mxu0 %v1591
        %v2011 = vpop.f32.mrf.mxu0
        %v2012 = vadd.f32 0.0, %v2011
        %2013 = vmatmul.f32.gmra.mxu0 %v1594
        %v2014 = vpop.f32.mrf.mxu0
        %v2015 = vadd.f32 0.0, %v2014
        %2016 = vmatmul.f32.gmra.mxu0 %v1597
        %v2017 = vpop.f32.mrf.mxu0
        %v2018 = vadd.f32 0.0, %v2017
        %2019 = vmatmul.f32.gmra.mxu0 %v1600
        %v2020 = vpop.f32.mrf.mxu0
        %v2021 = vadd.f32 0.0, %v2020
        %2022 = vmatmul.f32.gmra.mxu0 %v1603
        %v2023 = vpop.f32.mrf.mxu0
        %v2024 = vadd.f32 0.0, %v2023
        %2025 = vmatmul.f32.gmra.mxu0 %v1606
        %v2026 = vpop.f32.mrf.mxu0
        %v2027 = vadd.f32 0.0, %v2026
        %2028 = vmatmul.f32.gmra.mxu0 %v1609
        %v2029 = vpop.f32.mrf.mxu0
        %v2030 = vadd.f32 0.0, %v2029
        %2031 = vmatmul.f32.gmra.mxu0 %v1612
        %v2032 = vpop.f32.mrf.mxu0
        %v2033 = vadd.f32 0.0, %v2032
        %2034 = vmatmul.f32.gmra.mxu0 %v1615
        %v2035 = vpop.f32.mrf.mxu0
        %v2036 = vadd.f32 0.0, %v2035
        %2037 = vmatmul.f32.gmra.mxu0 %v1618
        %v2038 = vpop.f32.mrf.mxu0
        %v2039 = vadd.f32 0.0, %v2038
        %2040 = vmatmul.f32.gmra.mxu0 %v1621
        %v2041 = vpop.f32.mrf.mxu0
        %v2042 = vadd.f32 0.0, %v2041
        %2043 = vmatmul.f32.gmra.mxu0 %v1624
        %v2044 = vpop.f32.mrf.mxu0
        %v2045 = vadd.f32 0.0, %v2044
        %2046 = vmatmul.f32.gmra.mxu0 %v1627
        %v2047 = vpop.f32.mrf.mxu0
        %v2048 = vadd.f32 0.0, %v2047
        %2049 = vmatmul.f32.gmra.mxu0 %v1630
        %v2050 = vpop.f32.mrf.mxu0
        %v2051 = vadd.f32 0.0, %v2050
        %2052 = vmatmul.f32.gmra.mxu0 %v1787
        %v2053 = vpop.f32.mrf.mxu0
        %v2054 = vadd.f32 0.0, %v2053
        %2055 = vmatmul.f32.gmra.mxu0 %v1790
        %v2056 = vpop.f32.mrf.mxu0
        %v2057 = vadd.f32 0.0, %v2056
        %2058 = vmatmul.f32.gmra.mxu0 %v1947
        %v2059 = vpop.f32.mrf.mxu0
        %v2060 = vadd.f32 0.0, %v2059
        %2061 = vmatmul.f32.gmra.mxu0 %v1950
        %v2062 = vpop.f32.mrf.mxu0
        %v2063 = vadd.f32 0.0, %v2062
        %2064 = vdwg.mxu0
        %v2065 = vadd.f32 %v1905, %v1970
        %v2066 = vadd.f32 %v1906, %v1973
        %v2067 = vadd.f32 %v1907, %v1976
        %v2068 = vadd.f32 %v1908, %v1979
        %v2069 = vadd.f32 %v1909, %v1982
        %v2070 = vadd.f32 %v1910, %v1985
        %v2071 = vadd.f32 %v1911, %v1988
        %v2072 = vadd.f32 %v1912, %v1991
        %v2073 = vadd.f32 %v1913, %v1994
        %v2074 = vadd.f32 %v1914, %v1997
        %v2075 = vadd.f32 %v1915, %v2000
        %v2076 = vadd.f32 %v1916, %v2003
        %v2077 = vadd.f32 %v1917, %v2006
        %v2078 = vadd.f32 %v1918, %v2009
        %v2079 = vadd.f32 %v1919, %v2012
        %v2080 = vadd.f32 %v1920, %v2015
        %v2081 = vadd.f32 %v1921, %v2018
        %v2082 = vadd.f32 %v1922, %v2021
        %v2083 = vadd.f32 %v1923, %v2024
        %v2084 = vadd.f32 %v1924, %v2027
        %v2085 = vadd.f32 %v1925, %v2030
        %v2086 = vadd.f32 %v1926, %v2033
        %v2087 = vadd.f32 %v1927, %v2036
        %v2088 = vadd.f32 %v1928, %v2039
        %v2089 = vadd.f32 %v1929, %v2042
        %v2090 = vadd.f32 %v1930, %v2045
        %v2091 = vadd.f32 %v1931, %v2048
        %v2092 = vadd.f32 %v1932, %v2051
        %v2093 = vadd.f32 %v1933, %v2054
        %v2094 = vadd.f32 %v1934, %v2057
        %v2095 = vadd.f32 %v1935, %v2060
        %v2096 = vadd.f32 %v1936, %v2063
        %v2097 = vld [vmem:[%s2] sm:$0x1]
        %v2099 = vperm.slane %v2097, 0
        %v2101 = vadd.f32 %v2065, %v2099
        %v2102 = vadd.f32 %v2066, %v2099
        %v2103 = vadd.f32 %v2067, %v2099
        %v2104 = vadd.f32 %v2068, %v2099
        %v2105 = vadd.f32 %v2069, %v2099
        %v2106 = vadd.f32 %v2070, %v2099
        %v2107 = vadd.f32 %v2071, %v2099
        %v2108 = vadd.f32 %v2072, %v2099
        %v2109 = vadd.f32 %v2073, %v2099
        %v2110 = vadd.f32 %v2074, %v2099
        %v2111 = vadd.f32 %v2075, %v2099
        %v2112 = vadd.f32 %v2076, %v2099
        %v2113 = vadd.f32 %v2077, %v2099
        %v2114 = vadd.f32 %v2078, %v2099
        %v2115 = vadd.f32 %v2079, %v2099
        %v2116 = vadd.f32 %v2080, %v2099
        %v2117 = vadd.f32 %v2081, %v2099
        %v2118 = vadd.f32 %v2082, %v2099
        %v2119 = vadd.f32 %v2083, %v2099
        %v2120 = vadd.f32 %v2084, %v2099
        %v2121 = vadd.f32 %v2085, %v2099
        %v2122 = vadd.f32 %v2086, %v2099
        %v2123 = vadd.f32 %v2087, %v2099
        %v2124 = vadd.f32 %v2088, %v2099
        %v2125 = vadd.f32 %v2089, %v2099
        %v2126 = vadd.f32 %v2090, %v2099
        %v2127 = vadd.f32 %v2091, %v2099
        %v2128 = vadd.f32 %v2092, %v2099
        %v2129 = vadd.f32 %v2093, %v2099
        %v2130 = vadd.f32 %v2094, %v2099
        %v2131 = vadd.f32 %v2095, %v2099
        %v2132 = vadd.f32 %v2096, %v2099
        %v2133 = vmax.f32 %v2101, 0.0
        %v2134 = vmax.f32 %v2102, 0.0
        %v2135 = vmax.f32 %v2103, 0.0
        %v2136 = vmax.f32 %v2104, 0.0
        %v2137 = vmax.f32 %v2105, 0.0
        %v2138 = vmax.f32 %v2106, 0.0
        %v2139 = vmax.f32 %v2107, 0.0
        %v2140 = vmax.f32 %v2108, 0.0
        %v2141 = vmax.f32 %v2109, 0.0
        %v2142 = vmax.f32 %v2110, 0.0
        %v2143 = vmax.f32 %v2111, 0.0
        %v2144 = vmax.f32 %v2112, 0.0
        %v2145 = vmax.f32 %v2113, 0.0
        %v2146 = vmax.f32 %v2114, 0.0
        %v2147 = vmax.f32 %v2115, 0.0
        %v2148 = vmax.f32 %v2116, 0.0
        %v2149 = vmax.f32 %v2117, 0.0
        %v2150 = vmax.f32 %v2118, 0.0
        %v2151 = vmax.f32 %v2119, 0.0
        %v2152 = vmax.f32 %v2120, 0.0
        %v2153 = vmax.f32 %v2121, 0.0
        %v2154 = vmax.f32 %v2122, 0.0
        %v2155 = vmax.f32 %v2123, 0.0
        %v2156 = vmax.f32 %v2124, 0.0
        %v2157 = vmax.f32 %v2125, 0.0
        %v2158 = vmax.f32 %v2126, 0.0
        %v2159 = vmax.f32 %v2127, 0.0
        %v2160 = vmax.f32 %v2128, 0.0
        %v2161 = vmax.f32 %v2129, 0.0
        %v2162 = vmax.f32 %v2130, 0.0
        %v2163 = vmax.f32 %v2131, 0.0
        %v2164 = vmax.f32 %v2132, 0.0
        %2165 = vst.msk [vmem:[%s311 + $0x1] sm:$0xff] %vm223, %v2133
        %2166 = vst.msk [vmem:[%s311 + $0x9] sm:$0xff] %vm223, %v2134
        %2167 = vst.msk [vmem:[%s311 + $0x19] sm:$0xff] %vm223, %v2135
        %2168 = vst.msk [vmem:[%s311 + $0x21] sm:$0xff] %vm223, %v2136
        %2169 = vst.msk [vmem:[%s311 + $0x31] sm:$0xff] %vm223, %v2137
        %2170 = vst.msk [vmem:[%s311 + $0x39] sm:$0xff] %vm223, %v2138
        %2171 = vst.msk [vmem:[%s311 + $0x49] sm:$0xff] %vm223, %v2139
        %2172 = vst.msk [vmem:[%s311 + $0x51] sm:$0xff] %vm223, %v2140
        %2173 = vst.msk [vmem:[%s311 + $0x61] sm:$0xff] %vm223, %v2141
        %2174 = vst.msk [vmem:[%s311 + $0x69] sm:$0xff] %vm223, %v2142
        %2175 = vst.msk [vmem:[%s311 + $0x79] sm:$0xff] %vm223, %v2143
        %2176 = vst.msk [vmem:[%s311 + $0x81] sm:$0xff] %vm223, %v2144
        %2177 = vst.msk [vmem:[%s311 + $0x91] sm:$0xff] %vm223, %v2145
        %2178 = vst.msk [vmem:[%s311 + $0x99] sm:$0xff] %vm223, %v2146
        %2179 = vst.msk [vmem:[%s311 + $0xa9] sm:$0xff] %vm223, %v2147
        %2180 = vst.msk [vmem:[%s311 + $0xb1] sm:$0xff] %vm223, %v2148
        %2181 = vst.msk [vmem:[%s311 + $0xc1] sm:$0xff] %vm223, %v2149
        %2182 = vst.msk [vmem:[%s311 + $0xc9] sm:$0xff] %vm223, %v2150
        %2183 = vst.msk [vmem:[%s311 + $0xd9] sm:$0xff] %vm223, %v2151
        %2184 = vst.msk [vmem:[%s311 + $0xe1] sm:$0xff] %vm223, %v2152
        %2185 = vst.msk [vmem:[%s311 + $0xf1] sm:$0xff] %vm223, %v2153
        %2186 = vst.msk [vmem:[%s311 + $0xf9] sm:$0xff] %vm223, %v2154
        %2187 = vst.msk [vmem:[%s311 + $0x109] sm:$0xff] %vm223, %v2155
        %2188 = vst.msk [vmem:[%s311 + $0x111] sm:$0xff] %vm223, %v2156
        %2189 = vst.msk [vmem:[%s311 + $0x121] sm:$0xff] %vm223, %v2157
        %2190 = vst.msk [vmem:[%s311 + $0x129] sm:$0xff] %vm223, %v2158
        %2191 = vst.msk [vmem:[%s311 + $0x139] sm:$0xff] %vm223, %v2159
        %2192 = vst.msk [vmem:[%s311 + $0x141] sm:$0xff] %vm223, %v2160
        %2193 = vst.msk [vmem:[%s311 + $0x151] sm:$0xff] %vm223, %v2161
        %2194 = vst.msk [vmem:[%s311 + $0x159] sm:$0xff] %vm223, %v2162
        %2195 = vst.msk [vmem:[%s311 + $0x169] sm:$0xff] %vm223, %v2163
        %2196 = vst.msk [vmem:[%s311 + $0x171] sm:$0xff] %vm223, %v2164
        %v2197 = vld [vmem:[#allocation2] sm:$0xff]
        %v2198 = vld [vmem:[#allocation2 + $0x8] sm:$0xff]
        %v2199 = vld [vmem:[#allocation2 + $0x18] sm:$0xff]
        %v2200 = vld [vmem:[#allocation2 + $0x20] sm:$0xff]
        %v2201 = vld [vmem:[#allocation2 + $0x30] sm:$0xff]
        %v2202 = vld [vmem:[#allocation2 + $0x38] sm:$0xff]
        %v2203 = vld [vmem:[#allocation2 + $0x48] sm:$0xff]
        %v2204 = vld [vmem:[#allocation2 + $0x50] sm:$0xff]
        %v2205 = vld [vmem:[#allocation2 + $0x60] sm:$0xff]
        %v2206 = vld [vmem:[#allocation2 + $0x68] sm:$0xff]
        %v2207 = vld [vmem:[#allocation2 + $0x78] sm:$0xff]
        %v2208 = vld [vmem:[#allocation2 + $0x80] sm:$0xff]
        %v2209 = vld [vmem:[#allocation2 + $0x90] sm:$0xff]
        %v2210 = vld [vmem:[#allocation2 + $0x98] sm:$0xff]
        %v2211 = vld [vmem:[#allocation2 + $0xa8] sm:$0xff]
        %v2212 = vld [vmem:[#allocation2 + $0xb0] sm:$0xff]
        %v2213 = vld [vmem:[#allocation2 + $0xc0] sm:$0xff]
        %v2214 = vld [vmem:[#allocation2 + $0xc8] sm:$0xff]
        %v2215 = vld [vmem:[#allocation2 + $0xd8] sm:$0xff]
        %v2216 = vld [vmem:[#allocation2 + $0xe0] sm:$0xff]
        %v2217 = vld [vmem:[#allocation2 + $0xf0] sm:$0xff]
        %v2218 = vld [vmem:[#allocation2 + $0xf8] sm:$0xff]
        %v2219 = vld [vmem:[#allocation2 + $0x108] sm:$0xff]
        %v2220 = vld [vmem:[#allocation2 + $0x110] sm:$0xff]
        %v2221 = vld [vmem:[#allocation2 + $0x120] sm:$0xff]
        %v2222 = vld [vmem:[#allocation2 + $0x128] sm:$0xff]
        %v2223 = vld [vmem:[#allocation2 + $0x138] sm:$0xff]
        %v2224 = vld [vmem:[#allocation2 + $0x140] sm:$0xff]
        %v2225 = vld [vmem:[#allocation2 + $0x150] sm:$0xff]
        %v2226 = vld [vmem:[#allocation2 + $0x158] sm:$0xff]
        %v2227 = vld [vmem:[#allocation2 + $0x168] sm:$0xff]
        %v2228 = vld [vmem:[#allocation2 + $0x170] sm:$0xff]
        %v2229 = vld [vmem:[#allocation2 + $0x180] sm:$0xff]
        %v2230 = vld [vmem:[#allocation2 + $0x188] sm:$0xff]
        %v2231 = vld [vmem:[#allocation2 + $0x198] sm:$0xff]
        %v2232 = vld [vmem:[#allocation2 + $0x1a0] sm:$0xff]
        %v2233 = vld [vmem:[%s3] sm:$0xff]
        %v2234 = vld [vmem:[%s3 + $0x8] sm:$0xff]
        %v2235 = vld [vmem:[%s3 + $0x10] sm:$0xff]
        %v2236 = vld [vmem:[%s3 + $0x18] sm:$0xff]
        %v2237 = vld [vmem:[%s3 + $0x20] sm:$0xff]
        %v2238 = vld [vmem:[%s3 + $0x28] sm:$0xff]
        %v2239 = vld [vmem:[%s3 + $0x30] sm:$0xff]
        %v2240 = vld [vmem:[%s3 + $0x38] sm:$0xff]
        %s2241 = scalar_lea.vmem %s3, 192
        %v2242 = vld [vmem:[%s2241] sm:$0xff]
        %v2243 = vld [vmem:[%s2241 + $0x8] sm:$0xff]
        %v2244 = vld [vmem:[%s2241 + $0x10] sm:$0xff]
        %v2245 = vld [vmem:[%s2241 + $0x18] sm:$0xff]
        %v2246 = vld [vmem:[%s2241 + $0x20] sm:$0xff]
        %v2247 = vld [vmem:[%s2241 + $0x28] sm:$0xff]
        %v2248 = vld [vmem:[%s2241 + $0x30] sm:$0xff]
        %v2249 = vld [vmem:[%s2241 + $0x38] sm:$0xff]
        %v2251 = vsel %vm223, %v2199, 0
        %v2254 = vsel %vm223, %v2200, 0
        %v2257 = vsel %vm223, %v2201, 0
        %v2260 = vsel %vm223, %v2202, 0
        %v2263 = vsel %vm223, %v2203, 0
        %v2266 = vsel %vm223, %v2204, 0
        %v2269 = vsel %vm223, %v2205, 0
        %v2272 = vsel %vm223, %v2206, 0
        %v2275 = vsel %vm223, %v2207, 0
        %v2278 = vsel %vm223, %v2208, 0
        %v2281 = vsel %vm223, %v2209, 0
        %v2284 = vsel %vm223, %v2210, 0
        %v2287 = vsel %vm223, %v2211, 0
        %v2290 = vsel %vm223, %v2212, 0
        %v2293 = vsel %vm223, %v2213, 0
        %v2296 = vsel %vm223, %v2214, 0
        %v2299 = vsel %vm223, %v2215, 0
        %v2302 = vsel %vm223, %v2216, 0
        %v2305 = vsel %vm223, %v2217, 0
        %v2308 = vsel %vm223, %v2218, 0
        %v2311 = vsel %vm223, %v2219, 0
        %v2314 = vsel %vm223, %v2220, 0
        %v2317 = vsel %vm223, %v2221, 0
        %v2320 = vsel %vm223, %v2222, 0
        %v2323 = vsel %vm223, %v2223, 0
        %v2326 = vsel %vm223, %v2224, 0
        %v2329 = vsel %vm223, %v2225, 0
        %v2332 = vsel %vm223, %v2226, 0
        %v2335 = vsel %vm223, %v2227, 0
        %v2338 = vsel %vm223, %v2228, 0
        %v2341 = vsel %vm223, %v2229, 0
        %v2344 = vsel %vm223, %v2230, 0
        %2346 = vmatpush.msra.mxu0 0.0
        %2347 = vmatpush.msra.mxu0 0.0
        %2348 = vmatpush.msra.mxu0 0.0
        %2349 = vmatpush.msra.mxu0 0.0
        %2350 = vmatpush.msra.mxu0 0.0
        %2351 = vmatpush.msra.mxu0 0.0
        %2352 = vmatpush.msra.mxu0 0.0
        %2353 = vmatpush.msra.mxu0 0.0
        %2354 = vmatpush.msra.mxu0 %v2249
        %2355 = vmatpush.msra.mxu0 %v2248
        %2356 = vmatpush.msra.mxu0 %v2247
        %2357 = vmatpush.msra.mxu0 %v2246
        %2358 = vmatpush.msra.mxu0 %v2245
        %2359 = vmatpush.msra.mxu0 %v2244
        %2360 = vmatpush.msra.mxu0 %v2243
        %2361 = vmatpush.msra.mxu0 %v2242
        %2362 = vmatmul.f32.gmra.mxu0 %v2251
        %v2363 = vpop.f32.mrf.mxu0
        %v2364 = vadd.f32 0.0, %v2363
        %2365 = vmatmul.f32.gmra.mxu0 %v2254
        %v2366 = vpop.f32.mrf.mxu0
        %v2367 = vadd.f32 0.0, %v2366
        %2368 = vmatmul.f32.gmra.mxu0 %v2257
        %v2369 = vpop.f32.mrf.mxu0
        %v2370 = vadd.f32 0.0, %v2369
        %2371 = vmatmul.f32.gmra.mxu0 %v2260
        %v2372 = vpop.f32.mrf.mxu0
        %v2373 = vadd.f32 0.0, %v2372
        %2374 = vmatmul.f32.gmra.mxu0 %v2263
        %v2375 = vpop.f32.mrf.mxu0
        %v2376 = vadd.f32 0.0, %v2375
        %2377 = vmatmul.f32.gmra.mxu0 %v2266
        %v2378 = vpop.f32.mrf.mxu0
        %v2379 = vadd.f32 0.0, %v2378
        %2380 = vmatmul.f32.gmra.mxu0 %v2269
        %v2381 = vpop.f32.mrf.mxu0
        %v2382 = vadd.f32 0.0, %v2381
        %2383 = vmatmul.f32.gmra.mxu0 %v2272
        %v2384 = vpop.f32.mrf.mxu0
        %v2385 = vadd.f32 0.0, %v2384
        %2386 = vmatmul.f32.gmra.mxu0 %v2275
        %v2387 = vpop.f32.mrf.mxu0
        %v2388 = vadd.f32 0.0, %v2387
        %2389 = vmatmul.f32.gmra.mxu0 %v2278
        %v2390 = vpop.f32.mrf.mxu0
        %v2391 = vadd.f32 0.0, %v2390
        %2392 = vmatmul.f32.gmra.mxu0 %v2281
        %v2393 = vpop.f32.mrf.mxu0
        %v2394 = vadd.f32 0.0, %v2393
        %2395 = vmatmul.f32.gmra.mxu0 %v2284
        %v2396 = vpop.f32.mrf.mxu0
        %v2397 = vadd.f32 0.0, %v2396
        %2398 = vmatmul.f32.gmra.mxu0 %v2287
        %v2399 = vpop.f32.mrf.mxu0
        %v2400 = vadd.f32 0.0, %v2399
        %2401 = vmatmul.f32.gmra.mxu0 %v2290
        %v2402 = vpop.f32.mrf.mxu0
        %v2403 = vadd.f32 0.0, %v2402
        %2404 = vmatmul.f32.gmra.mxu0 %v2293
        %v2405 = vpop.f32.mrf.mxu0
        %v2406 = vadd.f32 0.0, %v2405
        %2407 = vmatmul.f32.gmra.mxu0 %v2296
        %v2408 = vpop.f32.mrf.mxu0
        %v2409 = vadd.f32 0.0, %v2408
        %2410 = vmatmul.f32.gmra.mxu0 %v2299
        %v2411 = vpop.f32.mrf.mxu0
        %v2412 = vadd.f32 0.0, %v2411
        %2413 = vmatmul.f32.gmra.mxu0 %v2302
        %v2414 = vpop.f32.mrf.mxu0
        %v2415 = vadd.f32 0.0, %v2414
        %2416 = vmatmul.f32.gmra.mxu0 %v2305
        %v2417 = vpop.f32.mrf.mxu0
        %v2418 = vadd.f32 0.0, %v2417
        %2419 = vmatmul.f32.gmra.mxu0 %v2308
        %v2420 = vpop.f32.mrf.mxu0
        %v2421 = vadd.f32 0.0, %v2420
        %2422 = vmatmul.f32.gmra.mxu0 %v2311
        %v2423 = vpop.f32.mrf.mxu0
        %v2424 = vadd.f32 0.0, %v2423
        %2425 = vmatmul.f32.gmra.mxu0 %v2314
        %v2426 = vpop.f32.mrf.mxu0
        %v2427 = vadd.f32 0.0, %v2426
        %2428 = vmatmul.f32.gmra.mxu0 %v2317
        %v2429 = vpop.f32.mrf.mxu0
        %v2430 = vadd.f32 0.0, %v2429
        %2431 = vmatmul.f32.gmra.mxu0 %v2320
        %v2432 = vpop.f32.mrf.mxu0
        %v2433 = vadd.f32 0.0, %v2432
        %2434 = vmatmul.f32.gmra.mxu0 %v2323
        %v2435 = vpop.f32.mrf.mxu0
        %v2436 = vadd.f32 0.0, %v2435
        %2437 = vmatmul.f32.gmra.mxu0 %v2326
        %v2438 = vpop.f32.mrf.mxu0
        %v2439 = vadd.f32 0.0, %v2438
        %2440 = vmatmul.f32.gmra.mxu0 %v2329
        %v2441 = vpop.f32.mrf.mxu0
        %v2442 = vadd.f32 0.0, %v2441
        %2443 = vmatmul.f32.gmra.mxu0 %v2332
        %v2444 = vpop.f32.mrf.mxu0
        %v2445 = vadd.f32 0.0, %v2444
        %2446 = vmatmul.f32.gmra.mxu0 %v2335
        %v2447 = vpop.f32.mrf.mxu0
        %v2448 = vadd.f32 0.0, %v2447
        %2449 = vmatmul.f32.gmra.mxu0 %v2338
        %v2450 = vpop.f32.mrf.mxu0
        %v2451 = vadd.f32 0.0, %v2450
        %2452 = vmatmul.f32.gmra.mxu0 %v2341
        %v2453 = vpop.f32.mrf.mxu0
        %v2454 = vadd.f32 0.0, %v2453
        %2455 = vmatmul.f32.gmra.mxu0 %v2344
        %v2456 = vpop.f32.mrf.mxu0
        %v2457 = vadd.f32 0.0, %v2456
        %2458 = vdwg.mxu0
        %v2460 = vsel %vm223, %v2197, 0
        %v2463 = vsel %vm223, %v2198, 0
        %2465 = vmatpush.msra.mxu0 0.0
        %2466 = vmatpush.msra.mxu0 0.0
        %2467 = vmatpush.msra.mxu0 0.0
        %2468 = vmatpush.msra.mxu0 0.0
        %2469 = vmatpush.msra.mxu0 0.0
        %2470 = vmatpush.msra.mxu0 0.0
        %2471 = vmatpush.msra.mxu0 0.0
        %2472 = vmatpush.msra.mxu0 0.0
        %2473 = vmatpush.msra.mxu0 %v2240
        %2474 = vmatpush.msra.mxu0 %v2239
        %2475 = vmatpush.msra.mxu0 %v2238
        %2476 = vmatpush.msra.mxu0 %v2237
        %2477 = vmatpush.msra.mxu0 %v2236
        %2478 = vmatpush.msra.mxu0 %v2235
        %2479 = vmatpush.msra.mxu0 %v2234
        %2480 = vmatpush.msra.mxu0 %v2233
        %2481 = vmatmul.f32.gmra.mxu0 %v2460
        %v2482 = vpop.f32.mrf.mxu0
        %v2483 = vadd.f32 %v2364, %v2482
        %2484 = vmatmul.f32.gmra.mxu0 %v2463
        %v2485 = vpop.f32.mrf.mxu0
        %v2486 = vadd.f32 %v2367, %v2485
        %2487 = vmatmul.f32.gmra.mxu0 %v2251
        %v2488 = vpop.f32.mrf.mxu0
        %v2489 = vadd.f32 %v2370, %v2488
        %2490 = vmatmul.f32.gmra.mxu0 %v2254
        %v2491 = vpop.f32.mrf.mxu0
        %v2492 = vadd.f32 %v2373, %v2491
        %2493 = vmatmul.f32.gmra.mxu0 %v2257
        %v2494 = vpop.f32.mrf.mxu0
        %v2495 = vadd.f32 %v2376, %v2494
        %2496 = vmatmul.f32.gmra.mxu0 %v2260
        %v2497 = vpop.f32.mrf.mxu0
        %v2498 = vadd.f32 %v2379, %v2497
        %2499 = vmatmul.f32.gmra.mxu0 %v2263
        %v2500 = vpop.f32.mrf.mxu0
        %v2501 = vadd.f32 %v2382, %v2500
        %2502 = vmatmul.f32.gmra.mxu0 %v2266
        %v2503 = vpop.f32.mrf.mxu0
        %v2504 = vadd.f32 %v2385, %v2503
        %2505 = vmatmul.f32.gmra.mxu0 %v2269
        %v2506 = vpop.f32.mrf.mxu0
        %v2507 = vadd.f32 %v2388, %v2506
        %2508 = vmatmul.f32.gmra.mxu0 %v2272
        %v2509 = vpop.f32.mrf.mxu0
        %v2510 = vadd.f32 %v2391, %v2509
        %2511 = vmatmul.f32.gmra.mxu0 %v2275
        %v2512 = vpop.f32.mrf.mxu0
        %v2513 = vadd.f32 %v2394, %v2512
        %2514 = vmatmul.f32.gmra.mxu0 %v2278
        %v2515 = vpop.f32.mrf.mxu0
        %v2516 = vadd.f32 %v2397, %v2515
        %2517 = vmatmul.f32.gmra.mxu0 %v2281
        %v2518 = vpop.f32.mrf.mxu0
        %v2519 = vadd.f32 %v2400, %v2518
        %2520 = vmatmul.f32.gmra.mxu0 %v2284
        %v2521 = vpop.f32.mrf.mxu0
        %v2522 = vadd.f32 %v2403, %v2521
        %2523 = vmatmul.f32.gmra.mxu0 %v2287
        %v2524 = vpop.f32.mrf.mxu0
        %v2525 = vadd.f32 %v2406, %v2524
        %2526 = vmatmul.f32.gmra.mxu0 %v2290
        %v2527 = vpop.f32.mrf.mxu0
        %v2528 = vadd.f32 %v2409, %v2527
        %2529 = vmatmul.f32.gmra.mxu0 %v2293
        %v2530 = vpop.f32.mrf.mxu0
        %v2531 = vadd.f32 %v2412, %v2530
        %2532 = vmatmul.f32.gmra.mxu0 %v2296
        %v2533 = vpop.f32.mrf.mxu0
        %v2534 = vadd.f32 %v2415, %v2533
        %2535 = vmatmul.f32.gmra.mxu0 %v2299
        %v2536 = vpop.f32.mrf.mxu0
        %v2537 = vadd.f32 %v2418, %v2536
        %2538 = vmatmul.f32.gmra.mxu0 %v2302
        %v2539 = vpop.f32.mrf.mxu0
        %v2540 = vadd.f32 %v2421, %v2539
        %2541 = vmatmul.f32.gmra.mxu0 %v2305
        %v2542 = vpop.f32.mrf.mxu0
        %v2543 = vadd.f32 %v2424, %v2542
        %2544 = vmatmul.f32.gmra.mxu0 %v2308
        %v2545 = vpop.f32.mrf.mxu0
        %v2546 = vadd.f32 %v2427, %v2545
        %2547 = vmatmul.f32.gmra.mxu0 %v2311
        %v2548 = vpop.f32.mrf.mxu0
        %v2549 = vadd.f32 %v2430, %v2548
        %2550 = vmatmul.f32.gmra.mxu0 %v2314
        %v2551 = vpop.f32.mrf.mxu0
        %v2552 = vadd.f32 %v2433, %v2551
        %2553 = vmatmul.f32.gmra.mxu0 %v2317
        %v2554 = vpop.f32.mrf.mxu0
        %v2555 = vadd.f32 %v2436, %v2554
        %2556 = vmatmul.f32.gmra.mxu0 %v2320
        %v2557 = vpop.f32.mrf.mxu0
        %v2558 = vadd.f32 %v2439, %v2557
        %2559 = vmatmul.f32.gmra.mxu0 %v2323
        %v2560 = vpop.f32.mrf.mxu0
        %v2561 = vadd.f32 %v2442, %v2560
        %2562 = vmatmul.f32.gmra.mxu0 %v2326
        %v2563 = vpop.f32.mrf.mxu0
        %v2564 = vadd.f32 %v2445, %v2563
        %2565 = vmatmul.f32.gmra.mxu0 %v2329
        %v2566 = vpop.f32.mrf.mxu0
        %v2567 = vadd.f32 %v2448, %v2566
        %2568 = vmatmul.f32.gmra.mxu0 %v2332
        %v2569 = vpop.f32.mrf.mxu0
        %v2570 = vadd.f32 %v2451, %v2569
        %2571 = vmatmul.f32.gmra.mxu0 %v2335
        %v2572 = vpop.f32.mrf.mxu0
        %v2573 = vadd.f32 %v2454, %v2572
        %2574 = vmatmul.f32.gmra.mxu0 %v2338
        %v2575 = vpop.f32.mrf.mxu0
        %v2576 = vadd.f32 %v2457, %v2575
        %2577 = vdwg.mxu0
        %s2578 = scalar_lea.vmem %s3, 384
        %v2579 = vld [vmem:[%s2578] sm:$0xff]
        %v2580 = vld [vmem:[%s2578 + $0x8] sm:$0xff]
        %v2581 = vld [vmem:[%s2578 + $0x10] sm:$0xff]
        %v2582 = vld [vmem:[%s2578 + $0x18] sm:$0xff]
        %v2583 = vld [vmem:[%s2578 + $0x20] sm:$0xff]
        %v2584 = vld [vmem:[%s2578 + $0x28] sm:$0xff]
        %v2585 = vld [vmem:[%s2578 + $0x30] sm:$0xff]
        %v2586 = vld [vmem:[%s2578 + $0x38] sm:$0xff]
        %v2588 = vsel %vm223, %v2231, 0
        %v2591 = vsel %vm223, %v2232, 0
        %2593 = vmatpush.msra.mxu0 0.0
        %2594 = vmatpush.msra.mxu0 0.0
        %2595 = vmatpush.msra.mxu0 0.0
        %2596 = vmatpush.msra.mxu0 0.0
        %2597 = vmatpush.msra.mxu0 0.0
        %2598 = vmatpush.msra.mxu0 0.0
        %2599 = vmatpush.msra.mxu0 0.0
        %2600 = vmatpush.msra.mxu0 0.0
        %2601 = vmatpush.msra.mxu0 %v2586
        %2602 = vmatpush.msra.mxu0 %v2585
        %2603 = vmatpush.msra.mxu0 %v2584
        %2604 = vmatpush.msra.mxu0 %v2583
        %2605 = vmatpush.msra.mxu0 %v2582
        %2606 = vmatpush.msra.mxu0 %v2581
        %2607 = vmatpush.msra.mxu0 %v2580
        %2608 = vmatpush.msra.mxu0 %v2579
        %2609 = vmatmul.f32.gmra.mxu0 %v2257
        %v2610 = vpop.f32.mrf.mxu0
        %v2611 = vadd.f32 0.0, %v2610
        %2612 = vmatmul.f32.gmra.mxu0 %v2260
        %v2613 = vpop.f32.mrf.mxu0
        %v2614 = vadd.f32 0.0, %v2613
        %2615 = vmatmul.f32.gmra.mxu0 %v2263
        %v2616 = vpop.f32.mrf.mxu0
        %v2617 = vadd.f32 0.0, %v2616
        %2618 = vmatmul.f32.gmra.mxu0 %v2266
        %v2619 = vpop.f32.mrf.mxu0
        %v2620 = vadd.f32 0.0, %v2619
        %2621 = vmatmul.f32.gmra.mxu0 %v2269
        %v2622 = vpop.f32.mrf.mxu0
        %v2623 = vadd.f32 0.0, %v2622
        %2624 = vmatmul.f32.gmra.mxu0 %v2272
        %v2625 = vpop.f32.mrf.mxu0
        %v2626 = vadd.f32 0.0, %v2625
        %2627 = vmatmul.f32.gmra.mxu0 %v2275
        %v2628 = vpop.f32.mrf.mxu0
        %v2629 = vadd.f32 0.0, %v2628
        %2630 = vmatmul.f32.gmra.mxu0 %v2278
        %v2631 = vpop.f32.mrf.mxu0
        %v2632 = vadd.f32 0.0, %v2631
        %2633 = vmatmul.f32.gmra.mxu0 %v2281
        %v2634 = vpop.f32.mrf.mxu0
        %v2635 = vadd.f32 0.0, %v2634
        %2636 = vmatmul.f32.gmra.mxu0 %v2284
        %v2637 = vpop.f32.mrf.mxu0
        %v2638 = vadd.f32 0.0, %v2637
        %2639 = vmatmul.f32.gmra.mxu0 %v2287
        %v2640 = vpop.f32.mrf.mxu0
        %v2641 = vadd.f32 0.0, %v2640
        %2642 = vmatmul.f32.gmra.mxu0 %v2290
        %v2643 = vpop.f32.mrf.mxu0
        %v2644 = vadd.f32 0.0, %v2643
        %2645 = vmatmul.f32.gmra.mxu0 %v2293
        %v2646 = vpop.f32.mrf.mxu0
        %v2647 = vadd.f32 0.0, %v2646
        %2648 = vmatmul.f32.gmra.mxu0 %v2296
        %v2649 = vpop.f32.mrf.mxu0
        %v2650 = vadd.f32 0.0, %v2649
        %2651 = vmatmul.f32.gmra.mxu0 %v2299
        %v2652 = vpop.f32.mrf.mxu0
        %v2653 = vadd.f32 0.0, %v2652
        %2654 = vmatmul.f32.gmra.mxu0 %v2302
        %v2655 = vpop.f32.mrf.mxu0
        %v2656 = vadd.f32 0.0, %v2655
        %2657 = vmatmul.f32.gmra.mxu0 %v2305
        %v2658 = vpop.f32.mrf.mxu0
        %v2659 = vadd.f32 0.0, %v2658
        %2660 = vmatmul.f32.gmra.mxu0 %v2308
        %v2661 = vpop.f32.mrf.mxu0
        %v2662 = vadd.f32 0.0, %v2661
        %2663 = vmatmul.f32.gmra.mxu0 %v2311
        %v2664 = vpop.f32.mrf.mxu0
        %v2665 = vadd.f32 0.0, %v2664
        %2666 = vmatmul.f32.gmra.mxu0 %v2314
        %v2667 = vpop.f32.mrf.mxu0
        %v2668 = vadd.f32 0.0, %v2667
        %2669 = vmatmul.f32.gmra.mxu0 %v2317
        %v2670 = vpop.f32.mrf.mxu0
        %v2671 = vadd.f32 0.0, %v2670
        %2672 = vmatmul.f32.gmra.mxu0 %v2320
        %v2673 = vpop.f32.mrf.mxu0
        %v2674 = vadd.f32 0.0, %v2673
        %2675 = vmatmul.f32.gmra.mxu0 %v2323
        %v2676 = vpop.f32.mrf.mxu0
        %v2677 = vadd.f32 0.0, %v2676
        %2678 = vmatmul.f32.gmra.mxu0 %v2326
        %v2679 = vpop.f32.mrf.mxu0
        %v2680 = vadd.f32 0.0, %v2679
        %2681 = vmatmul.f32.gmra.mxu0 %v2329
        %v2682 = vpop.f32.mrf.mxu0
        %v2683 = vadd.f32 0.0, %v2682
        %2684 = vmatmul.f32.gmra.mxu0 %v2332
        %v2685 = vpop.f32.mrf.mxu0
        %v2686 = vadd.f32 0.0, %v2685
        %2687 = vmatmul.f32.gmra.mxu0 %v2335
        %v2688 = vpop.f32.mrf.mxu0
        %v2689 = vadd.f32 0.0, %v2688
        %2690 = vmatmul.f32.gmra.mxu0 %v2338
        %v2691 = vpop.f32.mrf.mxu0
        %v2692 = vadd.f32 0.0, %v2691
        %2693 = vmatmul.f32.gmra.mxu0 %v2341
        %v2694 = vpop.f32.mrf.mxu0
        %v2695 = vadd.f32 0.0, %v2694
        %2696 = vmatmul.f32.gmra.mxu0 %v2344
        %v2697 = vpop.f32.mrf.mxu0
        %v2698 = vadd.f32 0.0, %v2697
        %2699 = vmatmul.f32.gmra.mxu0 %v2588
        %v2700 = vpop.f32.mrf.mxu0
        %v2701 = vadd.f32 0.0, %v2700
        %2702 = vmatmul.f32.gmra.mxu0 %v2591
        %v2703 = vpop.f32.mrf.mxu0
        %v2704 = vadd.f32 0.0, %v2703
        %2705 = vdwg.mxu0
        %v2706 = vadd.f32 %v2483, %v2611
        %v2707 = vadd.f32 %v2486, %v2614
        %v2708 = vadd.f32 %v2489, %v2617
        %v2709 = vadd.f32 %v2492, %v2620
        %v2710 = vadd.f32 %v2495, %v2623
        %v2711 = vadd.f32 %v2498, %v2626
        %v2712 = vadd.f32 %v2501, %v2629
        %v2713 = vadd.f32 %v2504, %v2632
        %v2714 = vadd.f32 %v2507, %v2635
        %v2715 = vadd.f32 %v2510, %v2638
        %v2716 = vadd.f32 %v2513, %v2641
        %v2717 = vadd.f32 %v2516, %v2644
        %v2718 = vadd.f32 %v2519, %v2647
        %v2719 = vadd.f32 %v2522, %v2650
        %v2720 = vadd.f32 %v2525, %v2653
        %v2721 = vadd.f32 %v2528, %v2656
        %v2722 = vadd.f32 %v2531, %v2659
        %v2723 = vadd.f32 %v2534, %v2662
        %v2724 = vadd.f32 %v2537, %v2665
        %v2725 = vadd.f32 %v2540, %v2668
        %v2726 = vadd.f32 %v2543, %v2671
        %v2727 = vadd.f32 %v2546, %v2674
        %v2728 = vadd.f32 %v2549, %v2677
        %v2729 = vadd.f32 %v2552, %v2680
        %v2730 = vadd.f32 %v2555, %v2683
        %v2731 = vadd.f32 %v2558, %v2686
        %v2732 = vadd.f32 %v2561, %v2689
        %v2733 = vadd.f32 %v2564, %v2692
        %v2734 = vadd.f32 %v2567, %v2695
        %v2735 = vadd.f32 %v2570, %v2698
        %v2736 = vadd.f32 %v2573, %v2701
        %v2737 = vadd.f32 %v2576, %v2704
        %v2738 = vld [vmem:[#allocation2 + $0x1] sm:$0xff]
        %v2739 = vld [vmem:[#allocation2 + $0x9] sm:$0xff]
        %v2740 = vld [vmem:[#allocation2 + $0x19] sm:$0xff]
        %v2741 = vld [vmem:[#allocation2 + $0x21] sm:$0xff]
        %v2742 = vld [vmem:[#allocation2 + $0x31] sm:$0xff]
        %v2743 = vld [vmem:[#allocation2 + $0x39] sm:$0xff]
        %v2744 = vld [vmem:[#allocation2 + $0x49] sm:$0xff]
        %v2745 = vld [vmem:[#allocation2 + $0x51] sm:$0xff]
        %v2746 = vld [vmem:[#allocation2 + $0x61] sm:$0xff]
        %v2747 = vld [vmem:[#allocation2 + $0x69] sm:$0xff]
        %v2748 = vld [vmem:[#allocation2 + $0x79] sm:$0xff]
        %v2749 = vld [vmem:[#allocation2 + $0x81] sm:$0xff]
        %v2750 = vld [vmem:[#allocation2 + $0x91] sm:$0xff]
        %v2751 = vld [vmem:[#allocation2 + $0x99] sm:$0xff]
        %v2752 = vld [vmem:[#allocation2 + $0xa9] sm:$0xff]
        %v2753 = vld [vmem:[#allocation2 + $0xb1] sm:$0xff]
        %v2754 = vld [vmem:[#allocation2 + $0xc1] sm:$0xff]
        %v2755 = vld [vmem:[#allocation2 + $0xc9] sm:$0xff]
        %v2756 = vld [vmem:[#allocation2 + $0xd9] sm:$0xff]
        %v2757 = vld [vmem:[#allocation2 + $0xe1] sm:$0xff]
        %v2758 = vld [vmem:[#allocation2 + $0xf1] sm:$0xff]
        %v2759 = vld [vmem:[#allocation2 + $0xf9] sm:$0xff]
        %v2760 = vld [vmem:[#allocation2 + $0x109] sm:$0xff]
        %v2761 = vld [vmem:[#allocation2 + $0x111] sm:$0xff]
        %v2762 = vld [vmem:[#allocation2 + $0x121] sm:$0xff]
        %v2763 = vld [vmem:[#allocation2 + $0x129] sm:$0xff]
        %v2764 = vld [vmem:[#allocation2 + $0x139] sm:$0xff]
        %v2765 = vld [vmem:[#allocation2 + $0x141] sm:$0xff]
        %v2766 = vld [vmem:[#allocation2 + $0x151] sm:$0xff]
        %v2767 = vld [vmem:[#allocation2 + $0x159] sm:$0xff]
        %v2768 = vld [vmem:[#allocation2 + $0x169] sm:$0xff]
        %v2769 = vld [vmem:[#allocation2 + $0x171] sm:$0xff]
        %v2770 = vld [vmem:[#allocation2 + $0x181] sm:$0xff]
        %v2771 = vld [vmem:[#allocation2 + $0x189] sm:$0xff]
        %v2772 = vld [vmem:[#allocation2 + $0x199] sm:$0xff]
        %v2773 = vld [vmem:[#allocation2 + $0x1a1] sm:$0xff]
        %s2774 = scalar_lea.vmem %s3, 64
        %v2775 = vld [vmem:[%s2774] sm:$0xff]
        %v2776 = vld [vmem:[%s2774 + $0x8] sm:$0xff]
        %v2777 = vld [vmem:[%s2774 + $0x10] sm:$0xff]
        %v2778 = vld [vmem:[%s2774 + $0x18] sm:$0xff]
        %v2779 = vld [vmem:[%s2774 + $0x20] sm:$0xff]
        %v2780 = vld [vmem:[%s2774 + $0x28] sm:$0xff]
        %v2781 = vld [vmem:[%s2774 + $0x30] sm:$0xff]
        %v2782 = vld [vmem:[%s2774 + $0x38] sm:$0xff]
        %v2784 = vsel %vm223, %v2738, 0
        %v2787 = vsel %vm223, %v2739, 0
        %v2790 = vsel %vm223, %v2740, 0
        %v2793 = vsel %vm223, %v2741, 0
        %v2796 = vsel %vm223, %v2742, 0
        %v2799 = vsel %vm223, %v2743, 0
        %v2802 = vsel %vm223, %v2744, 0
        %v2805 = vsel %vm223, %v2745, 0
        %v2808 = vsel %vm223, %v2746, 0
        %v2811 = vsel %vm223, %v2747, 0
        %v2814 = vsel %vm223, %v2748, 0
        %v2817 = vsel %vm223, %v2749, 0
        %v2820 = vsel %vm223, %v2750, 0
        %v2823 = vsel %vm223, %v2751, 0
        %v2826 = vsel %vm223, %v2752, 0
        %v2829 = vsel %vm223, %v2753, 0
        %v2832 = vsel %vm223, %v2754, 0
        %v2835 = vsel %vm223, %v2755, 0
        %v2838 = vsel %vm223, %v2756, 0
        %v2841 = vsel %vm223, %v2757, 0
        %v2844 = vsel %vm223, %v2758, 0
        %v2847 = vsel %vm223, %v2759, 0
        %v2850 = vsel %vm223, %v2760, 0
        %v2853 = vsel %vm223, %v2761, 0
        %v2856 = vsel %vm223, %v2762, 0
        %v2859 = vsel %vm223, %v2763, 0
        %v2862 = vsel %vm223, %v2764, 0
        %v2865 = vsel %vm223, %v2765, 0
        %v2868 = vsel %vm223, %v2766, 0
        %v2871 = vsel %vm223, %v2767, 0
        %v2874 = vsel %vm223, %v2768, 0
        %v2877 = vsel %vm223, %v2769, 0
        %2879 = vmatpush.msra.mxu0 0.0
        %2880 = vmatpush.msra.mxu0 0.0
        %2881 = vmatpush.msra.mxu0 0.0
        %2882 = vmatpush.msra.mxu0 0.0
        %2883 = vmatpush.msra.mxu0 0.0
        %2884 = vmatpush.msra.mxu0 0.0
        %2885 = vmatpush.msra.mxu0 0.0
        %2886 = vmatpush.msra.mxu0 0.0
        %2887 = vmatpush.msra.mxu0 %v2782
        %2888 = vmatpush.msra.mxu0 %v2781
        %2889 = vmatpush.msra.mxu0 %v2780
        %2890 = vmatpush.msra.mxu0 %v2779
        %2891 = vmatpush.msra.mxu0 %v2778
        %2892 = vmatpush.msra.mxu0 %v2777
        %2893 = vmatpush.msra.mxu0 %v2776
        %2894 = vmatpush.msra.mxu0 %v2775
        %2895 = vmatmul.f32.gmra.mxu0 %v2784
        %v2896 = vpop.f32.mrf.mxu0
        %v2897 = vadd.f32 0.0, %v2896
        %2898 = vmatmul.f32.gmra.mxu0 %v2787
        %v2899 = vpop.f32.mrf.mxu0
        %v2900 = vadd.f32 0.0, %v2899
        %2901 = vmatmul.f32.gmra.mxu0 %v2790
        %v2902 = vpop.f32.mrf.mxu0
        %v2903 = vadd.f32 0.0, %v2902
        %2904 = vmatmul.f32.gmra.mxu0 %v2793
        %v2905 = vpop.f32.mrf.mxu0
        %v2906 = vadd.f32 0.0, %v2905
        %2907 = vmatmul.f32.gmra.mxu0 %v2796
        %v2908 = vpop.f32.mrf.mxu0
        %v2909 = vadd.f32 0.0, %v2908
        %2910 = vmatmul.f32.gmra.mxu0 %v2799
        %v2911 = vpop.f32.mrf.mxu0
        %v2912 = vadd.f32 0.0, %v2911
        %2913 = vmatmul.f32.gmra.mxu0 %v2802
        %v2914 = vpop.f32.mrf.mxu0
        %v2915 = vadd.f32 0.0, %v2914
        %2916 = vmatmul.f32.gmra.mxu0 %v2805
        %v2917 = vpop.f32.mrf.mxu0
        %v2918 = vadd.f32 0.0, %v2917
        %2919 = vmatmul.f32.gmra.mxu0 %v2808
        %v2920 = vpop.f32.mrf.mxu0
        %v2921 = vadd.f32 0.0, %v2920
        %2922 = vmatmul.f32.gmra.mxu0 %v2811
        %v2923 = vpop.f32.mrf.mxu0
        %v2924 = vadd.f32 0.0, %v2923
        %2925 = vmatmul.f32.gmra.mxu0 %v2814
        %v2926 = vpop.f32.mrf.mxu0
        %v2927 = vadd.f32 0.0, %v2926
        %2928 = vmatmul.f32.gmra.mxu0 %v2817
        %v2929 = vpop.f32.mrf.mxu0
        %v2930 = vadd.f32 0.0, %v2929
        %2931 = vmatmul.f32.gmra.mxu0 %v2820
        %v2932 = vpop.f32.mrf.mxu0
        %v2933 = vadd.f32 0.0, %v2932
        %2934 = vmatmul.f32.gmra.mxu0 %v2823
        %v2935 = vpop.f32.mrf.mxu0
        %v2936 = vadd.f32 0.0, %v2935
        %2937 = vmatmul.f32.gmra.mxu0 %v2826
        %v2938 = vpop.f32.mrf.mxu0
        %v2939 = vadd.f32 0.0, %v2938
        %2940 = vmatmul.f32.gmra.mxu0 %v2829
        %v2941 = vpop.f32.mrf.mxu0
        %v2942 = vadd.f32 0.0, %v2941
        %2943 = vmatmul.f32.gmra.mxu0 %v2832
        %v2944 = vpop.f32.mrf.mxu0
        %v2945 = vadd.f32 0.0, %v2944
        %2946 = vmatmul.f32.gmra.mxu0 %v2835
        %v2947 = vpop.f32.mrf.mxu0
        %v2948 = vadd.f32 0.0, %v2947
        %2949 = vmatmul.f32.gmra.mxu0 %v2838
        %v2950 = vpop.f32.mrf.mxu0
        %v2951 = vadd.f32 0.0, %v2950
        %2952 = vmatmul.f32.gmra.mxu0 %v2841
        %v2953 = vpop.f32.mrf.mxu0
        %v2954 = vadd.f32 0.0, %v2953
        %2955 = vmatmul.f32.gmra.mxu0 %v2844
        %v2956 = vpop.f32.mrf.mxu0
        %v2957 = vadd.f32 0.0, %v2956
        %2958 = vmatmul.f32.gmra.mxu0 %v2847
        %v2959 = vpop.f32.mrf.mxu0
        %v2960 = vadd.f32 0.0, %v2959
        %2961 = vmatmul.f32.gmra.mxu0 %v2850
        %v2962 = vpop.f32.mrf.mxu0
        %v2963 = vadd.f32 0.0, %v2962
        %2964 = vmatmul.f32.gmra.mxu0 %v2853
        %v2965 = vpop.f32.mrf.mxu0
        %v2966 = vadd.f32 0.0, %v2965
        %2967 = vmatmul.f32.gmra.mxu0 %v2856
        %v2968 = vpop.f32.mrf.mxu0
        %v2969 = vadd.f32 0.0, %v2968
        %2970 = vmatmul.f32.gmra.mxu0 %v2859
        %v2971 = vpop.f32.mrf.mxu0
        %v2972 = vadd.f32 0.0, %v2971
        %2973 = vmatmul.f32.gmra.mxu0 %v2862
        %v2974 = vpop.f32.mrf.mxu0
        %v2975 = vadd.f32 0.0, %v2974
        %2976 = vmatmul.f32.gmra.mxu0 %v2865
        %v2977 = vpop.f32.mrf.mxu0
        %v2978 = vadd.f32 0.0, %v2977
        %2979 = vmatmul.f32.gmra.mxu0 %v2868
        %v2980 = vpop.f32.mrf.mxu0
        %v2981 = vadd.f32 0.0, %v2980
        %2982 = vmatmul.f32.gmra.mxu0 %v2871
        %v2983 = vpop.f32.mrf.mxu0
        %v2984 = vadd.f32 0.0, %v2983
        %2985 = vmatmul.f32.gmra.mxu0 %v2874
        %v2986 = vpop.f32.mrf.mxu0
        %v2987 = vadd.f32 0.0, %v2986
        %2988 = vmatmul.f32.gmra.mxu0 %v2877
        %v2989 = vpop.f32.mrf.mxu0
        %v2990 = vadd.f32 0.0, %v2989
        %2991 = vdwg.mxu0
        %v2992 = vadd.f32 %v2706, %v2897
        %v2993 = vadd.f32 %v2707, %v2900
        %v2994 = vadd.f32 %v2708, %v2903
        %v2995 = vadd.f32 %v2709, %v2906
        %v2996 = vadd.f32 %v2710, %v2909
        %v2997 = vadd.f32 %v2711, %v2912
        %v2998 = vadd.f32 %v2712, %v2915
        %v2999 = vadd.f32 %v2713, %v2918
        %v3000 = vadd.f32 %v2714, %v2921
        %v3001 = vadd.f32 %v2715, %v2924
        %v3002 = vadd.f32 %v2716, %v2927
        %v3003 = vadd.f32 %v2717, %v2930
        %v3004 = vadd.f32 %v2718, %v2933
        %v3005 = vadd.f32 %v2719, %v2936
        %v3006 = vadd.f32 %v2720, %v2939
        %v3007 = vadd.f32 %v2721, %v2942
        %v3008 = vadd.f32 %v2722, %v2945
        %v3009 = vadd.f32 %v2723, %v2948
        %v3010 = vadd.f32 %v2724, %v2951
        %v3011 = vadd.f32 %v2725, %v2954
        %v3012 = vadd.f32 %v2726, %v2957
        %v3013 = vadd.f32 %v2727, %v2960
        %v3014 = vadd.f32 %v2728, %v2963
        %v3015 = vadd.f32 %v2729, %v2966
        %v3016 = vadd.f32 %v2730, %v2969
        %v3017 = vadd.f32 %v2731, %v2972
        %v3018 = vadd.f32 %v2732, %v2975
        %v3019 = vadd.f32 %v2733, %v2978
        %v3020 = vadd.f32 %v2734, %v2981
        %v3021 = vadd.f32 %v2735, %v2984
        %v3022 = vadd.f32 %v2736, %v2987
        %v3023 = vadd.f32 %v2737, %v2990
        %s3024 = scalar_lea.vmem %s3, 256
        %v3025 = vld [vmem:[%s3024] sm:$0xff]
        %v3026 = vld [vmem:[%s3024 + $0x8] sm:$0xff]
        %v3027 = vld [vmem:[%s3024 + $0x10] sm:$0xff]
        %v3028 = vld [vmem:[%s3024 + $0x18] sm:$0xff]
        %v3029 = vld [vmem:[%s3024 + $0x20] sm:$0xff]
        %v3030 = vld [vmem:[%s3024 + $0x28] sm:$0xff]
        %v3031 = vld [vmem:[%s3024 + $0x30] sm:$0xff]
        %v3032 = vld [vmem:[%s3024 + $0x38] sm:$0xff]
        %v3034 = vsel %vm223, %v2770, 0
        %v3037 = vsel %vm223, %v2771, 0
        %3039 = vmatpush.msra.mxu0 0.0
        %3040 = vmatpush.msra.mxu0 0.0
        %3041 = vmatpush.msra.mxu0 0.0
        %3042 = vmatpush.msra.mxu0 0.0
        %3043 = vmatpush.msra.mxu0 0.0
        %3044 = vmatpush.msra.mxu0 0.0
        %3045 = vmatpush.msra.mxu0 0.0
        %3046 = vmatpush.msra.mxu0 0.0
        %3047 = vmatpush.msra.mxu0 %v3032
        %3048 = vmatpush.msra.mxu0 %v3031
        %3049 = vmatpush.msra.mxu0 %v3030
        %3050 = vmatpush.msra.mxu0 %v3029
        %3051 = vmatpush.msra.mxu0 %v3028
        %3052 = vmatpush.msra.mxu0 %v3027
        %3053 = vmatpush.msra.mxu0 %v3026
        %3054 = vmatpush.msra.mxu0 %v3025
        %3055 = vmatmul.f32.gmra.mxu0 %v2790
        %v3056 = vpop.f32.mrf.mxu0
        %v3057 = vadd.f32 0.0, %v3056
        %3058 = vmatmul.f32.gmra.mxu0 %v2793
        %v3059 = vpop.f32.mrf.mxu0
        %v3060 = vadd.f32 0.0, %v3059
        %3061 = vmatmul.f32.gmra.mxu0 %v2796
        %v3062 = vpop.f32.mrf.mxu0
        %v3063 = vadd.f32 0.0, %v3062
        %3064 = vmatmul.f32.gmra.mxu0 %v2799
        %v3065 = vpop.f32.mrf.mxu0
        %v3066 = vadd.f32 0.0, %v3065
        %3067 = vmatmul.f32.gmra.mxu0 %v2802
        %v3068 = vpop.f32.mrf.mxu0
        %v3069 = vadd.f32 0.0, %v3068
        %3070 = vmatmul.f32.gmra.mxu0 %v2805
        %v3071 = vpop.f32.mrf.mxu0
        %v3072 = vadd.f32 0.0, %v3071
        %3073 = vmatmul.f32.gmra.mxu0 %v2808
        %v3074 = vpop.f32.mrf.mxu0
        %v3075 = vadd.f32 0.0, %v3074
        %3076 = vmatmul.f32.gmra.mxu0 %v2811
        %v3077 = vpop.f32.mrf.mxu0
        %v3078 = vadd.f32 0.0, %v3077
        %3079 = vmatmul.f32.gmra.mxu0 %v2814
        %v3080 = vpop.f32.mrf.mxu0
        %v3081 = vadd.f32 0.0, %v3080
        %3082 = vmatmul.f32.gmra.mxu0 %v2817
        %v3083 = vpop.f32.mrf.mxu0
        %v3084 = vadd.f32 0.0, %v3083
        %3085 = vmatmul.f32.gmra.mxu0 %v2820
        %v3086 = vpop.f32.mrf.mxu0
        %v3087 = vadd.f32 0.0, %v3086
        %3088 = vmatmul.f32.gmra.mxu0 %v2823
        %v3089 = vpop.f32.mrf.mxu0
        %v3090 = vadd.f32 0.0, %v3089
        %3091 = vmatmul.f32.gmra.mxu0 %v2826
        %v3092 = vpop.f32.mrf.mxu0
        %v3093 = vadd.f32 0.0, %v3092
        %3094 = vmatmul.f32.gmra.mxu0 %v2829
        %v3095 = vpop.f32.mrf.mxu0
        %v3096 = vadd.f32 0.0, %v3095
        %3097 = vmatmul.f32.gmra.mxu0 %v2832
        %v3098 = vpop.f32.mrf.mxu0
        %v3099 = vadd.f32 0.0, %v3098
        %3100 = vmatmul.f32.gmra.mxu0 %v2835
        %v3101 = vpop.f32.mrf.mxu0
        %v3102 = vadd.f32 0.0, %v3101
        %3103 = vmatmul.f32.gmra.mxu0 %v2838
        %v3104 = vpop.f32.mrf.mxu0
        %v3105 = vadd.f32 0.0, %v3104
        %3106 = vmatmul.f32.gmra.mxu0 %v2841
        %v3107 = vpop.f32.mrf.mxu0
        %v3108 = vadd.f32 0.0, %v3107
        %3109 = vmatmul.f32.gmra.mxu0 %v2844
        %v3110 = vpop.f32.mrf.mxu0
        %v3111 = vadd.f32 0.0, %v3110
        %3112 = vmatmul.f32.gmra.mxu0 %v2847
        %v3113 = vpop.f32.mrf.mxu0
        %v3114 = vadd.f32 0.0, %v3113
        %3115 = vmatmul.f32.gmra.mxu0 %v2850
        %v3116 = vpop.f32.mrf.mxu0
        %v3117 = vadd.f32 0.0, %v3116
        %3118 = vmatmul.f32.gmra.mxu0 %v2853
        %v3119 = vpop.f32.mrf.mxu0
        %v3120 = vadd.f32 0.0, %v3119
        %3121 = vmatmul.f32.gmra.mxu0 %v2856
        %v3122 = vpop.f32.mrf.mxu0
        %v3123 = vadd.f32 0.0, %v3122
        %3124 = vmatmul.f32.gmra.mxu0 %v2859
        %v3125 = vpop.f32.mrf.mxu0
        %v3126 = vadd.f32 0.0, %v3125
        %3127 = vmatmul.f32.gmra.mxu0 %v2862
        %v3128 = vpop.f32.mrf.mxu0
        %v3129 = vadd.f32 0.0, %v3128
        %3130 = vmatmul.f32.gmra.mxu0 %v2865
        %v3131 = vpop.f32.mrf.mxu0
        %v3132 = vadd.f32 0.0, %v3131
        %3133 = vmatmul.f32.gmra.mxu0 %v2868
        %v3134 = vpop.f32.mrf.mxu0
        %v3135 = vadd.f32 0.0, %v3134
        %3136 = vmatmul.f32.gmra.mxu0 %v2871
        %v3137 = vpop.f32.mrf.mxu0
        %v3138 = vadd.f32 0.0, %v3137
        %3139 = vmatmul.f32.gmra.mxu0 %v2874
        %v3140 = vpop.f32.mrf.mxu0
        %v3141 = vadd.f32 0.0, %v3140
        %3142 = vmatmul.f32.gmra.mxu0 %v2877
        %v3143 = vpop.f32.mrf.mxu0
        %v3144 = vadd.f32 0.0, %v3143
        %3145 = vmatmul.f32.gmra.mxu0 %v3034
        %v3146 = vpop.f32.mrf.mxu0
        %v3147 = vadd.f32 0.0, %v3146
        %3148 = vmatmul.f32.gmra.mxu0 %v3037
        %v3149 = vpop.f32.mrf.mxu0
        %v3150 = vadd.f32 0.0, %v3149
        %3151 = vdwg.mxu0
        %v3152 = vadd.f32 %v2992, %v3057
        %v3153 = vadd.f32 %v2993, %v3060
        %v3154 = vadd.f32 %v2994, %v3063
        %v3155 = vadd.f32 %v2995, %v3066
        %v3156 = vadd.f32 %v2996, %v3069
        %v3157 = vadd.f32 %v2997, %v3072
        %v3158 = vadd.f32 %v2998, %v3075
        %v3159 = vadd.f32 %v2999, %v3078
        %v3160 = vadd.f32 %v3000, %v3081
        %v3161 = vadd.f32 %v3001, %v3084
        %v3162 = vadd.f32 %v3002, %v3087
        %v3163 = vadd.f32 %v3003, %v3090
        %v3164 = vadd.f32 %v3004, %v3093
        %v3165 = vadd.f32 %v3005, %v3096
        %v3166 = vadd.f32 %v3006, %v3099
        %v3167 = vadd.f32 %v3007, %v3102
        %v3168 = vadd.f32 %v3008, %v3105
        %v3169 = vadd.f32 %v3009, %v3108
        %v3170 = vadd.f32 %v3010, %v3111
        %v3171 = vadd.f32 %v3011, %v3114
        %v3172 = vadd.f32 %v3012, %v3117
        %v3173 = vadd.f32 %v3013, %v3120
        %v3174 = vadd.f32 %v3014, %v3123
        %v3175 = vadd.f32 %v3015, %v3126
        %v3176 = vadd.f32 %v3016, %v3129
        %v3177 = vadd.f32 %v3017, %v3132
        %v3178 = vadd.f32 %v3018, %v3135
        %v3179 = vadd.f32 %v3019, %v3138
        %v3180 = vadd.f32 %v3020, %v3141
        %v3181 = vadd.f32 %v3021, %v3144
        %v3182 = vadd.f32 %v3022, %v3147
        %v3183 = vadd.f32 %v3023, %v3150
        %s3184 = scalar_lea.vmem %s3, 448
        %v3185 = vld [vmem:[%s3184] sm:$0xff]
        %v3186 = vld [vmem:[%s3184 + $0x8] sm:$0xff]
        %v3187 = vld [vmem:[%s3184 + $0x10] sm:$0xff]
        %v3188 = vld [vmem:[%s3184 + $0x18] sm:$0xff]
        %v3189 = vld [vmem:[%s3184 + $0x20] sm:$0xff]
        %v3190 = vld [vmem:[%s3184 + $0x28] sm:$0xff]
        %v3191 = vld [vmem:[%s3184 + $0x30] sm:$0xff]
        %v3192 = vld [vmem:[%s3184 + $0x38] sm:$0xff]
        %v3194 = vsel %vm223, %v2772, 0
        %v3197 = vsel %vm223, %v2773, 0
        %3199 = vmatpush.msra.mxu0 0.0
        %3200 = vmatpush.msra.mxu0 0.0
        %3201 = vmatpush.msra.mxu0 0.0
        %3202 = vmatpush.msra.mxu0 0.0
        %3203 = vmatpush.msra.mxu0 0.0
        %3204 = vmatpush.msra.mxu0 0.0
        %3205 = vmatpush.msra.mxu0 0.0
        %3206 = vmatpush.msra.mxu0 0.0
        %3207 = vmatpush.msra.mxu0 %v3192
        %3208 = vmatpush.msra.mxu0 %v3191
        %3209 = vmatpush.msra.mxu0 %v3190
        %3210 = vmatpush.msra.mxu0 %v3189
        %3211 = vmatpush.msra.mxu0 %v3188
        %3212 = vmatpush.msra.mxu0 %v3187
        %3213 = vmatpush.msra.mxu0 %v3186
        %3214 = vmatpush.msra.mxu0 %v3185
        %3215 = vmatmul.f32.gmra.mxu0 %v2796
        %v3216 = vpop.f32.mrf.mxu0
        %v3217 = vadd.f32 0.0, %v3216
        %3218 = vmatmul.f32.gmra.mxu0 %v2799
        %v3219 = vpop.f32.mrf.mxu0
        %v3220 = vadd.f32 0.0, %v3219
        %3221 = vmatmul.f32.gmra.mxu0 %v2802
        %v3222 = vpop.f32.mrf.mxu0
        %v3223 = vadd.f32 0.0, %v3222
        %3224 = vmatmul.f32.gmra.mxu0 %v2805
        %v3225 = vpop.f32.mrf.mxu0
        %v3226 = vadd.f32 0.0, %v3225
        %3227 = vmatmul.f32.gmra.mxu0 %v2808
        %v3228 = vpop.f32.mrf.mxu0
        %v3229 = vadd.f32 0.0, %v3228
        %3230 = vmatmul.f32.gmra.mxu0 %v2811
        %v3231 = vpop.f32.mrf.mxu0
        %v3232 = vadd.f32 0.0, %v3231
        %3233 = vmatmul.f32.gmra.mxu0 %v2814
        %v3234 = vpop.f32.mrf.mxu0
        %v3235 = vadd.f32 0.0, %v3234
        %3236 = vmatmul.f32.gmra.mxu0 %v2817
        %v3237 = vpop.f32.mrf.mxu0
        %v3238 = vadd.f32 0.0, %v3237
        %3239 = vmatmul.f32.gmra.mxu0 %v2820
        %v3240 = vpop.f32.mrf.mxu0
        %v3241 = vadd.f32 0.0, %v3240
        %3242 = vmatmul.f32.gmra.mxu0 %v2823
        %v3243 = vpop.f32.mrf.mxu0
        %v3244 = vadd.f32 0.0, %v3243
        %3245 = vmatmul.f32.gmra.mxu0 %v2826
        %v3246 = vpop.f32.mrf.mxu0
        %v3247 = vadd.f32 0.0, %v3246
        %3248 = vmatmul.f32.gmra.mxu0 %v2829
        %v3249 = vpop.f32.mrf.mxu0
        %v3250 = vadd.f32 0.0, %v3249
        %3251 = vmatmul.f32.gmra.mxu0 %v2832
        %v3252 = vpop.f32.mrf.mxu0
        %v3253 = vadd.f32 0.0, %v3252
        %3254 = vmatmul.f32.gmra.mxu0 %v2835
        %v3255 = vpop.f32.mrf.mxu0
        %v3256 = vadd.f32 0.0, %v3255
        %3257 = vmatmul.f32.gmra.mxu0 %v2838
        %v3258 = vpop.f32.mrf.mxu0
        %v3259 = vadd.f32 0.0, %v3258
        %3260 = vmatmul.f32.gmra.mxu0 %v2841
        %v3261 = vpop.f32.mrf.mxu0
        %v3262 = vadd.f32 0.0, %v3261
        %3263 = vmatmul.f32.gmra.mxu0 %v2844
        %v3264 = vpop.f32.mrf.mxu0
        %v3265 = vadd.f32 0.0, %v3264
        %3266 = vmatmul.f32.gmra.mxu0 %v2847
        %v3267 = vpop.f32.mrf.mxu0
        %v3268 = vadd.f32 0.0, %v3267
        %3269 = vmatmul.f32.gmra.mxu0 %v2850
        %v3270 = vpop.f32.mrf.mxu0
        %v3271 = vadd.f32 0.0, %v3270
        %3272 = vmatmul.f32.gmra.mxu0 %v2853
        %v3273 = vpop.f32.mrf.mxu0
        %v3274 = vadd.f32 0.0, %v3273
        %3275 = vmatmul.f32.gmra.mxu0 %v2856
        %v3276 = vpop.f32.mrf.mxu0
        %v3277 = vadd.f32 0.0, %v3276
        %3278 = vmatmul.f32.gmra.mxu0 %v2859
        %v3279 = vpop.f32.mrf.mxu0
        %v3280 = vadd.f32 0.0, %v3279
        %3281 = vmatmul.f32.gmra.mxu0 %v2862
        %v3282 = vpop.f32.mrf.mxu0
        %v3283 = vadd.f32 0.0, %v3282
        %3284 = vmatmul.f32.gmra.mxu0 %v2865
        %v3285 = vpop.f32.mrf.mxu0
        %v3286 = vadd.f32 0.0, %v3285
        %3287 = vmatmul.f32.gmra.mxu0 %v2868
        %v3288 = vpop.f32.mrf.mxu0
        %v3289 = vadd.f32 0.0, %v3288
        %3290 = vmatmul.f32.gmra.mxu0 %v2871
        %v3291 = vpop.f32.mrf.mxu0
        %v3292 = vadd.f32 0.0, %v3291
        %3293 = vmatmul.f32.gmra.mxu0 %v2874
        %v3294 = vpop.f32.mrf.mxu0
        %v3295 = vadd.f32 0.0, %v3294
        %3296 = vmatmul.f32.gmra.mxu0 %v2877
        %v3297 = vpop.f32.mrf.mxu0
        %v3298 = vadd.f32 0.0, %v3297
        %3299 = vmatmul.f32.gmra.mxu0 %v3034
        %v3300 = vpop.f32.mrf.mxu0
        %v3301 = vadd.f32 0.0, %v3300
        %3302 = vmatmul.f32.gmra.mxu0 %v3037
        %v3303 = vpop.f32.mrf.mxu0
        %v3304 = vadd.f32 0.0, %v3303
        %3305 = vmatmul.f32.gmra.mxu0 %v3194
        %v3306 = vpop.f32.mrf.mxu0
        %v3307 = vadd.f32 0.0, %v3306
        %3308 = vmatmul.f32.gmra.mxu0 %v3197
        %v3309 = vpop.f32.mrf.mxu0
        %v3310 = vadd.f32 0.0, %v3309
        %3311 = vdwg.mxu0
        %v3312 = vadd.f32 %v3152, %v3217
        %v3313 = vadd.f32 %v3153, %v3220
        %v3314 = vadd.f32 %v3154, %v3223
        %v3315 = vadd.f32 %v3155, %v3226
        %v3316 = vadd.f32 %v3156, %v3229
        %v3317 = vadd.f32 %v3157, %v3232
        %v3318 = vadd.f32 %v3158, %v3235
        %v3319 = vadd.f32 %v3159, %v3238
        %v3320 = vadd.f32 %v3160, %v3241
        %v3321 = vadd.f32 %v3161, %v3244
        %v3322 = vadd.f32 %v3162, %v3247
        %v3323 = vadd.f32 %v3163, %v3250
        %v3324 = vadd.f32 %v3164, %v3253
        %v3325 = vadd.f32 %v3165, %v3256
        %v3326 = vadd.f32 %v3166, %v3259
        %v3327 = vadd.f32 %v3167, %v3262
        %v3328 = vadd.f32 %v3168, %v3265
        %v3329 = vadd.f32 %v3169, %v3268
        %v3330 = vadd.f32 %v3170, %v3271
        %v3331 = vadd.f32 %v3171, %v3274
        %v3332 = vadd.f32 %v3172, %v3277
        %v3333 = vadd.f32 %v3173, %v3280
        %v3334 = vadd.f32 %v3174, %v3283
        %v3335 = vadd.f32 %v3175, %v3286
        %v3336 = vadd.f32 %v3176, %v3289
        %v3337 = vadd.f32 %v3177, %v3292
        %v3338 = vadd.f32 %v3178, %v3295
        %v3339 = vadd.f32 %v3179, %v3298
        %v3340 = vadd.f32 %v3180, %v3301
        %v3341 = vadd.f32 %v3181, %v3304
        %v3342 = vadd.f32 %v3182, %v3307
        %v3343 = vadd.f32 %v3183, %v3310
        %v3344 = vld [vmem:[#allocation2 + $0x2] sm:$0xff]
        %v3345 = vld [vmem:[#allocation2 + $0xa] sm:$0xff]
        %v3346 = vld [vmem:[#allocation2 + $0x1a] sm:$0xff]
        %v3347 = vld [vmem:[#allocation2 + $0x22] sm:$0xff]
        %v3348 = vld [vmem:[#allocation2 + $0x32] sm:$0xff]
        %v3349 = vld [vmem:[#allocation2 + $0x3a] sm:$0xff]
        %v3350 = vld [vmem:[#allocation2 + $0x4a] sm:$0xff]
        %v3351 = vld [vmem:[#allocation2 + $0x52] sm:$0xff]
        %v3352 = vld [vmem:[#allocation2 + $0x62] sm:$0xff]
        %v3353 = vld [vmem:[#allocation2 + $0x6a] sm:$0xff]
        %v3354 = vld [vmem:[#allocation2 + $0x7a] sm:$0xff]
        %v3355 = vld [vmem:[#allocation2 + $0x82] sm:$0xff]
        %v3356 = vld [vmem:[#allocation2 + $0x92] sm:$0xff]
        %v3357 = vld [vmem:[#allocation2 + $0x9a] sm:$0xff]
        %v3358 = vld [vmem:[#allocation2 + $0xaa] sm:$0xff]
        %v3359 = vld [vmem:[#allocation2 + $0xb2] sm:$0xff]
        %v3360 = vld [vmem:[#allocation2 + $0xc2] sm:$0xff]
        %v3361 = vld [vmem:[#allocation2 + $0xca] sm:$0xff]
        %v3362 = vld [vmem:[#allocation2 + $0xda] sm:$0xff]
        %v3363 = vld [vmem:[#allocation2 + $0xe2] sm:$0xff]
        %v3364 = vld [vmem:[#allocation2 + $0xf2] sm:$0xff]
        %v3365 = vld [vmem:[#allocation2 + $0xfa] sm:$0xff]
        %v3366 = vld [vmem:[#allocation2 + $0x10a] sm:$0xff]
        %v3367 = vld [vmem:[#allocation2 + $0x112] sm:$0xff]
        %v3368 = vld [vmem:[#allocation2 + $0x122] sm:$0xff]
        %v3369 = vld [vmem:[#allocation2 + $0x12a] sm:$0xff]
        %v3370 = vld [vmem:[#allocation2 + $0x13a] sm:$0xff]
        %v3371 = vld [vmem:[#allocation2 + $0x142] sm:$0xff]
        %v3372 = vld [vmem:[#allocation2 + $0x152] sm:$0xff]
        %v3373 = vld [vmem:[#allocation2 + $0x15a] sm:$0xff]
        %v3374 = vld [vmem:[#allocation2 + $0x16a] sm:$0xff]
        %v3375 = vld [vmem:[#allocation2 + $0x172] sm:$0xff]
        %v3376 = vld [vmem:[#allocation2 + $0x182] sm:$0xff]
        %v3377 = vld [vmem:[#allocation2 + $0x18a] sm:$0xff]
        %v3378 = vld [vmem:[#allocation2 + $0x19a] sm:$0xff]
        %v3379 = vld [vmem:[#allocation2 + $0x1a2] sm:$0xff]
        %s3380 = scalar_lea.vmem %s3, 128
        %v3381 = vld [vmem:[%s3380] sm:$0xff]
        %v3382 = vld [vmem:[%s3380 + $0x8] sm:$0xff]
        %v3383 = vld [vmem:[%s3380 + $0x10] sm:$0xff]
        %v3384 = vld [vmem:[%s3380 + $0x18] sm:$0xff]
        %v3385 = vld [vmem:[%s3380 + $0x20] sm:$0xff]
        %v3386 = vld [vmem:[%s3380 + $0x28] sm:$0xff]
        %v3387 = vld [vmem:[%s3380 + $0x30] sm:$0xff]
        %v3388 = vld [vmem:[%s3380 + $0x38] sm:$0xff]
        %v3390 = vsel %vm223, %v3344, 0
        %v3393 = vsel %vm223, %v3345, 0
        %v3396 = vsel %vm223, %v3346, 0
        %v3399 = vsel %vm223, %v3347, 0
        %v3402 = vsel %vm223, %v3348, 0
        %v3405 = vsel %vm223, %v3349, 0
        %v3408 = vsel %vm223, %v3350, 0
        %v3411 = vsel %vm223, %v3351, 0
        %v3414 = vsel %vm223, %v3352, 0
        %v3417 = vsel %vm223, %v3353, 0
        %v3420 = vsel %vm223, %v3354, 0
        %v3423 = vsel %vm223, %v3355, 0
        %v3426 = vsel %vm223, %v3356, 0
        %v3429 = vsel %vm223, %v3357, 0
        %v3432 = vsel %vm223, %v3358, 0
        %v3435 = vsel %vm223, %v3359, 0
        %v3438 = vsel %vm223, %v3360, 0
        %v3441 = vsel %vm223, %v3361, 0
        %v3444 = vsel %vm223, %v3362, 0
        %v3447 = vsel %vm223, %v3363, 0
        %v3450 = vsel %vm223, %v3364, 0
        %v3453 = vsel %vm223, %v3365, 0
        %v3456 = vsel %vm223, %v3366, 0
        %v3459 = vsel %vm223, %v3367, 0
        %v3462 = vsel %vm223, %v3368, 0
        %v3465 = vsel %vm223, %v3369, 0
        %v3468 = vsel %vm223, %v3370, 0
        %v3471 = vsel %vm223, %v3371, 0
        %v3474 = vsel %vm223, %v3372, 0
        %v3477 = vsel %vm223, %v3373, 0
        %v3480 = vsel %vm223, %v3374, 0
        %v3483 = vsel %vm223, %v3375, 0
        %3485 = vmatpush.msra.mxu0 0.0
        %3486 = vmatpush.msra.mxu0 0.0
        %3487 = vmatpush.msra.mxu0 0.0
        %3488 = vmatpush.msra.mxu0 0.0
        %3489 = vmatpush.msra.mxu0 0.0
        %3490 = vmatpush.msra.mxu0 0.0
        %3491 = vmatpush.msra.mxu0 0.0
        %3492 = vmatpush.msra.mxu0 0.0
        %3493 = vmatpush.msra.mxu0 %v3388
        %3494 = vmatpush.msra.mxu0 %v3387
        %3495 = vmatpush.msra.mxu0 %v3386
        %3496 = vmatpush.msra.mxu0 %v3385
        %3497 = vmatpush.msra.mxu0 %v3384
        %3498 = vmatpush.msra.mxu0 %v3383
        %3499 = vmatpush.msra.mxu0 %v3382
        %3500 = vmatpush.msra.mxu0 %v3381
        %3501 = vmatmul.f32.gmra.mxu0 %v3390
        %v3502 = vpop.f32.mrf.mxu0
        %v3503 = vadd.f32 0.0, %v3502
        %3504 = vmatmul.f32.gmra.mxu0 %v3393
        %v3505 = vpop.f32.mrf.mxu0
        %v3506 = vadd.f32 0.0, %v3505
        %3507 = vmatmul.f32.gmra.mxu0 %v3396
        %v3508 = vpop.f32.mrf.mxu0
        %v3509 = vadd.f32 0.0, %v3508
        %3510 = vmatmul.f32.gmra.mxu0 %v3399
        %v3511 = vpop.f32.mrf.mxu0
        %v3512 = vadd.f32 0.0, %v3511
        %3513 = vmatmul.f32.gmra.mxu0 %v3402
        %v3514 = vpop.f32.mrf.mxu0
        %v3515 = vadd.f32 0.0, %v3514
        %3516 = vmatmul.f32.gmra.mxu0 %v3405
        %v3517 = vpop.f32.mrf.mxu0
        %v3518 = vadd.f32 0.0, %v3517
        %3519 = vmatmul.f32.gmra.mxu0 %v3408
        %v3520 = vpop.f32.mrf.mxu0
        %v3521 = vadd.f32 0.0, %v3520
        %3522 = vmatmul.f32.gmra.mxu0 %v3411
        %v3523 = vpop.f32.mrf.mxu0
        %v3524 = vadd.f32 0.0, %v3523
        %3525 = vmatmul.f32.gmra.mxu0 %v3414
        %v3526 = vpop.f32.mrf.mxu0
        %v3527 = vadd.f32 0.0, %v3526
        %3528 = vmatmul.f32.gmra.mxu0 %v3417
        %v3529 = vpop.f32.mrf.mxu0
        %v3530 = vadd.f32 0.0, %v3529
        %3531 = vmatmul.f32.gmra.mxu0 %v3420
        %v3532 = vpop.f32.mrf.mxu0
        %v3533 = vadd.f32 0.0, %v3532
        %3534 = vmatmul.f32.gmra.mxu0 %v3423
        %v3535 = vpop.f32.mrf.mxu0
        %v3536 = vadd.f32 0.0, %v3535
        %3537 = vmatmul.f32.gmra.mxu0 %v3426
        %v3538 = vpop.f32.mrf.mxu0
        %v3539 = vadd.f32 0.0, %v3538
        %3540 = vmatmul.f32.gmra.mxu0 %v3429
        %v3541 = vpop.f32.mrf.mxu0
        %v3542 = vadd.f32 0.0, %v3541
        %3543 = vmatmul.f32.gmra.mxu0 %v3432
        %v3544 = vpop.f32.mrf.mxu0
        %v3545 = vadd.f32 0.0, %v3544
        %3546 = vmatmul.f32.gmra.mxu0 %v3435
        %v3547 = vpop.f32.mrf.mxu0
        %v3548 = vadd.f32 0.0, %v3547
        %3549 = vmatmul.f32.gmra.mxu0 %v3438
        %v3550 = vpop.f32.mrf.mxu0
        %v3551 = vadd.f32 0.0, %v3550
        %3552 = vmatmul.f32.gmra.mxu0 %v3441
        %v3553 = vpop.f32.mrf.mxu0
        %v3554 = vadd.f32 0.0, %v3553
        %3555 = vmatmul.f32.gmra.mxu0 %v3444
        %v3556 = vpop.f32.mrf.mxu0
        %v3557 = vadd.f32 0.0, %v3556
        %3558 = vmatmul.f32.gmra.mxu0 %v3447
        %v3559 = vpop.f32.mrf.mxu0
        %v3560 = vadd.f32 0.0, %v3559
        %3561 = vmatmul.f32.gmra.mxu0 %v3450
        %v3562 = vpop.f32.mrf.mxu0
        %v3563 = vadd.f32 0.0, %v3562
        %3564 = vmatmul.f32.gmra.mxu0 %v3453
        %v3565 = vpop.f32.mrf.mxu0
        %v3566 = vadd.f32 0.0, %v3565
        %3567 = vmatmul.f32.gmra.mxu0 %v3456
        %v3568 = vpop.f32.mrf.mxu0
        %v3569 = vadd.f32 0.0, %v3568
        %3570 = vmatmul.f32.gmra.mxu0 %v3459
        %v3571 = vpop.f32.mrf.mxu0
        %v3572 = vadd.f32 0.0, %v3571
        %3573 = vmatmul.f32.gmra.mxu0 %v3462
        %v3574 = vpop.f32.mrf.mxu0
        %v3575 = vadd.f32 0.0, %v3574
        %3576 = vmatmul.f32.gmra.mxu0 %v3465
        %v3577 = vpop.f32.mrf.mxu0
        %v3578 = vadd.f32 0.0, %v3577
        %3579 = vmatmul.f32.gmra.mxu0 %v3468
        %v3580 = vpop.f32.mrf.mxu0
        %v3581 = vadd.f32 0.0, %v3580
        %3582 = vmatmul.f32.gmra.mxu0 %v3471
        %v3583 = vpop.f32.mrf.mxu0
        %v3584 = vadd.f32 0.0, %v3583
        %3585 = vmatmul.f32.gmra.mxu0 %v3474
        %v3586 = vpop.f32.mrf.mxu0
        %v3587 = vadd.f32 0.0, %v3586
        %3588 = vmatmul.f32.gmra.mxu0 %v3477
        %v3589 = vpop.f32.mrf.mxu0
        %v3590 = vadd.f32 0.0, %v3589
        %3591 = vmatmul.f32.gmra.mxu0 %v3480
        %v3592 = vpop.f32.mrf.mxu0
        %v3593 = vadd.f32 0.0, %v3592
        %3594 = vmatmul.f32.gmra.mxu0 %v3483
        %v3595 = vpop.f32.mrf.mxu0
        %v3596 = vadd.f32 0.0, %v3595
        %3597 = vdwg.mxu0
        %v3598 = vadd.f32 %v3312, %v3503
        %v3599 = vadd.f32 %v3313, %v3506
        %v3600 = vadd.f32 %v3314, %v3509
        %v3601 = vadd.f32 %v3315, %v3512
        %v3602 = vadd.f32 %v3316, %v3515
        %v3603 = vadd.f32 %v3317, %v3518
        %v3604 = vadd.f32 %v3318, %v3521
        %v3605 = vadd.f32 %v3319, %v3524
        %v3606 = vadd.f32 %v3320, %v3527
        %v3607 = vadd.f32 %v3321, %v3530
        %v3608 = vadd.f32 %v3322, %v3533
        %v3609 = vadd.f32 %v3323, %v3536
        %v3610 = vadd.f32 %v3324, %v3539
        %v3611 = vadd.f32 %v3325, %v3542
        %v3612 = vadd.f32 %v3326, %v3545
        %v3613 = vadd.f32 %v3327, %v3548
        %v3614 = vadd.f32 %v3328, %v3551
        %v3615 = vadd.f32 %v3329, %v3554
        %v3616 = vadd.f32 %v3330, %v3557
        %v3617 = vadd.f32 %v3331, %v3560
        %v3618 = vadd.f32 %v3332, %v3563
        %v3619 = vadd.f32 %v3333, %v3566
        %v3620 = vadd.f32 %v3334, %v3569
        %v3621 = vadd.f32 %v3335, %v3572
        %v3622 = vadd.f32 %v3336, %v3575
        %v3623 = vadd.f32 %v3337, %v3578
        %v3624 = vadd.f32 %v3338, %v3581
        %v3625 = vadd.f32 %v3339, %v3584
        %v3626 = vadd.f32 %v3340, %v3587
        %v3627 = vadd.f32 %v3341, %v3590
        %v3628 = vadd.f32 %v3342, %v3593
        %v3629 = vadd.f32 %v3343, %v3596
        %s3630 = scalar_lea.vmem %s3, 320
        %v3631 = vld [vmem:[%s3630] sm:$0xff]
        %v3632 = vld [vmem:[%s3630 + $0x8] sm:$0xff]
        %v3633 = vld [vmem:[%s3630 + $0x10] sm:$0xff]
        %v3634 = vld [vmem:[%s3630 + $0x18] sm:$0xff]
        %v3635 = vld [vmem:[%s3630 + $0x20] sm:$0xff]
        %v3636 = vld [vmem:[%s3630 + $0x28] sm:$0xff]
        %v3637 = vld [vmem:[%s3630 + $0x30] sm:$0xff]
        %v3638 = vld [vmem:[%s3630 + $0x38] sm:$0xff]
        %v3640 = vsel %vm223, %v3376, 0
        %v3643 = vsel %vm223, %v3377, 0
        %3645 = vmatpush.msra.mxu0 0.0
        %3646 = vmatpush.msra.mxu0 0.0
        %3647 = vmatpush.msra.mxu0 0.0
        %3648 = vmatpush.msra.mxu0 0.0
        %3649 = vmatpush.msra.mxu0 0.0
        %3650 = vmatpush.msra.mxu0 0.0
        %3651 = vmatpush.msra.mxu0 0.0
        %3652 = vmatpush.msra.mxu0 0.0
        %3653 = vmatpush.msra.mxu0 %v3638
        %3654 = vmatpush.msra.mxu0 %v3637
        %3655 = vmatpush.msra.mxu0 %v3636
        %3656 = vmatpush.msra.mxu0 %v3635
        %3657 = vmatpush.msra.mxu0 %v3634
        %3658 = vmatpush.msra.mxu0 %v3633
        %3659 = vmatpush.msra.mxu0 %v3632
        %3660 = vmatpush.msra.mxu0 %v3631
        %3661 = vmatmul.f32.gmra.mxu0 %v3396
        %v3662 = vpop.f32.mrf.mxu0
        %v3663 = vadd.f32 0.0, %v3662
        %3664 = vmatmul.f32.gmra.mxu0 %v3399
        %v3665 = vpop.f32.mrf.mxu0
        %v3666 = vadd.f32 0.0, %v3665
        %3667 = vmatmul.f32.gmra.mxu0 %v3402
        %v3668 = vpop.f32.mrf.mxu0
        %v3669 = vadd.f32 0.0, %v3668
        %3670 = vmatmul.f32.gmra.mxu0 %v3405
        %v3671 = vpop.f32.mrf.mxu0
        %v3672 = vadd.f32 0.0, %v3671
        %3673 = vmatmul.f32.gmra.mxu0 %v3408
        %v3674 = vpop.f32.mrf.mxu0
        %v3675 = vadd.f32 0.0, %v3674
        %3676 = vmatmul.f32.gmra.mxu0 %v3411
        %v3677 = vpop.f32.mrf.mxu0
        %v3678 = vadd.f32 0.0, %v3677
        %3679 = vmatmul.f32.gmra.mxu0 %v3414
        %v3680 = vpop.f32.mrf.mxu0
        %v3681 = vadd.f32 0.0, %v3680
        %3682 = vmatmul.f32.gmra.mxu0 %v3417
        %v3683 = vpop.f32.mrf.mxu0
        %v3684 = vadd.f32 0.0, %v3683
        %3685 = vmatmul.f32.gmra.mxu0 %v3420
        %v3686 = vpop.f32.mrf.mxu0
        %v3687 = vadd.f32 0.0, %v3686
        %3688 = vmatmul.f32.gmra.mxu0 %v3423
        %v3689 = vpop.f32.mrf.mxu0
        %v3690 = vadd.f32 0.0, %v3689
        %3691 = vmatmul.f32.gmra.mxu0 %v3426
        %v3692 = vpop.f32.mrf.mxu0
        %v3693 = vadd.f32 0.0, %v3692
        %3694 = vmatmul.f32.gmra.mxu0 %v3429
        %v3695 = vpop.f32.mrf.mxu0
        %v3696 = vadd.f32 0.0, %v3695
        %3697 = vmatmul.f32.gmra.mxu0 %v3432
        %v3698 = vpop.f32.mrf.mxu0
        %v3699 = vadd.f32 0.0, %v3698
        %3700 = vmatmul.f32.gmra.mxu0 %v3435
        %v3701 = vpop.f32.mrf.mxu0
        %v3702 = vadd.f32 0.0, %v3701
        %3703 = vmatmul.f32.gmra.mxu0 %v3438
        %v3704 = vpop.f32.mrf.mxu0
        %v3705 = vadd.f32 0.0, %v3704
        %3706 = vmatmul.f32.gmra.mxu0 %v3441
        %v3707 = vpop.f32.mrf.mxu0
        %v3708 = vadd.f32 0.0, %v3707
        %3709 = vmatmul.f32.gmra.mxu0 %v3444
        %v3710 = vpop.f32.mrf.mxu0
        %v3711 = vadd.f32 0.0, %v3710
        %3712 = vmatmul.f32.gmra.mxu0 %v3447
        %v3713 = vpop.f32.mrf.mxu0
        %v3714 = vadd.f32 0.0, %v3713
        %3715 = vmatmul.f32.gmra.mxu0 %v3450
        %v3716 = vpop.f32.mrf.mxu0
        %v3717 = vadd.f32 0.0, %v3716
        %3718 = vmatmul.f32.gmra.mxu0 %v3453
        %v3719 = vpop.f32.mrf.mxu0
        %v3720 = vadd.f32 0.0, %v3719
        %3721 = vmatmul.f32.gmra.mxu0 %v3456
        %v3722 = vpop.f32.mrf.mxu0
        %v3723 = vadd.f32 0.0, %v3722
        %3724 = vmatmul.f32.gmra.mxu0 %v3459
        %v3725 = vpop.f32.mrf.mxu0
        %v3726 = vadd.f32 0.0, %v3725
        %3727 = vmatmul.f32.gmra.mxu0 %v3462
        %v3728 = vpop.f32.mrf.mxu0
        %v3729 = vadd.f32 0.0, %v3728
        %3730 = vmatmul.f32.gmra.mxu0 %v3465
        %v3731 = vpop.f32.mrf.mxu0
        %v3732 = vadd.f32 0.0, %v3731
        %3733 = vmatmul.f32.gmra.mxu0 %v3468
        %v3734 = vpop.f32.mrf.mxu0
        %v3735 = vadd.f32 0.0, %v3734
        %3736 = vmatmul.f32.gmra.mxu0 %v3471
        %v3737 = vpop.f32.mrf.mxu0
        %v3738 = vadd.f32 0.0, %v3737
        %3739 = vmatmul.f32.gmra.mxu0 %v3474
        %v3740 = vpop.f32.mrf.mxu0
        %v3741 = vadd.f32 0.0, %v3740
        %3742 = vmatmul.f32.gmra.mxu0 %v3477
        %v3743 = vpop.f32.mrf.mxu0
        %v3744 = vadd.f32 0.0, %v3743
        %3745 = vmatmul.f32.gmra.mxu0 %v3480
        %v3746 = vpop.f32.mrf.mxu0
        %v3747 = vadd.f32 0.0, %v3746
        %3748 = vmatmul.f32.gmra.mxu0 %v3483
        %v3749 = vpop.f32.mrf.mxu0
        %v3750 = vadd.f32 0.0, %v3749
        %3751 = vmatmul.f32.gmra.mxu0 %v3640
        %v3752 = vpop.f32.mrf.mxu0
        %v3753 = vadd.f32 0.0, %v3752
        %3754 = vmatmul.f32.gmra.mxu0 %v3643
        %v3755 = vpop.f32.mrf.mxu0
        %v3756 = vadd.f32 0.0, %v3755
        %3757 = vdwg.mxu0
        %v3758 = vadd.f32 %v3598, %v3663
        %v3759 = vadd.f32 %v3599, %v3666
        %v3760 = vadd.f32 %v3600, %v3669
        %v3761 = vadd.f32 %v3601, %v3672
        %v3762 = vadd.f32 %v3602, %v3675
        %v3763 = vadd.f32 %v3603, %v3678
        %v3764 = vadd.f32 %v3604, %v3681
        %v3765 = vadd.f32 %v3605, %v3684
        %v3766 = vadd.f32 %v3606, %v3687
        %v3767 = vadd.f32 %v3607, %v3690
        %v3768 = vadd.f32 %v3608, %v3693
        %v3769 = vadd.f32 %v3609, %v3696
        %v3770 = vadd.f32 %v3610, %v3699
        %v3771 = vadd.f32 %v3611, %v3702
        %v3772 = vadd.f32 %v3612, %v3705
        %v3773 = vadd.f32 %v3613, %v3708
        %v3774 = vadd.f32 %v3614, %v3711
        %v3775 = vadd.f32 %v3615, %v3714
        %v3776 = vadd.f32 %v3616, %v3717
        %v3777 = vadd.f32 %v3617, %v3720
        %v3778 = vadd.f32 %v3618, %v3723
        %v3779 = vadd.f32 %v3619, %v3726
        %v3780 = vadd.f32 %v3620, %v3729
        %v3781 = vadd.f32 %v3621, %v3732
        %v3782 = vadd.f32 %v3622, %v3735
        %v3783 = vadd.f32 %v3623, %v3738
        %v3784 = vadd.f32 %v3624, %v3741
        %v3785 = vadd.f32 %v3625, %v3744
        %v3786 = vadd.f32 %v3626, %v3747
        %v3787 = vadd.f32 %v3627, %v3750
        %v3788 = vadd.f32 %v3628, %v3753
        %v3789 = vadd.f32 %v3629, %v3756
        %s3790 = scalar_lea.vmem %s3, 512
        %v3791 = vld [vmem:[%s3790] sm:$0xff]
        %v3792 = vld [vmem:[%s3790 + $0x8] sm:$0xff]
        %v3793 = vld [vmem:[%s3790 + $0x10] sm:$0xff]
        %v3794 = vld [vmem:[%s3790 + $0x18] sm:$0xff]
        %v3795 = vld [vmem:[%s3790 + $0x20] sm:$0xff]
        %v3796 = vld [vmem:[%s3790 + $0x28] sm:$0xff]
        %v3797 = vld [vmem:[%s3790 + $0x30] sm:$0xff]
        %v3798 = vld [vmem:[%s3790 + $0x38] sm:$0xff]
        %v3800 = vsel %vm223, %v3378, 0
        %v3803 = vsel %vm223, %v3379, 0
        %3805 = vmatpush.msra.mxu0 0.0
        %3806 = vmatpush.msra.mxu0 0.0
        %3807 = vmatpush.msra.mxu0 0.0
        %3808 = vmatpush.msra.mxu0 0.0
        %3809 = vmatpush.msra.mxu0 0.0
        %3810 = vmatpush.msra.mxu0 0.0
        %3811 = vmatpush.msra.mxu0 0.0
        %3812 = vmatpush.msra.mxu0 0.0
        %3813 = vmatpush.msra.mxu0 %v3798
        %3814 = vmatpush.msra.mxu0 %v3797
        %3815 = vmatpush.msra.mxu0 %v3796
        %3816 = vmatpush.msra.mxu0 %v3795
        %3817 = vmatpush.msra.mxu0 %v3794
        %3818 = vmatpush.msra.mxu0 %v3793
        %3819 = vmatpush.msra.mxu0 %v3792
        %3820 = vmatpush.msra.mxu0 %v3791
        %3821 = vmatmul.f32.gmra.mxu0 %v3402
        %v3822 = vpop.f32.mrf.mxu0
        %v3823 = vadd.f32 0.0, %v3822
        %3824 = vmatmul.f32.gmra.mxu0 %v3405
        %v3825 = vpop.f32.mrf.mxu0
        %v3826 = vadd.f32 0.0, %v3825
        %3827 = vmatmul.f32.gmra.mxu0 %v3408
        %v3828 = vpop.f32.mrf.mxu0
        %v3829 = vadd.f32 0.0, %v3828
        %3830 = vmatmul.f32.gmra.mxu0 %v3411
        %v3831 = vpop.f32.mrf.mxu0
        %v3832 = vadd.f32 0.0, %v3831
        %3833 = vmatmul.f32.gmra.mxu0 %v3414
        %v3834 = vpop.f32.mrf.mxu0
        %v3835 = vadd.f32 0.0, %v3834
        %3836 = vmatmul.f32.gmra.mxu0 %v3417
        %v3837 = vpop.f32.mrf.mxu0
        %v3838 = vadd.f32 0.0, %v3837
        %3839 = vmatmul.f32.gmra.mxu0 %v3420
        %v3840 = vpop.f32.mrf.mxu0
        %v3841 = vadd.f32 0.0, %v3840
        %3842 = vmatmul.f32.gmra.mxu0 %v3423
        %v3843 = vpop.f32.mrf.mxu0
        %v3844 = vadd.f32 0.0, %v3843
        %3845 = vmatmul.f32.gmra.mxu0 %v3426
        %v3846 = vpop.f32.mrf.mxu0
        %v3847 = vadd.f32 0.0, %v3846
        %3848 = vmatmul.f32.gmra.mxu0 %v3429
        %v3849 = vpop.f32.mrf.mxu0
        %v3850 = vadd.f32 0.0, %v3849
        %3851 = vmatmul.f32.gmra.mxu0 %v3432
        %v3852 = vpop.f32.mrf.mxu0
        %v3853 = vadd.f32 0.0, %v3852
        %3854 = vmatmul.f32.gmra.mxu0 %v3435
        %v3855 = vpop.f32.mrf.mxu0
        %v3856 = vadd.f32 0.0, %v3855
        %3857 = vmatmul.f32.gmra.mxu0 %v3438
        %v3858 = vpop.f32.mrf.mxu0
        %v3859 = vadd.f32 0.0, %v3858
        %3860 = vmatmul.f32.gmra.mxu0 %v3441
        %v3861 = vpop.f32.mrf.mxu0
        %v3862 = vadd.f32 0.0, %v3861
        %3863 = vmatmul.f32.gmra.mxu0 %v3444
        %v3864 = vpop.f32.mrf.mxu0
        %v3865 = vadd.f32 0.0, %v3864
        %3866 = vmatmul.f32.gmra.mxu0 %v3447
        %v3867 = vpop.f32.mrf.mxu0
        %v3868 = vadd.f32 0.0, %v3867
        %3869 = vmatmul.f32.gmra.mxu0 %v3450
        %v3870 = vpop.f32.mrf.mxu0
        %v3871 = vadd.f32 0.0, %v3870
        %3872 = vmatmul.f32.gmra.mxu0 %v3453
        %v3873 = vpop.f32.mrf.mxu0
        %v3874 = vadd.f32 0.0, %v3873
        %3875 = vmatmul.f32.gmra.mxu0 %v3456
        %v3876 = vpop.f32.mrf.mxu0
        %v3877 = vadd.f32 0.0, %v3876
        %3878 = vmatmul.f32.gmra.mxu0 %v3459
        %v3879 = vpop.f32.mrf.mxu0
        %v3880 = vadd.f32 0.0, %v3879
        %3881 = vmatmul.f32.gmra.mxu0 %v3462
        %v3882 = vpop.f32.mrf.mxu0
        %v3883 = vadd.f32 0.0, %v3882
        %3884 = vmatmul.f32.gmra.mxu0 %v3465
        %v3885 = vpop.f32.mrf.mxu0
        %v3886 = vadd.f32 0.0, %v3885
        %3887 = vmatmul.f32.gmra.mxu0 %v3468
        %v3888 = vpop.f32.mrf.mxu0
        %v3889 = vadd.f32 0.0, %v3888
        %3890 = vmatmul.f32.gmra.mxu0 %v3471
        %v3891 = vpop.f32.mrf.mxu0
        %v3892 = vadd.f32 0.0, %v3891
        %3893 = vmatmul.f32.gmra.mxu0 %v3474
        %v3894 = vpop.f32.mrf.mxu0
        %v3895 = vadd.f32 0.0, %v3894
        %3896 = vmatmul.f32.gmra.mxu0 %v3477
        %v3897 = vpop.f32.mrf.mxu0
        %v3898 = vadd.f32 0.0, %v3897
        %3899 = vmatmul.f32.gmra.mxu0 %v3480
        %v3900 = vpop.f32.mrf.mxu0
        %v3901 = vadd.f32 0.0, %v3900
        %3902 = vmatmul.f32.gmra.mxu0 %v3483
        %v3903 = vpop.f32.mrf.mxu0
        %v3904 = vadd.f32 0.0, %v3903
        %3905 = vmatmul.f32.gmra.mxu0 %v3640
        %v3906 = vpop.f32.mrf.mxu0
        %v3907 = vadd.f32 0.0, %v3906
        %3908 = vmatmul.f32.gmra.mxu0 %v3643
        %v3909 = vpop.f32.mrf.mxu0
        %v3910 = vadd.f32 0.0, %v3909
        %3911 = vmatmul.f32.gmra.mxu0 %v3800
        %v3912 = vpop.f32.mrf.mxu0
        %v3913 = vadd.f32 0.0, %v3912
        %3914 = vmatmul.f32.gmra.mxu0 %v3803
        %v3915 = vpop.f32.mrf.mxu0
        %v3916 = vadd.f32 0.0, %v3915
        %3917 = vdwg.mxu0
        %v3918 = vadd.f32 %v3758, %v3823
        %v3919 = vadd.f32 %v3759, %v3826
        %v3920 = vadd.f32 %v3760, %v3829
        %v3921 = vadd.f32 %v3761, %v3832
        %v3922 = vadd.f32 %v3762, %v3835
        %v3923 = vadd.f32 %v3763, %v3838
        %v3924 = vadd.f32 %v3764, %v3841
        %v3925 = vadd.f32 %v3765, %v3844
        %v3926 = vadd.f32 %v3766, %v3847
        %v3927 = vadd.f32 %v3767, %v3850
        %v3928 = vadd.f32 %v3768, %v3853
        %v3929 = vadd.f32 %v3769, %v3856
        %v3930 = vadd.f32 %v3770, %v3859
        %v3931 = vadd.f32 %v3771, %v3862
        %v3932 = vadd.f32 %v3772, %v3865
        %v3933 = vadd.f32 %v3773, %v3868
        %v3934 = vadd.f32 %v3774, %v3871
        %v3935 = vadd.f32 %v3775, %v3874
        %v3936 = vadd.f32 %v3776, %v3877
        %v3937 = vadd.f32 %v3777, %v3880
        %v3938 = vadd.f32 %v3778, %v3883
        %v3939 = vadd.f32 %v3779, %v3886
        %v3940 = vadd.f32 %v3780, %v3889
        %v3941 = vadd.f32 %v3781, %v3892
        %v3942 = vadd.f32 %v3782, %v3895
        %v3943 = vadd.f32 %v3783, %v3898
        %v3944 = vadd.f32 %v3784, %v3901
        %v3945 = vadd.f32 %v3785, %v3904
        %v3946 = vadd.f32 %v3786, %v3907
        %v3947 = vadd.f32 %v3787, %v3910
        %v3948 = vadd.f32 %v3788, %v3913
        %v3949 = vadd.f32 %v3789, %v3916
        %v3950 = vld [vmem:[%s4] sm:$0x1]
        %v3952 = vperm.slane %v3950, 0
        %v3954 = vadd.f32 %v3918, %v3952
        %v3955 = vadd.f32 %v3919, %v3952
        %v3956 = vadd.f32 %v3920, %v3952
        %v3957 = vadd.f32 %v3921, %v3952
        %v3958 = vadd.f32 %v3922, %v3952
        %v3959 = vadd.f32 %v3923, %v3952
        %v3960 = vadd.f32 %v3924, %v3952
        %v3961 = vadd.f32 %v3925, %v3952
        %v3962 = vadd.f32 %v3926, %v3952
        %v3963 = vadd.f32 %v3927, %v3952
        %v3964 = vadd.f32 %v3928, %v3952
        %v3965 = vadd.f32 %v3929, %v3952
        %v3966 = vadd.f32 %v3930, %v3952
        %v3967 = vadd.f32 %v3931, %v3952
        %v3968 = vadd.f32 %v3932, %v3952
        %v3969 = vadd.f32 %v3933, %v3952
        %v3970 = vadd.f32 %v3934, %v3952
        %v3971 = vadd.f32 %v3935, %v3952
        %v3972 = vadd.f32 %v3936, %v3952
        %v3973 = vadd.f32 %v3937, %v3952
        %v3974 = vadd.f32 %v3938, %v3952
        %v3975 = vadd.f32 %v3939, %v3952
        %v3976 = vadd.f32 %v3940, %v3952
        %v3977 = vadd.f32 %v3941, %v3952
        %v3978 = vadd.f32 %v3942, %v3952
        %v3979 = vadd.f32 %v3943, %v3952
        %v3980 = vadd.f32 %v3944, %v3952
        %v3981 = vadd.f32 %v3945, %v3952
        %v3982 = vadd.f32 %v3946, %v3952
        %v3983 = vadd.f32 %v3947, %v3952
        %v3984 = vadd.f32 %v3948, %v3952
        %v3985 = vadd.f32 %v3949, %v3952
        %v3986 = vld [vmem:[%s222] sm:$0xff]
        %v3987 = vld [vmem:[%s222 + $0x8] sm:$0xff]
        %v3988 = vld [vmem:[%s222 + $0x10] sm:$0xff]
        %v3989 = vld [vmem:[%s222 + $0x18] sm:$0xff]
        %v3990 = vld [vmem:[%s222 + $0x20] sm:$0xff]
        %v3991 = vld [vmem:[%s222 + $0x28] sm:$0xff]
        %v3992 = vld [vmem:[%s222 + $0x30] sm:$0xff]
        %v3993 = vld [vmem:[%s222 + $0x38] sm:$0xff]
        %v3994 = vld [vmem:[%s222 + $0x40] sm:$0xff]
        %v3995 = vld [vmem:[%s222 + $0x48] sm:$0xff]
        %v3996 = vld [vmem:[%s222 + $0x50] sm:$0xff]
        %v3997 = vld [vmem:[%s222 + $0x58] sm:$0xff]
        %v3998 = vld [vmem:[%s222 + $0x60] sm:$0xff]
        %v3999 = vld [vmem:[%s222 + $0x68] sm:$0xff]
        %v4000 = vld [vmem:[%s222 + $0x70] sm:$0xff]
        %v4001 = vld [vmem:[%s222 + $0x78] sm:$0xff]
        %v4002 = vld [vmem:[%s222 + $0x80] sm:$0xff]
        %v4003 = vld [vmem:[%s222 + $0x88] sm:$0xff]
        %v4004 = vld [vmem:[%s222 + $0x90] sm:$0xff]
        %v4005 = vld [vmem:[%s222 + $0x98] sm:$0xff]
        %v4006 = vld [vmem:[%s222 + $0xa0] sm:$0xff]
        %v4007 = vld [vmem:[%s222 + $0xa8] sm:$0xff]
        %v4008 = vld [vmem:[%s222 + $0xb0] sm:$0xff]
        %v4009 = vld [vmem:[%s222 + $0xb8] sm:$0xff]
        %v4010 = vld [vmem:[%s222 + $0xc0] sm:$0xff]
        %v4011 = vld [vmem:[%s222 + $0xc8] sm:$0xff]
        %v4012 = vld [vmem:[%s222 + $0xd0] sm:$0xff]
        %v4013 = vld [vmem:[%s222 + $0xd8] sm:$0xff]
        %v4014 = vld [vmem:[%s222 + $0xe0] sm:$0xff]
        %v4015 = vld [vmem:[%s222 + $0xe8] sm:$0xff]
        %v4016 = vld [vmem:[%s222 + $0xf0] sm:$0xff]
        %v4017 = vld [vmem:[%s222 + $0xf8] sm:$0xff]
        %v4018 = vadd.f32 %v3954, %v3986
        %v4019 = vadd.f32 %v3955, %v3987
        %v4020 = vadd.f32 %v3956, %v3988
        %v4021 = vadd.f32 %v3957, %v3989
        %v4022 = vadd.f32 %v3958, %v3990
        %v4023 = vadd.f32 %v3959, %v3991
        %v4024 = vadd.f32 %v3960, %v3992
        %v4025 = vadd.f32 %v3961, %v3993
        %v4026 = vadd.f32 %v3962, %v3994
        %v4027 = vadd.f32 %v3963, %v3995
        %v4028 = vadd.f32 %v3964, %v3996
        %v4029 = vadd.f32 %v3965, %v3997
        %v4030 = vadd.f32 %v3966, %v3998
        %v4031 = vadd.f32 %v3967, %v3999
        %v4032 = vadd.f32 %v3968, %v4000
        %v4033 = vadd.f32 %v3969, %v4001
        %v4034 = vadd.f32 %v3970, %v4002
        %v4035 = vadd.f32 %v3971, %v4003
        %v4036 = vadd.f32 %v3972, %v4004
        %v4037 = vadd.f32 %v3973, %v4005
        %v4038 = vadd.f32 %v3974, %v4006
        %v4039 = vadd.f32 %v3975, %v4007
        %v4040 = vadd.f32 %v3976, %v4008
        %v4041 = vadd.f32 %v3977, %v4009
        %v4042 = vadd.f32 %v3978, %v4010
        %v4043 = vadd.f32 %v3979, %v4011
        %v4044 = vadd.f32 %v3980, %v4012
        %v4045 = vadd.f32 %v3981, %v4013
        %v4046 = vadd.f32 %v3982, %v4014
        %v4047 = vadd.f32 %v3983, %v4015
        %v4048 = vadd.f32 %v3984, %v4016
        %v4049 = vadd.f32 %v3985, %v4017
        %v4050 = vmax.f32 %v4018, 0.0
        %v4051 = vmax.f32 %v4019, 0.0
        %v4052 = vmax.f32 %v4020, 0.0
        %v4053 = vmax.f32 %v4021, 0.0
        %v4054 = vmax.f32 %v4022, 0.0
        %v4055 = vmax.f32 %v4023, 0.0
        %v4056 = vmax.f32 %v4024, 0.0
        %v4057 = vmax.f32 %v4025, 0.0
        %v4058 = vmax.f32 %v4026, 0.0
        %v4059 = vmax.f32 %v4027, 0.0
        %v4060 = vmax.f32 %v4028, 0.0
        %v4061 = vmax.f32 %v4029, 0.0
        %v4062 = vmax.f32 %v4030, 0.0
        %v4063 = vmax.f32 %v4031, 0.0
        %v4064 = vmax.f32 %v4032, 0.0
        %v4065 = vmax.f32 %v4033, 0.0
        %v4066 = vmax.f32 %v4034, 0.0
        %v4067 = vmax.f32 %v4035, 0.0
        %v4068 = vmax.f32 %v4036, 0.0
        %v4069 = vmax.f32 %v4037, 0.0
        %v4070 = vmax.f32 %v4038, 0.0
        %v4071 = vmax.f32 %v4039, 0.0
        %v4072 = vmax.f32 %v4040, 0.0
        %v4073 = vmax.f32 %v4041, 0.0
        %v4074 = vmax.f32 %v4042, 0.0
        %v4075 = vmax.f32 %v4043, 0.0
        %v4076 = vmax.f32 %v4044, 0.0
        %v4077 = vmax.f32 %v4045, 0.0
        %v4078 = vmax.f32 %v4046, 0.0
        %v4079 = vmax.f32 %v4047, 0.0
        %v4080 = vmax.f32 %v4048, 0.0
        %v4081 = vmax.f32 %v4049, 0.0
        %4082 = vst.msk [vmem:[%s217] sm:$0xff] %vm223, %v4050
        %4083 = vst.msk [vmem:[%s217 + $0x8] sm:$0xff] %vm223, %v4051
        %4084 = vst.msk [vmem:[%s217 + $0x10] sm:$0xff] %vm223, %v4052
        %4085 = vst.msk [vmem:[%s217 + $0x18] sm:$0xff] %vm223, %v4053
        %4086 = vst.msk [vmem:[%s217 + $0x20] sm:$0xff] %vm223, %v4054
        %4087 = vst.msk [vmem:[%s217 + $0x28] sm:$0xff] %vm223, %v4055
        %4088 = vst.msk [vmem:[%s217 + $0x30] sm:$0xff] %vm223, %v4056
        %4089 = vst.msk [vmem:[%s217 + $0x38] sm:$0xff] %vm223, %v4057
        %4090 = vst.msk [vmem:[%s217 + $0x40] sm:$0xff] %vm223, %v4058
        %4091 = vst.msk [vmem:[%s217 + $0x48] sm:$0xff] %vm223, %v4059
        %4092 = vst.msk [vmem:[%s217 + $0x50] sm:$0xff] %vm223, %v4060
        %4093 = vst.msk [vmem:[%s217 + $0x58] sm:$0xff] %vm223, %v4061
        %4094 = vst.msk [vmem:[%s217 + $0x60] sm:$0xff] %vm223, %v4062
        %4095 = vst.msk [vmem:[%s217 + $0x68] sm:$0xff] %vm223, %v4063
        %4096 = vst.msk [vmem:[%s217 + $0x70] sm:$0xff] %vm223, %v4064
        %4097 = vst.msk [vmem:[%s217 + $0x78] sm:$0xff] %vm223, %v4065
        %4098 = vst.msk [vmem:[%s217 + $0x80] sm:$0xff] %vm223, %v4066
        %4099 = vst.msk [vmem:[%s217 + $0x88] sm:$0xff] %vm223, %v4067
        %4100 = vst.msk [vmem:[%s217 + $0x90] sm:$0xff] %vm223, %v4068
        %4101 = vst.msk [vmem:[%s217 + $0x98] sm:$0xff] %vm223, %v4069
        %4102 = vst.msk [vmem:[%s217 + $0xa0] sm:$0xff] %vm223, %v4070
        %4103 = vst.msk [vmem:[%s217 + $0xa8] sm:$0xff] %vm223, %v4071
        %4104 = vst.msk [vmem:[%s217 + $0xb0] sm:$0xff] %vm223, %v4072
        %4105 = vst.msk [vmem:[%s217 + $0xb8] sm:$0xff] %vm223, %v4073
        %4106 = vst.msk [vmem:[%s217 + $0xc0] sm:$0xff] %vm223, %v4074
        %4107 = vst.msk [vmem:[%s217 + $0xc8] sm:$0xff] %vm223, %v4075
        %4108 = vst.msk [vmem:[%s217 + $0xd0] sm:$0xff] %vm223, %v4076
        %4109 = vst.msk [vmem:[%s217 + $0xd8] sm:$0xff] %vm223, %v4077
        %4110 = vst.msk [vmem:[%s217 + $0xe0] sm:$0xff] %vm223, %v4078
        %4111 = vst.msk [vmem:[%s217 + $0xe8] sm:$0xff] %vm223, %v4079
        %4112 = vst.msk [vmem:[%s217 + $0xf0] sm:$0xff] %vm223, %v4080
        %4113 = vst.msk [vmem:[%s217 + $0xf8] sm:$0xff] %vm223, %v4081
        %s4114 = sand.u32 %s137, 1
        %s4115 = scalar_lea.sflag [#allocation4], %s4114
        %s4116 = sand.u32 %s137, 1
        %s4117 = smul.addr %s4116, 256
        %s4118 = scalar_lea.vmem [#allocation3], %s4117
        // Predicated region
        $region41: #{residual_block_pallas.1} parent=39 // pred_check
          %p4119 = pneg %p147
        $region42: #{residual_block_pallas.1} parent=39 // pred_check_branch
          %4121 = sbr.rel (%p4119) target = $region44
        $region43: #{residual_block_pallas.1} parent=39 // pred_region
          %4123 = vsyncadd %s4115, 0
          %s4124 = smul.addr %s19, 32
          %s4125 = smul.addr %s4124, 8
          %s4126 = scalar_lea.hbm %s5, %s4125
          %s4127 = sshll.u32 %s4118, 4
          %s4128 = int_to_ptr.vmem [resolvable:$true] %s4127
          %s4129 = sshll.u32 %s4126, 4
          %s4130 = int_to_ptr.hbm [resolvable:$true] %s4129
          %4135 = dma.vmem_to_hbm [thread:$0]  %s4128, 4096, %s4130, %s4115, 128, 128, 8
        $region44: #{residual_block_pallas.1} parent=39 // pred_fallthru
          _
      $region40: #{residual_block_pallas.1} parent=5 // pred_fallthru
        _
      %p4136 = scmp.le.s32.totalorder 2, %s14
      // Predicated region
      $region45: #{residual_block_pallas.1} parent=5 // pred_check
        %p4137 = pneg %p4136
      $region46: #{residual_block_pallas.1} parent=5 // pred_check_branch
        %4139 = sbr.rel (%p4137) target = $region48
      $region47: #{residual_block_pallas.1} parent=5 // pred_region
        %s4140 = ssub.s32 %s14, 2
        // Predicated region
        $region49: #{residual_block_pallas.1} parent=47 // pred_check
          %p4141 = pneg %p153
        $region50: #{residual_block_pallas.1} parent=47 // pred_check_branch
          %4143 = sbr.rel (%p4141) target = $region52
        $region51: #{residual_block_pallas.1} parent=47 // pred_region
          %s4144 = sand.u32 %s138, 1
          %s4145 = scalar_lea.sflag [#allocation4], %s4144
          %s4146 = sand.u32 %s138, 1
          %s4147 = smul.addr %s4146, 256
          %s4148 = scalar_lea.vmem [#allocation3], %s4147
          %4150 = dma.done %s4145, 4096
        $region52: #{residual_block_pallas.1} parent=47 // pred_fallthru
          _
      $region48: #{residual_block_pallas.1} parent=5 // pred_fallthru
        _
    $region6: #{residual_block_pallas.1} parent=1 // loop_footer
      %s18 = sadd.s32 1, %s14
    $region7: #{residual_block_pallas.1} parent=1 // loop_footer_branch
      %13 = sbr.rel target = $region3
    $region8: #{residual_block_pallas.1} parent=1 // loop_exit
      _
    %4151 = vsyncpa [#allocation4], 1
    %s4152 = scalar_lea.sflag [#allocation4], 1
    %4153 = vsyncpa %s4152, 1

</llo_original>
